<compile_context>
chip_gen: v7x
topology: tpu7x:2x2x1
jax: 0.10.0
libtpu: 0.0.40
codegen_flags: <defaults>
</compile_context>

<pallas_src>
import functools

import jax
import jax.numpy as jnp
from jax.experimental import pallas as pl
from jax.experimental.pallas import tpu as pltpu


def decoder_kernel(tok_ref, h_ref, c_ref, enc_ref,
                   emb_ref, WaH_ref, WaE_ref, ba_ref, v_ref,
                   Wie_ref, Wic_ref, Whh_ref, bg_ref,
                   Wfc_ref, bfc_ref,
                   pred_ref, hout_ref, cout_ref, attn_ref,
                   emb_vmem,
                   *, Bp, Sp, S, He, Hd):
    f32 = jnp.float32

    # ---- embedding: SMEM token index -> dynamic row gather from (V,1,E) ----
    for b in range(Bp):                                   # static unroll (Bp==8)
        emb_vmem[pl.ds(b, 1), :] = emb_ref[tok_ref[b]]    # (1, E) row
    embedded = emb_vmem[...]                              # (Bp, E)
    # dropout: eval-mode identity

    h = h_ref[...]                                        # (Bp, Hd)
    c = c_ref[...]                                        # (Bp, Hd)
    enc = enc_ref[...]                                    # (Bp, Sp, He)

    # ---- additive attention: tanh(h@WaH + enc@WaE + ba) . v ----------------
    h_part = jnp.dot(h, WaH_ref[...], preferred_element_type=f32)        # (Bp, Hd)
    # leading-dim merge/split only (last dim unchanged) -> layout preserving
    e_part = jnp.dot(enc.reshape(Bp * Sp, He), WaE_ref[...],
                     preferred_element_type=f32).reshape(Bp, Sp, Hd)
    energy = jnp.tanh(h_part[:, None, :] + e_part + ba_ref[...][None, :, :])
    scores = jnp.sum(energy * v_ref[...][None, :, :], axis=-1)           # (Bp, Sp)

    # mask padded source positions, softmax over the (lane-dense) Sp axis
    valid = jax.lax.broadcasted_iota(jnp.int32, (Bp, Sp), 1) < S
    scores = jnp.where(valid, scores, jnp.float32(-1e30))
    scores = scores - jnp.max(scores, axis=1, keepdims=True)
    ex = jnp.exp(scores)
    a = ex * pl.reciprocal(jnp.sum(ex, axis=1, keepdims=True))           # (Bp, Sp)

    # context on the MXU: (Bp,1,Sp) x (Bp,Sp,He) -> (Bp,1,He)
    context = jnp.einsum('bqs,bse->bqe', a[:, None, :], enc,
                         preferred_element_type=f32)[:, 0, :]            # (Bp, He)

    # ---- single-timestep LSTM cell (gate order i,f,g,o), concat-free -------
    gates = (jnp.dot(embedded, Wie_ref[...], preferred_element_type=f32)
             + jnp.dot(context, Wic_ref[...], preferred_element_type=f32)
             + jnp.dot(h, Whh_ref[...], preferred_element_type=f32)
             + bg_ref[...])                                              # (Bp, 4*Hd)
    i_g = jax.nn.sigmoid(gates[:, 0 * Hd:1 * Hd])
    f_g = jax.nn.sigmoid(gates[:, 1 * Hd:2 * Hd])
    g_g = jnp.tanh(gates[:, 2 * Hd:3 * Hd])
    o_g = jax.nn.sigmoid(gates[:, 3 * Hd:4 * Hd])
    c_new = f_g * c + i_g * g_g
    h_new = o_g * jnp.tanh(c_new)

    # ---- output projection (V zero-padded to 128 lanes in the weights) -----
    pred_ref[...] = (jnp.dot(h_new, Wfc_ref[...], preferred_element_type=f32)
                     + bfc_ref[...])                                     # (Bp, Vp)
    hout_ref[...] = h_new
    cout_ref[...] = c_new
    attn_ref[...] = a


def prepare_params(params, *, lane=128):
    """One-time weight layout prep: transposes, splits, bias fusion, lane padding."""
    V, E = params["emb"].shape
    Hd = params["W_hh"].shape[1]
    Vp = -(-V // lane) * lane
    Wfc_t = params["W_fc"].T                                             # (Hd, V)
    return {
        "emb": params["emb"].reshape(V, 1, E),        # leading-axis gatherable
        "WaH": params["W_attn"][:, :Hd].T,            # (Hd, Hd)
        "WaE": params["W_attn"][:, Hd:].T,            # (He, Hd)
        "ba": params["b_attn"].reshape(1, Hd),
        "v": params["v"].reshape(1, Hd),
        "Wie": params["W_ih"][:, :E].T,               # (E, 4Hd)
        "Wic": params["W_ih"][:, E:].T,               # (He, 4Hd)
        "Whh": params["W_hh"].T,                      # (Hd, 4Hd)
        "bg": (params["b_ih"] + params["b_hh"]).reshape(1, 4 * Hd),
        "Wfc": jnp.pad(Wfc_t, ((0, 0), (0, Vp - V))),                    # (Hd, Vp)
        "bfc": jnp.pad(params["b_fc"].reshape(1, V), ((0, 0), (0, Vp - V))),
    }


@jax.jit
def decoder_forward(tok, hidden, cell, enc_out, prepped):
    B = tok.shape[0]
    S, He = enc_out.shape[1], enc_out.shape[2]
    Hd = hidden.shape[1]
    V, _, E = prepped["emb"].shape
    Vp = prepped["Wfc"].shape[1]

    Bp = max(8, -(-B // 8) * 8)        # sublane-aligned batch
    Sp = -(-S // 128) * 128            # lane-dense source length

    tok_p = jnp.zeros((Bp,), jnp.int32).at[:B].set(tok.astype(jnp.int32))
    h_p = jnp.pad(hidden, ((0, Bp - B), (0, 0)))
    c_p = jnp.pad(cell, ((0, Bp - B), (0, 0)))
    enc_p = jnp.pad(enc_out, ((0, Bp - B), (0, Sp - S), (0, 0)))

    kernel = functools.partial(decoder_kernel, Bp=Bp, Sp=Sp, S=S, He=He, Hd=Hd)

    vmem = pl.BlockSpec(memory_space=pltpu.MemorySpace.VMEM)
    smem = pl.BlockSpec(memory_space=pltpu.MemorySpace.SMEM)

    out_shape = (
        jax.ShapeDtypeStruct((Bp, Vp), jnp.float32),
        jax.ShapeDtypeStruct((Bp, Hd), jnp.float32),
        jax.ShapeDtypeStruct((Bp, Hd), jnp.float32),
        jax.ShapeDtypeStruct((Bp, Sp), jnp.float32),
    )
    pred_p, h_new_p, c_new_p, attn_p = pl.pallas_call(
        kernel,
        out_shape=out_shape,
        in_specs=[smem] + [vmem] * 14,
        out_specs=(vmem,) * 4,
        scratch_shapes=[pltpu.VMEM((Bp, E), jnp.float32)],
    )(tok_p, h_p, c_p, enc_p,
      prepped["emb"], prepped["WaH"], prepped["WaE"], prepped["ba"], prepped["v"],
      prepped["Wie"], prepped["Wic"], prepped["Whh"], prepped["bg"],
      prepped["Wfc"], prepped["bfc"])

    return (pred_p[:B, :V], h_new_p[:B], c_new_p[:B], attn_p[:B, :S])


def decoder_reference(tok, hidden, cell, enc_out, params):
    """Pure-JAX reference mirroring the PyTorch forward."""
    Hd = hidden.shape[1]
    emb = params["emb"][tok]                                     # (B, E)
    S = enc_out.shape[1]
    h_rep = jnp.repeat(hidden[:, None, :], S, axis=1)            # (B, S, Hd)
    cat = jnp.concatenate([h_rep, enc_out], axis=2)              # (B, S, Hd+He)
    energy = jnp.tanh(jnp.einsum("bsf,of->bso", cat, params["W_attn"])
                      + params["b_attn"])
    scores = jnp.einsum("bso,o->bs", energy, params["v"])
    a = jax.nn.softmax(scores, axis=1)
    context = jnp.einsum("bs,bse->be", a, enc_out)
    x = jnp.concatenate([emb, context], axis=1)
    gates = (x @ params["W_ih"].T + params["b_ih"]
             + hidden @ params["W_hh"].T + params["b_hh"])
    i_g = jax.nn.sigmoid(gates[:, :Hd])
    f_g = jax.nn.sigmoid(gates[:, Hd:2 * Hd])
    g_g = jnp.tanh(gates[:, 2 * Hd:3 * Hd])
    o_g = jax.nn.sigmoid(gates[:, 3 * Hd:])
    c_new = f_g * cell + i_g * g_g
    h_new = o_g * jnp.tanh(c_new)
    pred = h_new @ params["W_fc"].T + params["b_fc"]
    return pred, h_new, c_new, a


if __name__ == "__main__":
    # small shapes consistent with the module
    B, S = 2, 8            # batch, source sequence length
    V, E = 12, 16          # output vocab (machine vocab), embedding dim
    He, Hd = 32, 32        # encoder hidden dim, decoder hidden dim
    PAD_IDX = 0            # machine_vocab[PAD_TOKEN]

    key = jax.random.PRNGKey(0)
    ks = jax.random.split(key, 12)

    emb = 0.1 * jax.random.normal(ks[0], (V, E), jnp.float32)
    emb = emb.at[PAD_IDX].set(0.0)                       # padding_idx row is zero
    params = {
        "emb": emb,
        "W_attn": 0.1 * jax.random.normal(ks[1], (Hd, Hd + He), jnp.float32),
        "b_attn": 0.1 * jax.random.normal(ks[2], (Hd,), jnp.float32),
        "v": 0.1 * jax.random.normal(ks[3], (Hd,), jnp.float32),
        "W_ih": 0.1 * jax.random.normal(ks[4], (4 * Hd, E + He), jnp.float32),
        "b_ih": 0.1 * jax.random.normal(ks[5], (4 * Hd,), jnp.float32),
        "W_hh": 0.1 * jax.random.normal(ks[6], (4 * Hd, Hd), jnp.float32),
        "b_hh": 0.1 * jax.random.normal(ks[7], (4 * Hd,), jnp.float32),
        "W_fc": 0.1 * jax.random.normal(ks[8], (V, Hd), jnp.float32),
        "b_fc": 0.1 * jax.random.normal(ks[9], (V,), jnp.float32),
    }

    tok = jax.random.randint(ks[10], (B,), 0, V, jnp.int32)      # decoder input tokens
    hidden = 0.1 * jax.random.normal(ks[11], (B, Hd), jnp.float32)
    cell = 0.1 * jax.random.normal(jax.random.PRNGKey(123), (B, Hd), jnp.float32)
    enc_out = 0.1 * jax.random.normal(jax.random.PRNGKey(456), (B, S, He), jnp.float32)

    prepped = prepare_params(params)   # one-time weight layout prep (hoisted)

    pred, h_new, c_new, attn = jax.block_until_ready(
        decoder_forward(tok, hidden, cell, enc_out, prepped))

    r_pred, r_h, r_c, r_a = decoder_reference(tok, hidden, cell, enc_out, params)

    assert jnp.allclose(pred, r_pred, atol=1e-4, rtol=1e-4), "pred mismatch"
    assert jnp.allclose(h_new, r_h, atol=1e-4, rtol=1e-4), "hidden mismatch"
    assert jnp.allclose(c_new, r_c, atol=1e-4, rtol=1e-4), "cell mismatch"
    assert jnp.allclose(attn, r_a, atol=1e-4, rtol=1e-4), "attn mismatch"

    print("KERNEL_OK")
</pallas_src>

<mosaic_0001>
module attributes {stable_mosaic.version = 11 : i64} {
  func.func @decoder_kernel(%arg0: memref<8xi32, #tpu.memory_space<smem>>, %arg1: memref<8x32xf32, #tpu.memory_space<vmem>>, %arg2: memref<8x32xf32, #tpu.memory_space<vmem>>, %arg3: memref<8x128x32xf32, #tpu.memory_space<vmem>>, %arg4: memref<12x1x16xf32, #tpu.memory_space<vmem>>, %arg5: memref<32x32xf32, #tpu.memory_space<vmem>>, %arg6: memref<32x32xf32, #tpu.memory_space<vmem>>, %arg7: memref<1x32xf32, #tpu.memory_space<vmem>>, %arg8: memref<1x32xf32, #tpu.memory_space<vmem>>, %arg9: memref<16x128xf32, #tpu.memory_space<vmem>>, %arg10: memref<32x128xf32, #tpu.memory_space<vmem>>, %arg11: memref<32x128xf32, #tpu.memory_space<vmem>>, %arg12: memref<1x128xf32, #tpu.memory_space<vmem>>, %arg13: memref<32x128xf32, #tpu.memory_space<vmem>>, %arg14: memref<1x128xf32, #tpu.memory_space<vmem>>, %arg15: memref<8x128xf32, #tpu.memory_space<vmem>>, %arg16: memref<8x32xf32, #tpu.memory_space<vmem>>, %arg17: memref<8x32xf32, #tpu.memory_space<vmem>>, %arg18: memref<8x128xf32, #tpu.memory_space<vmem>>, %arg19: memref<8x16xf32, #tpu.memory_space<vmem>>) attributes {dimension_semantics = [], scalar_prefetch = 0 : i64, scratch_operands = 1 : i64, tpu.core_type = #tpu.core_type<tc>} {
    %c0 = arith.constant 0 : index
    %0 = memref.load %arg0[%c0] : memref<8xi32, #tpu.memory_space<smem>>
    %1 = arith.index_cast %0 : i32 to index
    %c0_0 = arith.constant 0 : index
    %c0_1 = arith.constant 0 : index
    %2 = vector.load %arg4[%1, %c0_0, %c0_1] : memref<12x1x16xf32, #tpu.memory_space<vmem>>, vector<1x1x16xf32>
    %3 = vector.shape_cast %2 : vector<1x1x16xf32> to vector<1x16xf32>
    %c0_2 = arith.constant 0 : index
    %c0_3 = arith.constant 0 : index
    %4 = vector.load %arg19[%c0_2, %c0_3] : memref<8x16xf32, #tpu.memory_space<vmem>>, vector<1x16xf32>
    tpu.vector_store %arg19[%c0_2, %c0_3], %3 {strides = array<i32>} : memref<8x16xf32, #tpu.memory_space<vmem>>, vector<1x16xf32>,
    %c1 = arith.constant 1 : index
    %5 = memref.load %arg0[%c1] : memref<8xi32, #tpu.memory_space<smem>>
    %6 = arith.index_cast %5 : i32 to index
    %c0_4 = arith.constant 0 : index
    %c0_5 = arith.constant 0 : index
    %7 = vector.load %arg4[%6, %c0_4, %c0_5] : memref<12x1x16xf32, #tpu.memory_space<vmem>>, vector<1x1x16xf32>
    %8 = vector.shape_cast %7 : vector<1x1x16xf32> to vector<1x16xf32>
    %c1_6 = arith.constant 1 : index
    %c0_7 = arith.constant 0 : index
    %9 = vector.load %arg19[%c1_6, %c0_7] : memref<8x16xf32, #tpu.memory_space<vmem>>, vector<1x16xf32>
    tpu.vector_store %arg19[%c1_6, %c0_7], %8 {strides = array<i32>} : memref<8x16xf32, #tpu.memory_space<vmem>>, vector<1x16xf32>,
    %c2 = arith.constant 2 : index
    %10 = memref.load %arg0[%c2] : memref<8xi32, #tpu.memory_space<smem>>
    %11 = arith.index_cast %10 : i32 to index
    %c0_8 = arith.constant 0 : index
    %c0_9 = arith.constant 0 : index
    %12 = vector.load %arg4[%11, %c0_8, %c0_9] : memref<12x1x16xf32, #tpu.memory_space<vmem>>, vector<1x1x16xf32>
    %13 = vector.shape_cast %12 : vector<1x1x16xf32> to vector<1x16xf32>
    %c2_10 = arith.constant 2 : index
    %c0_11 = arith.constant 0 : index
    %14 = vector.load %arg19[%c2_10, %c0_11] : memref<8x16xf32, #tpu.memory_space<vmem>>, vector<1x16xf32>
    tpu.vector_store %arg19[%c2_10, %c0_11], %13 {strides = array<i32>} : memref<8x16xf32, #tpu.memory_space<vmem>>, vector<1x16xf32>,
    %c3 = arith.constant 3 : index
    %15 = memref.load %arg0[%c3] : memref<8xi32, #tpu.memory_space<smem>>
    %16 = arith.index_cast %15 : i32 to index
    %c0_12 = arith.constant 0 : index
    %c0_13 = arith.constant 0 : index
    %17 = vector.load %arg4[%16, %c0_12, %c0_13] : memref<12x1x16xf32, #tpu.memory_space<vmem>>, vector<1x1x16xf32>
    %18 = vector.shape_cast %17 : vector<1x1x16xf32> to vector<1x16xf32>
    %c3_14 = arith.constant 3 : index
    %c0_15 = arith.constant 0 : index
    %19 = vector.load %arg19[%c3_14, %c0_15] : memref<8x16xf32, #tpu.memory_space<vmem>>, vector<1x16xf32>
    tpu.vector_store %arg19[%c3_14, %c0_15], %18 {strides = array<i32>} : memref<8x16xf32, #tpu.memory_space<vmem>>, vector<1x16xf32>,
    %c4 = arith.constant 4 : index
    %20 = memref.load %arg0[%c4] : memref<8xi32, #tpu.memory_space<smem>>
    %21 = arith.index_cast %20 : i32 to index
    %c0_16 = arith.constant 0 : index
    %c0_17 = arith.constant 0 : index
    %22 = vector.load %arg4[%21, %c0_16, %c0_17] : memref<12x1x16xf32, #tpu.memory_space<vmem>>, vector<1x1x16xf32>
    %23 = vector.shape_cast %22 : vector<1x1x16xf32> to vector<1x16xf32>
    %c4_18 = arith.constant 4 : index
    %c0_19 = arith.constant 0 : index
    %24 = vector.load %arg19[%c4_18, %c0_19] : memref<8x16xf32, #tpu.memory_space<vmem>>, vector<1x16xf32>
    tpu.vector_store %arg19[%c4_18, %c0_19], %23 {strides = array<i32>} : memref<8x16xf32, #tpu.memory_space<vmem>>, vector<1x16xf32>,
    %c5 = arith.constant 5 : index
    %25 = memref.load %arg0[%c5] : memref<8xi32, #tpu.memory_space<smem>>
    %26 = arith.index_cast %25 : i32 to index
    %c0_20 = arith.constant 0 : index
    %c0_21 = arith.constant 0 : index
    %27 = vector.load %arg4[%26, %c0_20, %c0_21] : memref<12x1x16xf32, #tpu.memory_space<vmem>>, vector<1x1x16xf32>
    %28 = vector.shape_cast %27 : vector<1x1x16xf32> to vector<1x16xf32>
    %c5_22 = arith.constant 5 : index
    %c0_23 = arith.constant 0 : index
    %29 = vector.load %arg19[%c5_22, %c0_23] : memref<8x16xf32, #tpu.memory_space<vmem>>, vector<1x16xf32>
    tpu.vector_store %arg19[%c5_22, %c0_23], %28 {strides = array<i32>} : memref<8x16xf32, #tpu.memory_space<vmem>>, vector<1x16xf32>,
    %c6 = arith.constant 6 : index
    %30 = memref.load %arg0[%c6] : memref<8xi32, #tpu.memory_space<smem>>
    %31 = arith.index_cast %30 : i32 to index
    %c0_24 = arith.constant 0 : index
    %c0_25 = arith.constant 0 : index
    %32 = vector.load %arg4[%31, %c0_24, %c0_25] : memref<12x1x16xf32, #tpu.memory_space<vmem>>, vector<1x1x16xf32>
    %33 = vector.shape_cast %32 : vector<1x1x16xf32> to vector<1x16xf32>
    %c6_26 = arith.constant 6 : index
    %c0_27 = arith.constant 0 : index
    %34 = vector.load %arg19[%c6_26, %c0_27] : memref<8x16xf32, #tpu.memory_space<vmem>>, vector<1x16xf32>
    tpu.vector_store %arg19[%c6_26, %c0_27], %33 {strides = array<i32>} : memref<8x16xf32, #tpu.memory_space<vmem>>, vector<1x16xf32>,
    %c7 = arith.constant 7 : index
    %35 = memref.load %arg0[%c7] : memref<8xi32, #tpu.memory_space<smem>>
    %36 = arith.index_cast %35 : i32 to index
    %c0_28 = arith.constant 0 : index
    %c0_29 = arith.constant 0 : index
    %37 = vector.load %arg4[%36, %c0_28, %c0_29] : memref<12x1x16xf32, #tpu.memory_space<vmem>>, vector<1x1x16xf32>
    %38 = vector.shape_cast %37 : vector<1x1x16xf32> to vector<1x16xf32>
    %c7_30 = arith.constant 7 : index
    %c0_31 = arith.constant 0 : index
    %39 = vector.load %arg19[%c7_30, %c0_31] : memref<8x16xf32, #tpu.memory_space<vmem>>, vector<1x16xf32>
    tpu.vector_store %arg19[%c7_30, %c0_31], %38 {strides = array<i32>} : memref<8x16xf32, #tpu.memory_space<vmem>>, vector<1x16xf32>,
    %c0_32 = arith.constant 0 : index
    %c0_33 = arith.constant 0 : index
    %40 = vector.load %arg19[%c0_32, %c0_33] : memref<8x16xf32, #tpu.memory_space<vmem>>, vector<8x16xf32>
    %c0_34 = arith.constant 0 : index
    %c0_35 = arith.constant 0 : index
    %41 = vector.load %arg1[%c0_34, %c0_35] : memref<8x32xf32, #tpu.memory_space<vmem>>, vector<8x32xf32>
    %c0_36 = arith.constant 0 : index
    %c0_37 = arith.constant 0 : index
    %42 = vector.load %arg2[%c0_36, %c0_37] : memref<8x32xf32, #tpu.memory_space<vmem>>, vector<8x32xf32>
    %c0_38 = arith.constant 0 : index
    %c0_39 = arith.constant 0 : index
    %c0_40 = arith.constant 0 : index
    %43 = vector.load %arg3[%c0_38, %c0_39, %c0_40] : memref<8x128x32xf32, #tpu.memory_space<vmem>>, vector<8x128x32xf32>
    %c0_41 = arith.constant 0 : index
    %c0_42 = arith.constant 0 : index
    %44 = vector.load %arg5[%c0_41, %c0_42] : memref<32x32xf32, #tpu.memory_space<vmem>>, vector<32x32xf32>
    %cst = arith.constant dense<0.000000e+00> : vector<8x32xf32>
    %45 = tpu.matmul %41, %44, %cst {dimension_numbers = #tpu.dot_dimension_numbers<[1], [0], [0], [1], [0, 0, 1, 1], [], []>} : vector<8x32xf32>, vector<32x32xf32>, vector<8x32xf32> -> vector<8x32xf32>
    %46 = vector.shape_cast %43 : vector<8x128x32xf32> to vector<1024x32xf32>
    %c0_43 = arith.constant 0 : index
    %c0_44 = arith.constant 0 : index
    %47 = vector.load %arg6[%c0_43, %c0_44] : memref<32x32xf32, #tpu.memory_space<vmem>>, vector<32x32xf32>
    %cst_45 = arith.constant dense<0.000000e+00> : vector<1024x32xf32>
    %48 = tpu.matmul %46, %47, %cst_45 {dimension_numbers = #tpu.dot_dimension_numbers<[1], [0], [0], [1], [0, 0, 1, 1], [], []>} : vector<1024x32xf32>, vector<32x32xf32>, vector<1024x32xf32> -> vector<1024x32xf32>
    %49 = vector.shape_cast %48 : vector<1024x32xf32> to vector<8x128x32xf32>
    %50 = vector.shape_cast %45 : vector<8x32xf32> to vector<8x1x32xf32>
    %51 = vector.broadcast %50 : vector<8x1x32xf32> to vector<8x128x32xf32>
    %52 = arith.addf %51, %49 : vector<8x128x32xf32>
    %c0_46 = arith.constant 0 : index
    %c0_47 = arith.constant 0 : index
    %53 = vector.load %arg7[%c0_46, %c0_47] : memref<1x32xf32, #tpu.memory_space<vmem>>, vector<1x32xf32>
    %54 = vector.shape_cast %53 : vector<1x32xf32> to vector<1x1x32xf32>
    %55 = vector.broadcast %54 : vector<1x1x32xf32> to vector<8x128x32xf32>
    %56 = arith.addf %52, %55 : vector<8x128x32xf32>
    %57 = math.tanh %56 : vector<8x128x32xf32>
    %c0_48 = arith.constant 0 : index
    %c0_49 = arith.constant 0 : index
    %58 = vector.load %arg8[%c0_48, %c0_49] : memref<1x32xf32, #tpu.memory_space<vmem>>, vector<1x32xf32>
    %59 = vector.shape_cast %58 : vector<1x32xf32> to vector<1x1x32xf32>
    %60 = vector.broadcast %59 : vector<1x1x32xf32> to vector<8x128x32xf32>
    %61 = arith.mulf %57, %60 : vector<8x128x32xf32>
    %cst_50 = arith.constant dense<0.000000e+00> : vector<8x128xf32>
    %62 = vector.multi_reduction <add>, %61, %cst_50 [2] : vector<8x128x32xf32> to vector<8x128xf32>
    %63 = tpu.iota {dimensions = array<i32: 1>} : vector<8x128xi32>
    %c8_i32 = arith.constant 8 : i32
    %64 = vector.broadcast %c8_i32 : i32 to vector<8x128xi32>
    %65 = arith.cmpi slt, %63, %64 : vector<8x128xi32>
    %cst_51 = arith.constant -1.000000e+30 : f32
    %66 = vector.broadcast %cst_51 : f32 to vector<8x128xf32>
    %67 = arith.select %65, %62, %66 : vector<8x128xi1>, vector<8x128xf32>
    %cst_52 = arith.constant dense<0xFF800000> : vector<8xf32>
    %68 = vector.multi_reduction <maximumf>, %67, %cst_52 [1] : vector<8x128xf32> to vector<8xf32>
    %69 = vector.shape_cast %68 : vector<8xf32> to vector<8x1xf32>
    %70 = vector.broadcast %69 : vector<8x1xf32> to vector<8x128xf32>
    %71 = arith.subf %67, %70 : vector<8x128xf32>
    %72 = math.exp %71 : vector<8x128xf32>
    %cst_53 = arith.constant dense<0.000000e+00> : vector<8xf32>
    %73 = vector.multi_reduction <add>, %72, %cst_53 [1] : vector<8x128xf32> to vector<8xf32>
    %74 = vector.shape_cast %73 : vector<8xf32> to vector<8x1xf32>
    %75 = tpu.reciprocal %74 : vector<8x1xf32> -> vector<8x1xf32>
    %76 = vector.broadcast %75 : vector<8x1xf32> to vector<8x128xf32>
    %77 = arith.mulf %72, %76 : vector<8x128xf32>
    %78 = vector.shape_cast %77 : vector<8x128xf32> to vector<8x1x128xf32>
    "tpu.trace_start"() <{level = 10 : i32, message = "bqs,bse->bqe"}> : () -> ()
    %cst_54 = arith.constant dense<0.000000e+00> : vector<8x1x32xf32>
    %79 = tpu.matmul %78, %43, %cst_54 {dimension_numbers = #tpu.dot_dimension_numbers<[2], [1], [1], [2], [0, 0, 0, 1, 1, 2], [0], [0]>} : vector<8x1x128xf32>, vector<8x128x32xf32>, vector<8x1x32xf32> -> vector<8x1x32xf32>
    "tpu.trace_stop"() : () -> ()
    %80 = vector.shape_cast %79 : vector<8x1x32xf32> to vector<8x32xf32>
    %c0_55 = arith.constant 0 : index
    %c0_56 = arith.constant 0 : index
    %81 = vector.load %arg9[%c0_55, %c0_56] : memref<16x128xf32, #tpu.memory_space<vmem>>, vector<16x128xf32>
    %cst_57 = arith.constant dense<0.000000e+00> : vector<8x128xf32>
    %82 = tpu.matmul %40, %81, %cst_57 {dimension_numbers = #tpu.dot_dimension_numbers<[1], [0], [0], [1], [0, 0, 1, 1], [], []>} : vector<8x16xf32>, vector<16x128xf32>, vector<8x128xf32> -> vector<8x128xf32>
    %c0_58 = arith.constant 0 : index
    %c0_59 = arith.constant 0 : index
    %83 = vector.load %arg10[%c0_58, %c0_59] : memref<32x128xf32, #tpu.memory_space<vmem>>, vector<32x128xf32>
    %cst_60 = arith.constant dense<0.000000e+00> : vector<8x128xf32>
    %84 = tpu.matmul %80, %83, %cst_60 {dimension_numbers = #tpu.dot_dimension_numbers<[1], [0], [0], [1], [0, 0, 1, 1], [], []>} : vector<8x32xf32>, vector<32x128xf32>, vector<8x128xf32> -> vector<8x128xf32>
    %85 = arith.addf %82, %84 : vector<8x128xf32>
    %c0_61 = arith.constant 0 : index
    %c0_62 = arith.constant 0 : index
    %86 = vector.load %arg11[%c0_61, %c0_62] : memref<32x128xf32, #tpu.memory_space<vmem>>, vector<32x128xf32>
    %cst_63 = arith.constant dense<0.000000e+00> : vector<8x128xf32>
    %87 = tpu.matmul %41, %86, %cst_63 {dimension_numbers = #tpu.dot_dimension_numbers<[1], [0], [0], [1], [0, 0, 1, 1], [], []>} : vector<8x32xf32>, vector<32x128xf32>, vector<8x128xf32> -> vector<8x128xf32>
    %88 = arith.addf %85, %87 : vector<8x128xf32>
    %c0_64 = arith.constant 0 : index
    %c0_65 = arith.constant 0 : index
    %89 = vector.load %arg12[%c0_64, %c0_65] : memref<1x128xf32, #tpu.memory_space<vmem>>, vector<1x128xf32>
    %90 = vector.broadcast %89 : vector<1x128xf32> to vector<8x128xf32>
    %91 = arith.addf %88, %90 : vector<8x128xf32>
    %92 = vector.extract_strided_slice %91 {offsets = [0, 0], sizes = [8, 32], strides = [1, 1]} : vector<8x128xf32> to vector<8x32xf32>
    %93 = arith.negf %92 : vector<8x32xf32>
    %94 = math.exp %93 : vector<8x32xf32>
    %cst_66 = arith.constant 1.000000e+00 : f32
    %95 = vector.broadcast %cst_66 : f32 to vector<8x32xf32>
    %96 = arith.addf %95, %94 : vector<8x32xf32>
    %97 = arith.divf %95, %96 : vector<8x32xf32>
    %98 = vector.extract_strided_slice %91 {offsets = [0, 32], sizes = [8, 32], strides = [1, 1]} : vector<8x128xf32> to vector<8x32xf32>
    %99 = arith.negf %98 : vector<8x32xf32>
    %100 = math.exp %99 : vector<8x32xf32>
    %cst_67 = arith.constant 1.000000e+00 : f32
    %101 = vector.broadcast %cst_67 : f32 to vector<8x32xf32>
    %102 = arith.addf %101, %100 : vector<8x32xf32>
    %103 = arith.divf %101, %102 : vector<8x32xf32>
    %104 = vector.extract_strided_slice %91 {offsets = [0, 64], sizes = [8, 32], strides = [1, 1]} : vector<8x128xf32> to vector<8x32xf32>
    %105 = math.tanh %104 : vector<8x32xf32>
    %106 = vector.extract_strided_slice %91 {offsets = [0, 96], sizes = [8, 32], strides = [1, 1]} : vector<8x128xf32> to vector<8x32xf32>
    %107 = arith.negf %106 : vector<8x32xf32>
    %108 = math.exp %107 : vector<8x32xf32>
    %cst_68 = arith.constant 1.000000e+00 : f32
    %109 = vector.broadcast %cst_68 : f32 to vector<8x32xf32>
    %110 = arith.addf %109, %108 : vector<8x32xf32>
    %111 = arith.divf %109, %110 : vector<8x32xf32>
    %112 = arith.mulf %103, %42 : vector<8x32xf32>
    %113 = arith.mulf %97, %105 : vector<8x32xf32>
    %114 = arith.addf %112, %113 : vector<8x32xf32>
    %115 = math.tanh %114 : vector<8x32xf32>
    %116 = arith.mulf %111, %115 : vector<8x32xf32>
    %c0_69 = arith.constant 0 : index
    %c0_70 = arith.constant 0 : index
    %117 = vector.load %arg13[%c0_69, %c0_70] : memref<32x128xf32, #tpu.memory_space<vmem>>, vector<32x128xf32>
    %cst_71 = arith.constant dense<0.000000e+00> : vector<8x128xf32>
    %118 = tpu.matmul %116, %117, %cst_71 {dimension_numbers = #tpu.dot_dimension_numbers<[1], [0], [0], [1], [0, 0, 1, 1], [], []>} : vector<8x32xf32>, vector<32x128xf32>, vector<8x128xf32> -> vector<8x128xf32>
    %c0_72 = arith.constant 0 : index
    %c0_73 = arith.constant 0 : index
    %119 = vector.load %arg14[%c0_72, %c0_73] : memref<1x128xf32, #tpu.memory_space<vmem>>, vector<1x128xf32>
    %120 = vector.broadcast %119 : vector<1x128xf32> to vector<8x128xf32>
    %121 = arith.addf %118, %120 : vector<8x128xf32>
    %c0_74 = arith.constant 0 : index
    %c0_75 = arith.constant 0 : index
    %122 = vector.load %arg15[%c0_74, %c0_75] : memref<8x128xf32, #tpu.memory_space<vmem>>, vector<8x128xf32>
    tpu.vector_store %arg15[%c0_74, %c0_75], %121 {strides = array<i32>} : memref<8x128xf32, #tpu.memory_space<vmem>>, vector<8x128xf32>,
    %c0_76 = arith.constant 0 : index
    %c0_77 = arith.constant 0 : index
    %123 = vector.load %arg16[%c0_76, %c0_77] : memref<8x32xf32, #tpu.memory_space<vmem>>, vector<8x32xf32>
    tpu.vector_store %arg16[%c0_76, %c0_77], %116 {strides = array<i32>} : memref<8x32xf32, #tpu.memory_space<vmem>>, vector<8x32xf32>,
    %c0_78 = arith.constant 0 : index
    %c0_79 = arith.constant 0 : index
    %124 = vector.load %arg17[%c0_78, %c0_79] : memref<8x32xf32, #tpu.memory_space<vmem>>, vector<8x32xf32>
    tpu.vector_store %arg17[%c0_78, %c0_79], %114 {strides = array<i32>} : memref<8x32xf32, #tpu.memory_space<vmem>>, vector<8x32xf32>,
    %c0_80 = arith.constant 0 : index
    %c0_81 = arith.constant 0 : index
    %125 = vector.load %arg18[%c0_80, %c0_81] : memref<8x128xf32, #tpu.memory_space<vmem>>, vector<8x128xf32>
    tpu.vector_store %arg18[%c0_80, %c0_81], %77 {strides = array<i32>} : memref<8x128xf32, #tpu.memory_space<vmem>>, vector<8x128xf32>,
    return
  }
}

</mosaic_0001>

<llo_original>
// kernel: decoder_forward.1
$region0: #{decoder_forward.1}
  #allocation0 [shape = 'u32[]', space=smem, size = 0x4, offset = 0x4, fixed_abs, tag = 'smem constant byte address 0x4 - core index']
  #allocation1 [shape = 'u32[144,128]{1,0:T(1,128)}', space=vmem, size = 0x12000, scoped, tag = 'internal scratch']
  #allocation2 [shape = 'f32[8,16]{1,0:T(8,128)}', space=vmem, size = 0x1000, scoped, tag = 'scratch operand']
  %s0 = inlined_call_operand.vmem [shape: s32[8], index: 0, kind: input, shape index: {}]
  %s1 = inlined_call_operand.vmem [shape: f32[8,32], index: 1, kind: input, shape index: {}]
  %s2 = inlined_call_operand.vmem [shape: f32[8,32], index: 2, kind: input, shape index: {}]
  %s3 = inlined_call_operand.vmem [shape: f32[8,128,32], index: 3, kind: input, shape index: {}]
  %s4 = inlined_call_operand.vmem [shape: f32[12,1,16], index: 4, kind: input, shape index: {}]
  %s5 = inlined_call_operand.vmem [shape: f32[32,32], index: 5, kind: input, shape index: {}]
  %s6 = inlined_call_operand.vmem [shape: f32[32,32], index: 6, kind: input, shape index: {}]
  %s7 = inlined_call_operand.vmem [shape: f32[1,32], index: 7, kind: input, shape index: {}]
  %s8 = inlined_call_operand.vmem [shape: f32[1,32], index: 8, kind: input, shape index: {}]
  %s9 = inlined_call_operand.vmem [shape: f32[16,128], index: 9, kind: input, shape index: {}]
  %s10 = inlined_call_operand.vmem [shape: f32[32,128], index: 10, kind: input, shape index: {}]
  %s11 = inlined_call_operand.vmem [shape: f32[32,128], index: 11, kind: input, shape index: {}]
  %s12 = inlined_call_operand.vmem [shape: f32[1,128], index: 12, kind: input, shape index: {}]
  %s13 = inlined_call_operand.vmem [shape: f32[32,128], index: 13, kind: input, shape index: {}]
  %s14 = inlined_call_operand.vmem [shape: f32[1,128], index: 14, kind: input, shape index: {}]
  %s15 = inlined_call_operand.vmem [shape: f32[8,128], index: 15, kind: output, shape index: {0}]
  %s16 = inlined_call_operand.vmem [shape: f32[8,32], index: 16, kind: output, shape index: {1}]
  %s17 = inlined_call_operand.vmem [shape: f32[8,32], index: 17, kind: output, shape index: {2}]
  %s18 = inlined_call_operand.vmem [shape: f32[8,128], index: 18, kind: output, shape index: {3}]
  %19 = xla_tuple %s15, %s16, %s17, %s18
  %s20 = sld [smem:[#allocation0]]
  $region98: #{decoder_forward.1} parent=0
    _
  %s22 = ssub.s32 1, %s20
  %s23 = scalar_select 0, %s22, %s20
  $region1: #{decoder_forward.1} parent=0
    #allocation3 [shape = 'u8[512]{0}', space=smem, size = 0x200, scoped, tag = 'input window, operand 0, single buffered']
    #allocation4 [shape = 's32[1]{0}', space=sflag, size = 0x4, scoped, tag = 'scoped memory for decoder_forward.1']
    %24 = vsyncpa [#allocation4], 0
    // Predicated region
    $region2: #{decoder_forward.1} parent=1 // pred_check
      _
    $region3: #{decoder_forward.1} parent=1 // pred_check_branch
      %26 = sbr.rel (0) target = $region5
    $region4: #{decoder_forward.1} parent=1 // pred_region
      %s28 = ssub.s32 16, 16
      %29 = vsyncadd [#allocation4], %s28
      %s31 = sshll.u32 %s0, 4
      %s32 = int_to_ptr.vmem [resolvable:$true] %s31
      %34 = dma.vmem_to_smem %s32, 16, [#allocation3], [#allocation4]
    $region5: #{decoder_forward.1} parent=1 // pred_fallthru
      _
    // Predicated region
    $region6: #{decoder_forward.1} parent=1 // pred_check
      _
    $region7: #{decoder_forward.1} parent=1 // pred_check_branch
      %36 = sbr.rel (0) target = $region9
    $region8: #{decoder_forward.1} parent=1 // pred_region
      _
    $region9: #{decoder_forward.1} parent=1 // pred_fallthru
      _
    // Predicated region
    $region10: #{decoder_forward.1} parent=1 // pred_check
      _
    $region11: #{decoder_forward.1} parent=1 // pred_check_branch
      %38 = sbr.rel (0) target = $region13
    $region12: #{decoder_forward.1} parent=1 // pred_region
      _
    $region13: #{decoder_forward.1} parent=1 // pred_fallthru
      _
    // Predicated region
    $region14: #{decoder_forward.1} parent=1 // pred_check
      _
    $region15: #{decoder_forward.1} parent=1 // pred_check_branch
      %40 = sbr.rel (0) target = $region17
    $region16: #{decoder_forward.1} parent=1 // pred_region
      _
    $region17: #{decoder_forward.1} parent=1 // pred_fallthru
      _
    // Predicated region
    $region18: #{decoder_forward.1} parent=1 // pred_check
      _
    $region19: #{decoder_forward.1} parent=1 // pred_check_branch
      %42 = sbr.rel (0) target = $region21
    $region20: #{decoder_forward.1} parent=1 // pred_region
      _
    $region21: #{decoder_forward.1} parent=1 // pred_fallthru
      _
    // Predicated region
    $region22: #{decoder_forward.1} parent=1 // pred_check
      _
    $region23: #{decoder_forward.1} parent=1 // pred_check_branch
      %44 = sbr.rel (0) target = $region25
    $region24: #{decoder_forward.1} parent=1 // pred_region
      _
    $region25: #{decoder_forward.1} parent=1 // pred_fallthru
      _
    // Predicated region
    $region26: #{decoder_forward.1} parent=1 // pred_check
      _
    $region27: #{decoder_forward.1} parent=1 // pred_check_branch
      %46 = sbr.rel (0) target = $region29
    $region28: #{decoder_forward.1} parent=1 // pred_region
      _
    $region29: #{decoder_forward.1} parent=1 // pred_fallthru
      _
    // Predicated region
    $region30: #{decoder_forward.1} parent=1 // pred_check
      _
    $region31: #{decoder_forward.1} parent=1 // pred_check_branch
      %48 = sbr.rel (0) target = $region33
    $region32: #{decoder_forward.1} parent=1 // pred_region
      _
    $region33: #{decoder_forward.1} parent=1 // pred_fallthru
      _
    // Predicated region
    $region34: #{decoder_forward.1} parent=1 // pred_check
      _
    $region35: #{decoder_forward.1} parent=1 // pred_check_branch
      %50 = sbr.rel (0) target = $region37
    $region36: #{decoder_forward.1} parent=1 // pred_region
      _
    $region37: #{decoder_forward.1} parent=1 // pred_fallthru
      _
    // Predicated region
    $region38: #{decoder_forward.1} parent=1 // pred_check
      _
    $region39: #{decoder_forward.1} parent=1 // pred_check_branch
      %52 = sbr.rel (0) target = $region41
    $region40: #{decoder_forward.1} parent=1 // pred_region
      _
    $region41: #{decoder_forward.1} parent=1 // pred_fallthru
      _
    // Predicated region
    $region42: #{decoder_forward.1} parent=1 // pred_check
      _
    $region43: #{decoder_forward.1} parent=1 // pred_check_branch
      %54 = sbr.rel (0) target = $region45
    $region44: #{decoder_forward.1} parent=1 // pred_region
      _
    $region45: #{decoder_forward.1} parent=1 // pred_fallthru
      _
    // Predicated region
    $region46: #{decoder_forward.1} parent=1 // pred_check
      _
    $region47: #{decoder_forward.1} parent=1 // pred_check_branch
      %56 = sbr.rel (0) target = $region49
    $region48: #{decoder_forward.1} parent=1 // pred_region
      _
    $region49: #{decoder_forward.1} parent=1 // pred_fallthru
      _
    // Predicated region
    $region50: #{decoder_forward.1} parent=1 // pred_check
      _
    $region51: #{decoder_forward.1} parent=1 // pred_check_branch
      %58 = sbr.rel (0) target = $region53
    $region52: #{decoder_forward.1} parent=1 // pred_region
      _
    $region53: #{decoder_forward.1} parent=1 // pred_fallthru
      _
    // Predicated region
    $region54: #{decoder_forward.1} parent=1 // pred_check
      _
    $region55: #{decoder_forward.1} parent=1 // pred_check_branch
      %60 = sbr.rel (0) target = $region57
    $region56: #{decoder_forward.1} parent=1 // pred_region
      _
    $region57: #{decoder_forward.1} parent=1 // pred_fallthru
      _
    // Predicated region
    $region58: #{decoder_forward.1} parent=1 // pred_check
      _
    $region59: #{decoder_forward.1} parent=1 // pred_check_branch
      %62 = sbr.rel (0) target = $region61
    $region60: #{decoder_forward.1} parent=1 // pred_region
      _
    $region61: #{decoder_forward.1} parent=1 // pred_fallthru
      _
    // Predicated region
    $region62: #{decoder_forward.1} parent=1 // pred_check
      _
    $region63: #{decoder_forward.1} parent=1 // pred_check_branch
      %64 = sbr.rel (0) target = $region65
    $region64: #{decoder_forward.1} parent=1 // pred_region
      %65 = dma.done [#allocation4], 16
    $region65: #{decoder_forward.1} parent=1 // pred_fallthru
      _
    %66 = sfence
    %s67 = sld [smem:[#allocation3]]
    %s68 = scalar_lea.vmem %s4, %s67
    %v69 = vld [vmem:[%s68] sm:$0x1]
    %vm70 = vcmask 122880
    %71 = vst.msk [vmem:[#allocation2] sm:$0x1] %vm70, %v69
    %s72 = sld [smem:[#allocation3 + $0x1]]
    %s73 = scalar_lea.vmem %s4, %s72
    %v74 = vld [vmem:[%s73] sm:$0x1]
    %75 = vst.msk [vmem:[#allocation2 + $0x1] sm:$0x1] %vm70, %v74
    %s76 = sld [smem:[#allocation3 + $0x2]]
    %s77 = scalar_lea.vmem %s4, %s76
    %v78 = vld [vmem:[%s77] sm:$0x1]
    %79 = vst.msk [vmem:[#allocation2 + $0x2] sm:$0x1] %vm70, %v78
    %s80 = sld [smem:[#allocation3 + $0x3]]
    %s81 = scalar_lea.vmem %s4, %s80
    %v82 = vld [vmem:[%s81] sm:$0x1]
    %83 = vst.msk [vmem:[#allocation2 + $0x3] sm:$0x1] %vm70, %v82
    %s84 = sld [smem:[#allocation3 + $0x4]]
    %s85 = scalar_lea.vmem %s4, %s84
    %v86 = vld [vmem:[%s85] sm:$0x1]
    %87 = vst.msk [vmem:[#allocation2 + $0x4] sm:$0x1] %vm70, %v86
    %s88 = sld [smem:[#allocation3 + $0x5]]
    %s89 = scalar_lea.vmem %s4, %s88
    %v90 = vld [vmem:[%s89] sm:$0x1]
    %91 = vst.msk [vmem:[#allocation2 + $0x5] sm:$0x1] %vm70, %v90
    %s92 = sld [smem:[#allocation3 + $0x6]]
    %s93 = scalar_lea.vmem %s4, %s92
    %v94 = vld [vmem:[%s93] sm:$0x1]
    %95 = vst.msk [vmem:[#allocation2 + $0x6] sm:$0x1] %vm70, %v94
    %s96 = sld [smem:[#allocation3 + $0x7]]
    %s97 = scalar_lea.vmem %s4, %s96
    %v98 = vld [vmem:[%s97] sm:$0x1]
    %99 = vst.msk [vmem:[#allocation2 + $0x7] sm:$0x1] %vm70, %v98
    %v100 = vld [vmem:[#allocation2] sm:$0xff]
    %v101 = vld [vmem:[%s1] sm:$0xff]
    %v102 = vld [vmem:[%s2] sm:$0xff]
    %v103 = vld [vmem:[%s3] sm:$0xff]
    %v104 = vld [vmem:[%s3 + $0x8] sm:$0xff]
    %v105 = vld [vmem:[%s3 + $0x10] sm:$0xff]
    %v106 = vld [vmem:[%s3 + $0x18] sm:$0xff]
    %v107 = vld [vmem:[%s3 + $0x20] sm:$0xff]
    %v108 = vld [vmem:[%s3 + $0x28] sm:$0xff]
    %v109 = vld [vmem:[%s3 + $0x30] sm:$0xff]
    %v110 = vld [vmem:[%s3 + $0x38] sm:$0xff]
    %v111 = vld [vmem:[%s3 + $0x40] sm:$0xff]
    %v112 = vld [vmem:[%s3 + $0x48] sm:$0xff]
    %v113 = vld [vmem:[%s3 + $0x50] sm:$0xff]
    %v114 = vld [vmem:[%s3 + $0x58] sm:$0xff]
    %v115 = vld [vmem:[%s3 + $0x60] sm:$0xff]
    %v116 = vld [vmem:[%s3 + $0x68] sm:$0xff]
    %v117 = vld [vmem:[%s3 + $0x70] sm:$0xff]
    %v118 = vld [vmem:[%s3 + $0x78] sm:$0xff]
    %v119 = vld [vmem:[%s3 + $0x80] sm:$0xff]
    %v120 = vld [vmem:[%s3 + $0x88] sm:$0xff]
    %v121 = vld [vmem:[%s3 + $0x90] sm:$0xff]
    %v122 = vld [vmem:[%s3 + $0x98] sm:$0xff]
    %v123 = vld [vmem:[%s3 + $0xa0] sm:$0xff]
    %v124 = vld [vmem:[%s3 + $0xa8] sm:$0xff]
    %v125 = vld [vmem:[%s3 + $0xb0] sm:$0xff]
    %v126 = vld [vmem:[%s3 + $0xb8] sm:$0xff]
    %v127 = vld [vmem:[%s3 + $0xc0] sm:$0xff]
    %v128 = vld [vmem:[%s3 + $0xc8] sm:$0xff]
    %v129 = vld [vmem:[%s3 + $0xd0] sm:$0xff]
    %v130 = vld [vmem:[%s3 + $0xd8] sm:$0xff]
    %v131 = vld [vmem:[%s3 + $0xe0] sm:$0xff]
    %v132 = vld [vmem:[%s3 + $0xe8] sm:$0xff]
    %v133 = vld [vmem:[%s3 + $0xf0] sm:$0xff]
    %v134 = vld [vmem:[%s3 + $0xf8] sm:$0xff]
    %v135 = vld [vmem:[%s3 + $0x100] sm:$0xff]
    %v136 = vld [vmem:[%s3 + $0x108] sm:$0xff]
    %v137 = vld [vmem:[%s3 + $0x110] sm:$0xff]
    %v138 = vld [vmem:[%s3 + $0x118] sm:$0xff]
    %v139 = vld [vmem:[%s3 + $0x120] sm:$0xff]
    %v140 = vld [vmem:[%s3 + $0x128] sm:$0xff]
    %v141 = vld [vmem:[%s3 + $0x130] sm:$0xff]
    %v142 = vld [vmem:[%s3 + $0x138] sm:$0xff]
    %v143 = vld [vmem:[%s3 + $0x140] sm:$0xff]
    %v144 = vld [vmem:[%s3 + $0x148] sm:$0xff]
    %v145 = vld [vmem:[%s3 + $0x150] sm:$0xff]
    %v146 = vld [vmem:[%s3 + $0x158] sm:$0xff]
    %v147 = vld [vmem:[%s3 + $0x160] sm:$0xff]
    %v148 = vld [vmem:[%s3 + $0x168] sm:$0xff]
    %v149 = vld [vmem:[%s3 + $0x170] sm:$0xff]
    %v150 = vld [vmem:[%s3 + $0x178] sm:$0xff]
    %v151 = vld [vmem:[%s3 + $0x180] sm:$0xff]
    %v152 = vld [vmem:[%s3 + $0x188] sm:$0xff]
    %v153 = vld [vmem:[%s3 + $0x190] sm:$0xff]
    %v154 = vld [vmem:[%s3 + $0x198] sm:$0xff]
    %v155 = vld [vmem:[%s3 + $0x1a0] sm:$0xff]
    %v156 = vld [vmem:[%s3 + $0x1a8] sm:$0xff]
    %v157 = vld [vmem:[%s3 + $0x1b0] sm:$0xff]
    %v158 = vld [vmem:[%s3 + $0x1b8] sm:$0xff]
    %v159 = vld [vmem:[%s3 + $0x1c0] sm:$0xff]
    %v160 = vld [vmem:[%s3 + $0x1c8] sm:$0xff]
    %v161 = vld [vmem:[%s3 + $0x1d0] sm:$0xff]
    %v162 = vld [vmem:[%s3 + $0x1d8] sm:$0xff]
    %v163 = vld [vmem:[%s3 + $0x1e0] sm:$0xff]
    %v164 = vld [vmem:[%s3 + $0x1e8] sm:$0xff]
    %v165 = vld [vmem:[%s3 + $0x1f0] sm:$0xff]
    %v166 = vld [vmem:[%s3 + $0x1f8] sm:$0xff]
    %v167 = vld [vmem:[%s3 + $0x200] sm:$0xff]
    %v168 = vld [vmem:[%s3 + $0x208] sm:$0xff]
    %v169 = vld [vmem:[%s3 + $0x210] sm:$0xff]
    %v170 = vld [vmem:[%s3 + $0x218] sm:$0xff]
    %v171 = vld [vmem:[%s3 + $0x220] sm:$0xff]
    %v172 = vld [vmem:[%s3 + $0x228] sm:$0xff]
    %v173 = vld [vmem:[%s3 + $0x230] sm:$0xff]
    %v174 = vld [vmem:[%s3 + $0x238] sm:$0xff]
    %v175 = vld [vmem:[%s3 + $0x240] sm:$0xff]
    %v176 = vld [vmem:[%s3 + $0x248] sm:$0xff]
    %v177 = vld [vmem:[%s3 + $0x250] sm:$0xff]
    %v178 = vld [vmem:[%s3 + $0x258] sm:$0xff]
    %v179 = vld [vmem:[%s3 + $0x260] sm:$0xff]
    %v180 = vld [vmem:[%s3 + $0x268] sm:$0xff]
    %v181 = vld [vmem:[%s3 + $0x270] sm:$0xff]
    %v182 = vld [vmem:[%s3 + $0x278] sm:$0xff]
    %v183 = vld [vmem:[%s3 + $0x280] sm:$0xff]
    %v184 = vld [vmem:[%s3 + $0x288] sm:$0xff]
    %v185 = vld [vmem:[%s3 + $0x290] sm:$0xff]
    %v186 = vld [vmem:[%s3 + $0x298] sm:$0xff]
    %v187 = vld [vmem:[%s3 + $0x2a0] sm:$0xff]
    %v188 = vld [vmem:[%s3 + $0x2a8] sm:$0xff]
    %v189 = vld [vmem:[%s3 + $0x2b0] sm:$0xff]
    %v190 = vld [vmem:[%s3 + $0x2b8] sm:$0xff]
    %v191 = vld [vmem:[%s3 + $0x2c0] sm:$0xff]
    %v192 = vld [vmem:[%s3 + $0x2c8] sm:$0xff]
    %v193 = vld [vmem:[%s3 + $0x2d0] sm:$0xff]
    %v194 = vld [vmem:[%s3 + $0x2d8] sm:$0xff]
    %v195 = vld [vmem:[%s3 + $0x2e0] sm:$0xff]
    %v196 = vld [vmem:[%s3 + $0x2e8] sm:$0xff]
    %v197 = vld [vmem:[%s3 + $0x2f0] sm:$0xff]
    %v198 = vld [vmem:[%s3 + $0x2f8] sm:$0xff]
    %v199 = vld [vmem:[%s3 + $0x300] sm:$0xff]
    %v200 = vld [vmem:[%s3 + $0x308] sm:$0xff]
    %v201 = vld [vmem:[%s3 + $0x310] sm:$0xff]
    %v202 = vld [vmem:[%s3 + $0x318] sm:$0xff]
    %v203 = vld [vmem:[%s3 + $0x320] sm:$0xff]
    %v204 = vld [vmem:[%s3 + $0x328] sm:$0xff]
    %v205 = vld [vmem:[%s3 + $0x330] sm:$0xff]
    %v206 = vld [vmem:[%s3 + $0x338] sm:$0xff]
    %v207 = vld [vmem:[%s3 + $0x340] sm:$0xff]
    %v208 = vld [vmem:[%s3 + $0x348] sm:$0xff]
    %v209 = vld [vmem:[%s3 + $0x350] sm:$0xff]
    %v210 = vld [vmem:[%s3 + $0x358] sm:$0xff]
    %v211 = vld [vmem:[%s3 + $0x360] sm:$0xff]
    %v212 = vld [vmem:[%s3 + $0x368] sm:$0xff]
    %v213 = vld [vmem:[%s3 + $0x370] sm:$0xff]
    %v214 = vld [vmem:[%s3 + $0x378] sm:$0xff]
    %v215 = vld [vmem:[%s3 + $0x380] sm:$0xff]
    %v216 = vld [vmem:[%s3 + $0x388] sm:$0xff]
    %v217 = vld [vmem:[%s3 + $0x390] sm:$0xff]
    %v218 = vld [vmem:[%s3 + $0x398] sm:$0xff]
    %v219 = vld [vmem:[%s3 + $0x3a0] sm:$0xff]
    %v220 = vld [vmem:[%s3 + $0x3a8] sm:$0xff]
    %v221 = vld [vmem:[%s3 + $0x3b0] sm:$0xff]
    %v222 = vld [vmem:[%s3 + $0x3b8] sm:$0xff]
    %v223 = vld [vmem:[%s3 + $0x3c0] sm:$0xff]
    %v224 = vld [vmem:[%s3 + $0x3c8] sm:$0xff]
    %v225 = vld [vmem:[%s3 + $0x3d0] sm:$0xff]
    %v226 = vld [vmem:[%s3 + $0x3d8] sm:$0xff]
    %v227 = vld [vmem:[%s3 + $0x3e0] sm:$0xff]
    %v228 = vld [vmem:[%s3 + $0x3e8] sm:$0xff]
    %v229 = vld [vmem:[%s3 + $0x3f0] sm:$0xff]
    %v230 = vld [vmem:[%s3 + $0x3f8] sm:$0xff]
    %v231 = vld [vmem:[%s5] sm:$0xff]
    %v232 = vld [vmem:[%s5 + $0x8] sm:$0xff]
    %v233 = vld [vmem:[%s5 + $0x10] sm:$0xff]
    %v234 = vld [vmem:[%s5 + $0x18] sm:$0xff]
    %vm235 = vcmask 261120
    %v237 = vsel %vm235, %v101, 0
    %239 = vmatprep.subr.mxu0 0.0
    %240 = vmatpush1.msra.mxu0 %v231
    %241 = vmatprep.subr.mxu0 0.0
    %242 = vmatpush1.msra.mxu0 %v232
    %243 = vmatprep.subr.mxu0 0.0
    %244 = vmatpush1.msra.mxu0 %v233
    %245 = vmatprep.subr.mxu0 0.0
    %246 = vmatpush1.msra.mxu0 %v234
    %247 = vmatprep.subr.mxu0 0.0
    %248 = vmatpush1.msra.mxu0 0.0
    %249 = vmatprep.subr.mxu0 0.0
    %250 = vmatpush1.msra.mxu0 0.0
    %251 = vmatprep.subr.mxu0 0.0
    %252 = vmatpush1.msra.mxu0 0.0
    %253 = vmatprep.subr.mxu0 0.0
    %254 = vmatpush1.msra.mxu0 0.0
    %255 = vmatprep.subr.mxu0 0.0
    %256 = vmatpush1.msra.mxu0 0.0
    %257 = vmatprep.subr.mxu0 0.0
    %258 = vmatpush1.msra.mxu0 0.0
    %259 = vmatprep.subr.mxu0 0.0
    %260 = vmatpush1.msra.mxu0 0.0
    %261 = vmatprep.subr.mxu0 0.0
    %262 = vmatpush1.msra.mxu0 0.0
    %263 = vmatprep.subr.mxu0 0.0
    %264 = vmatpush1.msra.mxu0 0.0
    %265 = vmatprep.subr.mxu0 0.0
    %266 = vmatpush1.msra.mxu0 0.0
    %267 = vmatprep.subr.mxu0 0.0
    %268 = vmatpush1.msra.mxu0 0.0
    %269 = vmatprep.subr.mxu0 0.0
    %270 = vmatpush1.msra.mxu0 0.0
    %271 = vmatprep.subr.mxu0 0.0
    %272 = vmatpush1.msra.mxu0 0.0
    %273 = vmatprep.subr.mxu0 0.0
    %274 = vmatpush1.msra.mxu0 0.0
    %275 = vmatprep.subr.mxu0 0.0
    %276 = vmatpush1.msra.mxu0 0.0
    %277 = vmatprep.subr.mxu0 0.0
    %278 = vmatpush1.msra.mxu0 0.0
    %279 = vmatprep.subr.mxu0 0.0
    %280 = vmatpush1.msra.mxu0 0.0
    %281 = vmatprep.subr.mxu0 0.0
    %282 = vmatpush1.msra.mxu0 0.0
    %283 = vmatprep.subr.mxu0 0.0
    %284 = vmatpush1.msra.mxu0 0.0
    %285 = vmatprep.subr.mxu0 0.0
    %286 = vmatpush1.msra.mxu0 0.0
    %287 = vmatprep.subr.mxu0 0.0
    %288 = vmatpush1.msra.mxu0 0.0
    %289 = vmatprep.subr.mxu0 0.0
    %290 = vmatpush1.msra.mxu0 0.0
    %291 = vmatprep.subr.mxu0 0.0
    %292 = vmatpush1.msra.mxu0 0.0
    %293 = vmatprep.subr.mxu0 0.0
    %294 = vmatpush1.msra.mxu0 0.0
    %295 = vmatprep.subr.mxu0 0.0
    %296 = vmatpush1.msra.mxu0 0.0
    %297 = vmatprep.subr.mxu0 0.0
    %298 = vmatpush1.msra.mxu0 0.0
    %299 = vmatprep.subr.mxu0 0.0
    %300 = vmatpush1.msra.mxu0 0.0
    %301 = vmatprep.subr.mxu0 0.0
    %302 = vmatpush1.msra.mxu0 0.0
    %303 = vmatprep.mubr.f32.mxu0 0.0
    %304 = vmatmul.mubr.f32.gmra.mrb[0].mxu0 %v237
    %v305 = vpop.f32.mrb[0].mxu0
    %v306 = vadd.f32 0.0, %v305
    %v307 = vpop.f32.mrb[0].mxu0
    %308 = vdwg.mxu0
    %v309 = vld [vmem:[%s6] sm:$0xff]
    %v310 = vld [vmem:[%s6 + $0x8] sm:$0xff]
    %v311 = vld [vmem:[%s6 + $0x10] sm:$0xff]
    %v312 = vld [vmem:[%s6 + $0x18] sm:$0xff]
    %v314 = vsel %vm235, %v103, 0
    %v317 = vsel %vm235, %v104, 0
    %v320 = vsel %vm235, %v105, 0
    %v323 = vsel %vm235, %v106, 0
    %v326 = vsel %vm235, %v107, 0
    %v329 = vsel %vm235, %v108, 0
    %v332 = vsel %vm235, %v109, 0
    %v335 = vsel %vm235, %v110, 0
    %v338 = vsel %vm235, %v111, 0
    %v341 = vsel %vm235, %v112, 0
    %v344 = vsel %vm235, %v113, 0
    %v347 = vsel %vm235, %v114, 0
    %v350 = vsel %vm235, %v115, 0
    %v353 = vsel %vm235, %v116, 0
    %v356 = vsel %vm235, %v117, 0
    %v359 = vsel %vm235, %v118, 0
    %v362 = vsel %vm235, %v119, 0
    %v365 = vsel %vm235, %v120, 0
    %v368 = vsel %vm235, %v121, 0
    %v371 = vsel %vm235, %v122, 0
    %v374 = vsel %vm235, %v123, 0
    %v377 = vsel %vm235, %v124, 0
    %v380 = vsel %vm235, %v125, 0
    %v383 = vsel %vm235, %v126, 0
    %v386 = vsel %vm235, %v127, 0
    %v389 = vsel %vm235, %v128, 0
    %v392 = vsel %vm235, %v129, 0
    %v395 = vsel %vm235, %v130, 0
    %v398 = vsel %vm235, %v131, 0
    %v401 = vsel %vm235, %v132, 0
    %v404 = vsel %vm235, %v133, 0
    %v407 = vsel %vm235, %v134, 0
    %v410 = vsel %vm235, %v135, 0
    %v413 = vsel %vm235, %v136, 0
    %v416 = vsel %vm235, %v137, 0
    %v419 = vsel %vm235, %v138, 0
    %v422 = vsel %vm235, %v139, 0
    %v425 = vsel %vm235, %v140, 0
    %v428 = vsel %vm235, %v141, 0
    %v431 = vsel %vm235, %v142, 0
    %v434 = vsel %vm235, %v143, 0
    %v437 = vsel %vm235, %v144, 0
    %v440 = vsel %vm235, %v145, 0
    %v443 = vsel %vm235, %v146, 0
    %v446 = vsel %vm235, %v147, 0
    %v449 = vsel %vm235, %v148, 0
    %v452 = vsel %vm235, %v149, 0
    %v455 = vsel %vm235, %v150, 0
    %v458 = vsel %vm235, %v151, 0
    %v461 = vsel %vm235, %v152, 0
    %v464 = vsel %vm235, %v153, 0
    %v467 = vsel %vm235, %v154, 0
    %v470 = vsel %vm235, %v155, 0
    %v473 = vsel %vm235, %v156, 0
    %v476 = vsel %vm235, %v157, 0
    %v479 = vsel %vm235, %v158, 0
    %v482 = vsel %vm235, %v159, 0
    %v485 = vsel %vm235, %v160, 0
    %v488 = vsel %vm235, %v161, 0
    %v491 = vsel %vm235, %v162, 0
    %v494 = vsel %vm235, %v163, 0
    %v497 = vsel %vm235, %v164, 0
    %v500 = vsel %vm235, %v165, 0
    %v503 = vsel %vm235, %v166, 0
    %v506 = vsel %vm235, %v167, 0
    %v509 = vsel %vm235, %v168, 0
    %v512 = vsel %vm235, %v169, 0
    %v515 = vsel %vm235, %v170, 0
    %v518 = vsel %vm235, %v171, 0
    %v521 = vsel %vm235, %v172, 0
    %v524 = vsel %vm235, %v173, 0
    %v527 = vsel %vm235, %v174, 0
    %v530 = vsel %vm235, %v175, 0
    %v533 = vsel %vm235, %v176, 0
    %v536 = vsel %vm235, %v177, 0
    %v539 = vsel %vm235, %v178, 0
    %v542 = vsel %vm235, %v179, 0
    %v545 = vsel %vm235, %v180, 0
    %v548 = vsel %vm235, %v181, 0
    %v551 = vsel %vm235, %v182, 0
    %v554 = vsel %vm235, %v183, 0
    %v557 = vsel %vm235, %v184, 0
    %v560 = vsel %vm235, %v185, 0
    %v563 = vsel %vm235, %v186, 0
    %v566 = vsel %vm235, %v187, 0
    %v569 = vsel %vm235, %v188, 0
    %v572 = vsel %vm235, %v189, 0
    %v575 = vsel %vm235, %v190, 0
    %v578 = vsel %vm235, %v191, 0
    %v581 = vsel %vm235, %v192, 0
    %v584 = vsel %vm235, %v193, 0
    %v587 = vsel %vm235, %v194, 0
    %v590 = vsel %vm235, %v195, 0
    %v593 = vsel %vm235, %v196, 0
    %v596 = vsel %vm235, %v197, 0
    %v599 = vsel %vm235, %v198, 0
    %v602 = vsel %vm235, %v199, 0
    %v605 = vsel %vm235, %v200, 0
    %v608 = vsel %vm235, %v201, 0
    %v611 = vsel %vm235, %v202, 0
    %v614 = vsel %vm235, %v203, 0
    %v617 = vsel %vm235, %v204, 0
    %v620 = vsel %vm235, %v205, 0
    %v623 = vsel %vm235, %v206, 0
    %v626 = vsel %vm235, %v207, 0
    %v629 = vsel %vm235, %v208, 0
    %v632 = vsel %vm235, %v209, 0
    %v635 = vsel %vm235, %v210, 0
    %v638 = vsel %vm235, %v211, 0
    %v641 = vsel %vm235, %v212, 0
    %v644 = vsel %vm235, %v213, 0
    %v647 = vsel %vm235, %v214, 0
    %v650 = vsel %vm235, %v215, 0
    %v653 = vsel %vm235, %v216, 0
    %v656 = vsel %vm235, %v217, 0
    %v659 = vsel %vm235, %v218, 0
    %v662 = vsel %vm235, %v219, 0
    %v665 = vsel %vm235, %v220, 0
    %v668 = vsel %vm235, %v221, 0
    %v671 = vsel %vm235, %v222, 0
    %v674 = vsel %vm235, %v223, 0
    %v677 = vsel %vm235, %v224, 0
    %v680 = vsel %vm235, %v225, 0
    %v683 = vsel %vm235, %v226, 0
    %v686 = vsel %vm235, %v227, 0
    %v689 = vsel %vm235, %v228, 0
    %v692 = vsel %vm235, %v229, 0
    %v695 = vsel %vm235, %v230, 0
    %697 = vmatprep.subr.mxu0 0.0
    %698 = vmatpush1.msra.mxu0 %v309
    %699 = vmatprep.subr.mxu0 0.0
    %700 = vmatpush1.msra.mxu0 %v310
    %701 = vmatprep.subr.mxu0 0.0
    %702 = vmatpush1.msra.mxu0 %v311
    %703 = vmatprep.subr.mxu0 0.0
    %704 = vmatpush1.msra.mxu0 %v312
    %705 = vmatprep.subr.mxu0 0.0
    %706 = vmatpush1.msra.mxu0 0.0
    %707 = vmatprep.subr.mxu0 0.0
    %708 = vmatpush1.msra.mxu0 0.0
    %709 = vmatprep.subr.mxu0 0.0
    %710 = vmatpush1.msra.mxu0 0.0
    %711 = vmatprep.subr.mxu0 0.0
    %712 = vmatpush1.msra.mxu0 0.0
    %713 = vmatprep.subr.mxu0 0.0
    %714 = vmatpush1.msra.mxu0 0.0
    %715 = vmatprep.subr.mxu0 0.0
    %716 = vmatpush1.msra.mxu0 0.0
    %717 = vmatprep.subr.mxu0 0.0
    %718 = vmatpush1.msra.mxu0 0.0
    %719 = vmatprep.subr.mxu0 0.0
    %720 = vmatpush1.msra.mxu0 0.0
    %721 = vmatprep.subr.mxu0 0.0
    %722 = vmatpush1.msra.mxu0 0.0
    %723 = vmatprep.subr.mxu0 0.0
    %724 = vmatpush1.msra.mxu0 0.0
    %725 = vmatprep.subr.mxu0 0.0
    %726 = vmatpush1.msra.mxu0 0.0
    %727 = vmatprep.subr.mxu0 0.0
    %728 = vmatpush1.msra.mxu0 0.0
    %729 = vmatprep.subr.mxu0 0.0
    %730 = vmatpush1.msra.mxu0 0.0
    %731 = vmatprep.subr.mxu0 0.0
    %732 = vmatpush1.msra.mxu0 0.0
    %733 = vmatprep.subr.mxu0 0.0
    %734 = vmatpush1.msra.mxu0 0.0
    %735 = vmatprep.subr.mxu0 0.0
    %736 = vmatpush1.msra.mxu0 0.0
    %737 = vmatprep.subr.mxu0 0.0
    %738 = vmatpush1.msra.mxu0 0.0
    %739 = vmatprep.subr.mxu0 0.0
    %740 = vmatpush1.msra.mxu0 0.0
    %741 = vmatprep.subr.mxu0 0.0
    %742 = vmatpush1.msra.mxu0 0.0
    %743 = vmatprep.subr.mxu0 0.0
    %744 = vmatpush1.msra.mxu0 0.0
    %745 = vmatprep.subr.mxu0 0.0
    %746 = vmatpush1.msra.mxu0 0.0
    %747 = vmatprep.subr.mxu0 0.0
    %748 = vmatpush1.msra.mxu0 0.0
    %749 = vmatprep.subr.mxu0 0.0
    %750 = vmatpush1.msra.mxu0 0.0
    %751 = vmatprep.subr.mxu0 0.0
    %752 = vmatpush1.msra.mxu0 0.0
    %753 = vmatprep.subr.mxu0 0.0
    %754 = vmatpush1.msra.mxu0 0.0
    %755 = vmatprep.subr.mxu0 0.0
    %756 = vmatpush1.msra.mxu0 0.0
    %757 = vmatprep.subr.mxu0 0.0
    %758 = vmatpush1.msra.mxu0 0.0
    %759 = vmatprep.subr.mxu0 0.0
    %760 = vmatpush1.msra.mxu0 0.0
    %761 = vmatprep.mubr.f32.mxu0 0.0
    %762 = vmatmul.mubr.f32.gmra.mrb[0].mxu0 %v314
    %v763 = vpop.f32.mrb[0].mxu0
    %v764 = vadd.f32 0.0, %v763
    %v765 = vpop.f32.mrb[0].mxu0
    %766 = vmatprep.mubr.f32.mxu0 0.0
    %767 = vmatmul.mubr.f32.gmra.mrb[0].mxu0 %v317
    %v768 = vpop.f32.mrb[0].mxu0
    %v769 = vadd.f32 0.0, %v768
    %v770 = vpop.f32.mrb[0].mxu0
    %771 = vmatprep.mubr.f32.mxu0 0.0
    %772 = vmatmul.mubr.f32.gmra.mrb[0].mxu0 %v320
    %v773 = vpop.f32.mrb[0].mxu0
    %v774 = vadd.f32 0.0, %v773
    %v775 = vpop.f32.mrb[0].mxu0
    %776 = vmatprep.mubr.f32.mxu0 0.0
    %777 = vmatmul.mubr.f32.gmra.mrb[0].mxu0 %v323
    %v778 = vpop.f32.mrb[0].mxu0
    %v779 = vadd.f32 0.0, %v778
    %v780 = vpop.f32.mrb[0].mxu0
    %781 = vmatprep.mubr.f32.mxu0 0.0
    %782 = vmatmul.mubr.f32.gmra.mrb[0].mxu0 %v326
    %v783 = vpop.f32.mrb[0].mxu0
    %v784 = vadd.f32 0.0, %v783
    %v785 = vpop.f32.mrb[0].mxu0
    %786 = vmatprep.mubr.f32.mxu0 0.0
    %787 = vmatmul.mubr.f32.gmra.mrb[0].mxu0 %v329
    %v788 = vpop.f32.mrb[0].mxu0
    %v789 = vadd.f32 0.0, %v788
    %v790 = vpop.f32.mrb[0].mxu0
    %791 = vmatprep.mubr.f32.mxu0 0.0
    %792 = vmatmul.mubr.f32.gmra.mrb[0].mxu0 %v332
    %v793 = vpop.f32.mrb[0].mxu0
    %v794 = vadd.f32 0.0, %v793
    %v795 = vpop.f32.mrb[0].mxu0
    %796 = vmatprep.mubr.f32.mxu0 0.0
    %797 = vmatmul.mubr.f32.gmra.mrb[0].mxu0 %v335
    %v798 = vpop.f32.mrb[0].mxu0
    %v799 = vadd.f32 0.0, %v798
    %v800 = vpop.f32.mrb[0].mxu0
    %801 = vmatprep.mubr.f32.mxu0 0.0
    %802 = vmatmul.mubr.f32.gmra.mrb[0].mxu0 %v338
    %v803 = vpop.f32.mrb[0].mxu0
    %v804 = vadd.f32 0.0, %v803
    %v805 = vpop.f32.mrb[0].mxu0
    %806 = vmatprep.mubr.f32.mxu0 0.0
    %807 = vmatmul.mubr.f32.gmra.mrb[0].mxu0 %v341
    %v808 = vpop.f32.mrb[0].mxu0
    %v809 = vadd.f32 0.0, %v808
    %v810 = vpop.f32.mrb[0].mxu0
    %811 = vmatprep.mubr.f32.mxu0 0.0
    %812 = vmatmul.mubr.f32.gmra.mrb[0].mxu0 %v344
    %v813 = vpop.f32.mrb[0].mxu0
    %v814 = vadd.f32 0.0, %v813
    %v815 = vpop.f32.mrb[0].mxu0
    %816 = vmatprep.mubr.f32.mxu0 0.0
    %817 = vmatmul.mubr.f32.gmra.mrb[0].mxu0 %v347
    %v818 = vpop.f32.mrb[0].mxu0
    %v819 = vadd.f32 0.0, %v818
    %v820 = vpop.f32.mrb[0].mxu0
    %821 = vmatprep.mubr.f32.mxu0 0.0
    %822 = vmatmul.mubr.f32.gmra.mrb[0].mxu0 %v350
    %v823 = vpop.f32.mrb[0].mxu0
    %v824 = vadd.f32 0.0, %v823
    %v825 = vpop.f32.mrb[0].mxu0
    %826 = vmatprep.mubr.f32.mxu0 0.0
    %827 = vmatmul.mubr.f32.gmra.mrb[0].mxu0 %v353
    %v828 = vpop.f32.mrb[0].mxu0
    %v829 = vadd.f32 0.0, %v828
    %v830 = vpop.f32.mrb[0].mxu0
    %831 = vmatprep.mubr.f32.mxu0 0.0
    %832 = vmatmul.mubr.f32.gmra.mrb[0].mxu0 %v356
    %v833 = vpop.f32.mrb[0].mxu0
    %v834 = vadd.f32 0.0, %v833
    %v835 = vpop.f32.mrb[0].mxu0
    %836 = vmatprep.mubr.f32.mxu0 0.0
    %837 = vmatmul.mubr.f32.gmra.mrb[0].mxu0 %v359
    %v838 = vpop.f32.mrb[0].mxu0
    %v839 = vadd.f32 0.0, %v838
    %v840 = vpop.f32.mrb[0].mxu0
    %841 = vmatprep.mubr.f32.mxu0 0.0
    %842 = vmatmul.mubr.f32.gmra.mrb[0].mxu0 %v362
    %v843 = vpop.f32.mrb[0].mxu0
    %v844 = vadd.f32 0.0, %v843
    %v845 = vpop.f32.mrb[0].mxu0
    %846 = vmatprep.mubr.f32.mxu0 0.0
    %847 = vmatmul.mubr.f32.gmra.mrb[0].mxu0 %v365
    %v848 = vpop.f32.mrb[0].mxu0
    %v849 = vadd.f32 0.0, %v848
    %v850 = vpop.f32.mrb[0].mxu0
    %851 = vmatprep.mubr.f32.mxu0 0.0
    %852 = vmatmul.mubr.f32.gmra.mrb[0].mxu0 %v368
    %v853 = vpop.f32.mrb[0].mxu0
    %v854 = vadd.f32 0.0, %v853
    %v855 = vpop.f32.mrb[0].mxu0
    %856 = vmatprep.mubr.f32.mxu0 0.0
    %857 = vmatmul.mubr.f32.gmra.mrb[0].mxu0 %v371
    %v858 = vpop.f32.mrb[0].mxu0
    %v859 = vadd.f32 0.0, %v858
    %v860 = vpop.f32.mrb[0].mxu0
    %861 = vmatprep.mubr.f32.mxu0 0.0
    %862 = vmatmul.mubr.f32.gmra.mrb[0].mxu0 %v374
    %v863 = vpop.f32.mrb[0].mxu0
    %v864 = vadd.f32 0.0, %v863
    %v865 = vpop.f32.mrb[0].mxu0
    %866 = vmatprep.mubr.f32.mxu0 0.0
    %867 = vmatmul.mubr.f32.gmra.mrb[0].mxu0 %v377
    %v868 = vpop.f32.mrb[0].mxu0
    %v869 = vadd.f32 0.0, %v868
    %v870 = vpop.f32.mrb[0].mxu0
    %871 = vmatprep.mubr.f32.mxu0 0.0
    %872 = vmatmul.mubr.f32.gmra.mrb[0].mxu0 %v380
    %v873 = vpop.f32.mrb[0].mxu0
    %v874 = vadd.f32 0.0, %v873
    %v875 = vpop.f32.mrb[0].mxu0
    %876 = vmatprep.mubr.f32.mxu0 0.0
    %877 = vmatmul.mubr.f32.gmra.mrb[0].mxu0 %v383
    %v878 = vpop.f32.mrb[0].mxu0
    %v879 = vadd.f32 0.0, %v878
    %v880 = vpop.f32.mrb[0].mxu0
    %881 = vmatprep.mubr.f32.mxu0 0.0
    %882 = vmatmul.mubr.f32.gmra.mrb[0].mxu0 %v386
    %v883 = vpop.f32.mrb[0].mxu0
    %v884 = vadd.f32 0.0, %v883
    %v885 = vpop.f32.mrb[0].mxu0
    %886 = vmatprep.mubr.f32.mxu0 0.0
    %887 = vmatmul.mubr.f32.gmra.mrb[0].mxu0 %v389
    %v888 = vpop.f32.mrb[0].mxu0
    %v889 = vadd.f32 0.0, %v888
    %v890 = vpop.f32.mrb[0].mxu0
    %891 = vmatprep.mubr.f32.mxu0 0.0
    %892 = vmatmul.mubr.f32.gmra.mrb[0].mxu0 %v392
    %v893 = vpop.f32.mrb[0].mxu0
    %v894 = vadd.f32 0.0, %v893
    %v895 = vpop.f32.mrb[0].mxu0
    %896 = vmatprep.mubr.f32.mxu0 0.0
    %897 = vmatmul.mubr.f32.gmra.mrb[0].mxu0 %v395
    %v898 = vpop.f32.mrb[0].mxu0
    %v899 = vadd.f32 0.0, %v898
    %v900 = vpop.f32.mrb[0].mxu0
    %901 = vmatprep.mubr.f32.mxu0 0.0
    %902 = vmatmul.mubr.f32.gmra.mrb[0].mxu0 %v398
    %v903 = vpop.f32.mrb[0].mxu0
    %v904 = vadd.f32 0.0, %v903
    %v905 = vpop.f32.mrb[0].mxu0
    %906 = vmatprep.mubr.f32.mxu0 0.0
    %907 = vmatmul.mubr.f32.gmra.mrb[0].mxu0 %v401
    %v908 = vpop.f32.mrb[0].mxu0
    %v909 = vadd.f32 0.0, %v908
    %v910 = vpop.f32.mrb[0].mxu0
    %911 = vmatprep.mubr.f32.mxu0 0.0
    %912 = vmatmul.mubr.f32.gmra.mrb[0].mxu0 %v404
    %v913 = vpop.f32.mrb[0].mxu0
    %v914 = vadd.f32 0.0, %v913
    %v915 = vpop.f32.mrb[0].mxu0
    %916 = vmatprep.mubr.f32.mxu0 0.0
    %917 = vmatmul.mubr.f32.gmra.mrb[0].mxu0 %v407
    %v918 = vpop.f32.mrb[0].mxu0
    %v919 = vadd.f32 0.0, %v918
    %v920 = vpop.f32.mrb[0].mxu0
    %921 = vmatprep.mubr.f32.mxu0 0.0
    %922 = vmatmul.mubr.f32.gmra.mrb[0].mxu0 %v410
    %v923 = vpop.f32.mrb[0].mxu0
    %v924 = vadd.f32 0.0, %v923
    %v925 = vpop.f32.mrb[0].mxu0
    %926 = vmatprep.mubr.f32.mxu0 0.0
    %927 = vmatmul.mubr.f32.gmra.mrb[0].mxu0 %v413
    %v928 = vpop.f32.mrb[0].mxu0
    %v929 = vadd.f32 0.0, %v928
    %v930 = vpop.f32.mrb[0].mxu0
    %931 = vmatprep.mubr.f32.mxu0 0.0
    %932 = vmatmul.mubr.f32.gmra.mrb[0].mxu0 %v416
    %v933 = vpop.f32.mrb[0].mxu0
    %v934 = vadd.f32 0.0, %v933
    %v935 = vpop.f32.mrb[0].mxu0
    %936 = vmatprep.mubr.f32.mxu0 0.0
    %937 = vmatmul.mubr.f32.gmra.mrb[0].mxu0 %v419
    %v938 = vpop.f32.mrb[0].mxu0
    %v939 = vadd.f32 0.0, %v938
    %v940 = vpop.f32.mrb[0].mxu0
    %941 = vmatprep.mubr.f32.mxu0 0.0
    %942 = vmatmul.mubr.f32.gmra.mrb[0].mxu0 %v422
    %v943 = vpop.f32.mrb[0].mxu0
    %v944 = vadd.f32 0.0, %v943
    %v945 = vpop.f32.mrb[0].mxu0
    %946 = vmatprep.mubr.f32.mxu0 0.0
    %947 = vmatmul.mubr.f32.gmra.mrb[0].mxu0 %v425
    %v948 = vpop.f32.mrb[0].mxu0
    %v949 = vadd.f32 0.0, %v948
    %v950 = vpop.f32.mrb[0].mxu0
    %951 = vmatprep.mubr.f32.mxu0 0.0
    %952 = vmatmul.mubr.f32.gmra.mrb[0].mxu0 %v428
    %v953 = vpop.f32.mrb[0].mxu0
    %v954 = vadd.f32 0.0, %v953
    %v955 = vpop.f32.mrb[0].mxu0
    %956 = vmatprep.mubr.f32.mxu0 0.0
    %957 = vmatmul.mubr.f32.gmra.mrb[0].mxu0 %v431
    %v958 = vpop.f32.mrb[0].mxu0
    %v959 = vadd.f32 0.0, %v958
    %v960 = vpop.f32.mrb[0].mxu0
    %961 = vmatprep.mubr.f32.mxu0 0.0
    %962 = vmatmul.mubr.f32.gmra.mrb[0].mxu0 %v434
    %v963 = vpop.f32.mrb[0].mxu0
    %v964 = vadd.f32 0.0, %v963
    %v965 = vpop.f32.mrb[0].mxu0
    %966 = vmatprep.mubr.f32.mxu0 0.0
    %967 = vmatmul.mubr.f32.gmra.mrb[0].mxu0 %v437
    %v968 = vpop.f32.mrb[0].mxu0
    %v969 = vadd.f32 0.0, %v968
    %v970 = vpop.f32.mrb[0].mxu0
    %971 = vmatprep.mubr.f32.mxu0 0.0
    %972 = vmatmul.mubr.f32.gmra.mrb[0].mxu0 %v440
    %v973 = vpop.f32.mrb[0].mxu0
    %v974 = vadd.f32 0.0, %v973
    %v975 = vpop.f32.mrb[0].mxu0
    %976 = vmatprep.mubr.f32.mxu0 0.0
    %977 = vmatmul.mubr.f32.gmra.mrb[0].mxu0 %v443
    %v978 = vpop.f32.mrb[0].mxu0
    %v979 = vadd.f32 0.0, %v978
    %v980 = vpop.f32.mrb[0].mxu0
    %981 = vmatprep.mubr.f32.mxu0 0.0
    %982 = vmatmul.mubr.f32.gmra.mrb[0].mxu0 %v446
    %v983 = vpop.f32.mrb[0].mxu0
    %v984 = vadd.f32 0.0, %v983
    %v985 = vpop.f32.mrb[0].mxu0
    %986 = vmatprep.mubr.f32.mxu0 0.0
    %987 = vmatmul.mubr.f32.gmra.mrb[0].mxu0 %v449
    %v988 = vpop.f32.mrb[0].mxu0
    %v989 = vadd.f32 0.0, %v988
    %v990 = vpop.f32.mrb[0].mxu0
    %991 = vmatprep.mubr.f32.mxu0 0.0
    %992 = vmatmul.mubr.f32.gmra.mrb[0].mxu0 %v452
    %v993 = vpop.f32.mrb[0].mxu0
    %v994 = vadd.f32 0.0, %v993
    %v995 = vpop.f32.mrb[0].mxu0
    %996 = vmatprep.mubr.f32.mxu0 0.0
    %997 = vmatmul.mubr.f32.gmra.mrb[0].mxu0 %v455
    %v998 = vpop.f32.mrb[0].mxu0
    %v999 = vadd.f32 0.0, %v998
    %v1000 = vpop.f32.mrb[0].mxu0
    %1001 = vmatprep.mubr.f32.mxu0 0.0
    %1002 = vmatmul.mubr.f32.gmra.mrb[0].mxu0 %v458
    %v1003 = vpop.f32.mrb[0].mxu0
    %v1004 = vadd.f32 0.0, %v1003
    %v1005 = vpop.f32.mrb[0].mxu0
    %1006 = vmatprep.mubr.f32.mxu0 0.0
    %1007 = vmatmul.mubr.f32.gmra.mrb[0].mxu0 %v461
    %v1008 = vpop.f32.mrb[0].mxu0
    %v1009 = vadd.f32 0.0, %v1008
    %v1010 = vpop.f32.mrb[0].mxu0
    %1011 = vmatprep.mubr.f32.mxu0 0.0
    %1012 = vmatmul.mubr.f32.gmra.mrb[0].mxu0 %v464
    %v1013 = vpop.f32.mrb[0].mxu0
    %v1014 = vadd.f32 0.0, %v1013
    %v1015 = vpop.f32.mrb[0].mxu0
    %1016 = vmatprep.mubr.f32.mxu0 0.0
    %1017 = vmatmul.mubr.f32.gmra.mrb[0].mxu0 %v467
    %v1018 = vpop.f32.mrb[0].mxu0
    %v1019 = vadd.f32 0.0, %v1018
    %v1020 = vpop.f32.mrb[0].mxu0
    %1021 = vmatprep.mubr.f32.mxu0 0.0
    %1022 = vmatmul.mubr.f32.gmra.mrb[0].mxu0 %v470
    %v1023 = vpop.f32.mrb[0].mxu0
    %v1024 = vadd.f32 0.0, %v1023
    %v1025 = vpop.f32.mrb[0].mxu0
    %1026 = vmatprep.mubr.f32.mxu0 0.0
    %1027 = vmatmul.mubr.f32.gmra.mrb[0].mxu0 %v473
    %v1028 = vpop.f32.mrb[0].mxu0
    %v1029 = vadd.f32 0.0, %v1028
    %v1030 = vpop.f32.mrb[0].mxu0
    %1031 = vmatprep.mubr.f32.mxu0 0.0
    %1032 = vmatmul.mubr.f32.gmra.mrb[0].mxu0 %v476
    %v1033 = vpop.f32.mrb[0].mxu0
    %v1034 = vadd.f32 0.0, %v1033
    %v1035 = vpop.f32.mrb[0].mxu0
    %1036 = vmatprep.mubr.f32.mxu0 0.0
    %1037 = vmatmul.mubr.f32.gmra.mrb[0].mxu0 %v479
    %v1038 = vpop.f32.mrb[0].mxu0
    %v1039 = vadd.f32 0.0, %v1038
    %v1040 = vpop.f32.mrb[0].mxu0
    %1041 = vmatprep.mubr.f32.mxu0 0.0
    %1042 = vmatmul.mubr.f32.gmra.mrb[0].mxu0 %v482
    %v1043 = vpop.f32.mrb[0].mxu0
    %v1044 = vadd.f32 0.0, %v1043
    %v1045 = vpop.f32.mrb[0].mxu0
    %1046 = vmatprep.mubr.f32.mxu0 0.0
    %1047 = vmatmul.mubr.f32.gmra.mrb[0].mxu0 %v485
    %v1048 = vpop.f32.mrb[0].mxu0
    %v1049 = vadd.f32 0.0, %v1048
    %v1050 = vpop.f32.mrb[0].mxu0
    %1051 = vmatprep.mubr.f32.mxu0 0.0
    %1052 = vmatmul.mubr.f32.gmra.mrb[0].mxu0 %v488
    %v1053 = vpop.f32.mrb[0].mxu0
    %v1054 = vadd.f32 0.0, %v1053
    %v1055 = vpop.f32.mrb[0].mxu0
    %1056 = vmatprep.mubr.f32.mxu0 0.0
    %1057 = vmatmul.mubr.f32.gmra.mrb[0].mxu0 %v491
    %v1058 = vpop.f32.mrb[0].mxu0
    %v1059 = vadd.f32 0.0, %v1058
    %v1060 = vpop.f32.mrb[0].mxu0
    %1061 = vmatprep.mubr.f32.mxu0 0.0
    %1062 = vmatmul.mubr.f32.gmra.mrb[0].mxu0 %v494
    %v1063 = vpop.f32.mrb[0].mxu0
    %v1064 = vadd.f32 0.0, %v1063
    %v1065 = vpop.f32.mrb[0].mxu0
    %1066 = vmatprep.mubr.f32.mxu0 0.0
    %1067 = vmatmul.mubr.f32.gmra.mrb[0].mxu0 %v497
    %v1068 = vpop.f32.mrb[0].mxu0
    %v1069 = vadd.f32 0.0, %v1068
    %v1070 = vpop.f32.mrb[0].mxu0
    %1071 = vmatprep.mubr.f32.mxu0 0.0
    %1072 = vmatmul.mubr.f32.gmra.mrb[0].mxu0 %v500
    %v1073 = vpop.f32.mrb[0].mxu0
    %v1074 = vadd.f32 0.0, %v1073
    %v1075 = vpop.f32.mrb[0].mxu0
    %1076 = vmatprep.mubr.f32.mxu0 0.0
    %1077 = vmatmul.mubr.f32.gmra.mrb[0].mxu0 %v503
    %v1078 = vpop.f32.mrb[0].mxu0
    %v1079 = vadd.f32 0.0, %v1078
    %v1080 = vpop.f32.mrb[0].mxu0
    %1081 = vmatprep.mubr.f32.mxu0 0.0
    %1082 = vmatmul.mubr.f32.gmra.mrb[0].mxu0 %v506
    %v1083 = vpop.f32.mrb[0].mxu0
    %v1084 = vadd.f32 0.0, %v1083
    %v1085 = vpop.f32.mrb[0].mxu0
    %1086 = vmatprep.mubr.f32.mxu0 0.0
    %1087 = vmatmul.mubr.f32.gmra.mrb[0].mxu0 %v509
    %v1088 = vpop.f32.mrb[0].mxu0
    %v1089 = vadd.f32 0.0, %v1088
    %v1090 = vpop.f32.mrb[0].mxu0
    %1091 = vmatprep.mubr.f32.mxu0 0.0
    %1092 = vmatmul.mubr.f32.gmra.mrb[0].mxu0 %v512
    %v1093 = vpop.f32.mrb[0].mxu0
    %v1094 = vadd.f32 0.0, %v1093
    %v1095 = vpop.f32.mrb[0].mxu0
    %1096 = vmatprep.mubr.f32.mxu0 0.0
    %1097 = vmatmul.mubr.f32.gmra.mrb[0].mxu0 %v515
    %v1098 = vpop.f32.mrb[0].mxu0
    %v1099 = vadd.f32 0.0, %v1098
    %v1100 = vpop.f32.mrb[0].mxu0
    %1101 = vmatprep.mubr.f32.mxu0 0.0
    %1102 = vmatmul.mubr.f32.gmra.mrb[0].mxu0 %v518
    %v1103 = vpop.f32.mrb[0].mxu0
    %v1104 = vadd.f32 0.0, %v1103
    %v1105 = vpop.f32.mrb[0].mxu0
    %1106 = vmatprep.mubr.f32.mxu0 0.0
    %1107 = vmatmul.mubr.f32.gmra.mrb[0].mxu0 %v521
    %v1108 = vpop.f32.mrb[0].mxu0
    %v1109 = vadd.f32 0.0, %v1108
    %v1110 = vpop.f32.mrb[0].mxu0
    %1111 = vmatprep.mubr.f32.mxu0 0.0
    %1112 = vmatmul.mubr.f32.gmra.mrb[0].mxu0 %v524
    %v1113 = vpop.f32.mrb[0].mxu0
    %v1114 = vadd.f32 0.0, %v1113
    %v1115 = vpop.f32.mrb[0].mxu0
    %1116 = vmatprep.mubr.f32.mxu0 0.0
    %1117 = vmatmul.mubr.f32.gmra.mrb[0].mxu0 %v527
    %v1118 = vpop.f32.mrb[0].mxu0
    %v1119 = vadd.f32 0.0, %v1118
    %v1120 = vpop.f32.mrb[0].mxu0
    %1121 = vmatprep.mubr.f32.mxu0 0.0
    %1122 = vmatmul.mubr.f32.gmra.mrb[0].mxu0 %v530
    %v1123 = vpop.f32.mrb[0].mxu0
    %v1124 = vadd.f32 0.0, %v1123
    %v1125 = vpop.f32.mrb[0].mxu0
    %1126 = vmatprep.mubr.f32.mxu0 0.0
    %1127 = vmatmul.mubr.f32.gmra.mrb[0].mxu0 %v533
    %v1128 = vpop.f32.mrb[0].mxu0
    %v1129 = vadd.f32 0.0, %v1128
    %v1130 = vpop.f32.mrb[0].mxu0
    %1131 = vmatprep.mubr.f32.mxu0 0.0
    %1132 = vmatmul.mubr.f32.gmra.mrb[0].mxu0 %v536
    %v1133 = vpop.f32.mrb[0].mxu0
    %v1134 = vadd.f32 0.0, %v1133
    %v1135 = vpop.f32.mrb[0].mxu0
    %1136 = vmatprep.mubr.f32.mxu0 0.0
    %1137 = vmatmul.mubr.f32.gmra.mrb[0].mxu0 %v539
    %v1138 = vpop.f32.mrb[0].mxu0
    %v1139 = vadd.f32 0.0, %v1138
    %v1140 = vpop.f32.mrb[0].mxu0
    %1141 = vmatprep.mubr.f32.mxu0 0.0
    %1142 = vmatmul.mubr.f32.gmra.mrb[0].mxu0 %v542
    %v1143 = vpop.f32.mrb[0].mxu0
    %v1144 = vadd.f32 0.0, %v1143
    %v1145 = vpop.f32.mrb[0].mxu0
    %1146 = vmatprep.mubr.f32.mxu0 0.0
    %1147 = vmatmul.mubr.f32.gmra.mrb[0].mxu0 %v545
    %v1148 = vpop.f32.mrb[0].mxu0
    %v1149 = vadd.f32 0.0, %v1148
    %v1150 = vpop.f32.mrb[0].mxu0
    %1151 = vmatprep.mubr.f32.mxu0 0.0
    %1152 = vmatmul.mubr.f32.gmra.mrb[0].mxu0 %v548
    %v1153 = vpop.f32.mrb[0].mxu0
    %v1154 = vadd.f32 0.0, %v1153
    %v1155 = vpop.f32.mrb[0].mxu0
    %1156 = vmatprep.mubr.f32.mxu0 0.0
    %1157 = vmatmul.mubr.f32.gmra.mrb[0].mxu0 %v551
    %v1158 = vpop.f32.mrb[0].mxu0
    %v1159 = vadd.f32 0.0, %v1158
    %v1160 = vpop.f32.mrb[0].mxu0
    %1161 = vmatprep.mubr.f32.mxu0 0.0
    %1162 = vmatmul.mubr.f32.gmra.mrb[0].mxu0 %v554
    %v1163 = vpop.f32.mrb[0].mxu0
    %v1164 = vadd.f32 0.0, %v1163
    %v1165 = vpop.f32.mrb[0].mxu0
    %1166 = vmatprep.mubr.f32.mxu0 0.0
    %1167 = vmatmul.mubr.f32.gmra.mrb[0].mxu0 %v557
    %v1168 = vpop.f32.mrb[0].mxu0
    %v1169 = vadd.f32 0.0, %v1168
    %v1170 = vpop.f32.mrb[0].mxu0
    %1171 = vmatprep.mubr.f32.mxu0 0.0
    %1172 = vmatmul.mubr.f32.gmra.mrb[0].mxu0 %v560
    %v1173 = vpop.f32.mrb[0].mxu0
    %v1174 = vadd.f32 0.0, %v1173
    %v1175 = vpop.f32.mrb[0].mxu0
    %1176 = vmatprep.mubr.f32.mxu0 0.0
    %1177 = vmatmul.mubr.f32.gmra.mrb[0].mxu0 %v563
    %v1178 = vpop.f32.mrb[0].mxu0
    %v1179 = vadd.f32 0.0, %v1178
    %v1180 = vpop.f32.mrb[0].mxu0
    %1181 = vmatprep.mubr.f32.mxu0 0.0
    %1182 = vmatmul.mubr.f32.gmra.mrb[0].mxu0 %v566
    %v1183 = vpop.f32.mrb[0].mxu0
    %v1184 = vadd.f32 0.0, %v1183
    %v1185 = vpop.f32.mrb[0].mxu0
    %1186 = vmatprep.mubr.f32.mxu0 0.0
    %1187 = vmatmul.mubr.f32.gmra.mrb[0].mxu0 %v569
    %v1188 = vpop.f32.mrb[0].mxu0
    %v1189 = vadd.f32 0.0, %v1188
    %v1190 = vpop.f32.mrb[0].mxu0
    %1191 = vmatprep.mubr.f32.mxu0 0.0
    %1192 = vmatmul.mubr.f32.gmra.mrb[0].mxu0 %v572
    %v1193 = vpop.f32.mrb[0].mxu0
    %v1194 = vadd.f32 0.0, %v1193
    %v1195 = vpop.f32.mrb[0].mxu0
    %1196 = vmatprep.mubr.f32.mxu0 0.0
    %1197 = vmatmul.mubr.f32.gmra.mrb[0].mxu0 %v575
    %v1198 = vpop.f32.mrb[0].mxu0
    %v1199 = vadd.f32 0.0, %v1198
    %v1200 = vpop.f32.mrb[0].mxu0
    %1201 = vmatprep.mubr.f32.mxu0 0.0
    %1202 = vmatmul.mubr.f32.gmra.mrb[0].mxu0 %v578
    %v1203 = vpop.f32.mrb[0].mxu0
    %v1204 = vadd.f32 0.0, %v1203
    %v1205 = vpop.f32.mrb[0].mxu0
    %1206 = vmatprep.mubr.f32.mxu0 0.0
    %1207 = vmatmul.mubr.f32.gmra.mrb[0].mxu0 %v581
    %v1208 = vpop.f32.mrb[0].mxu0
    %v1209 = vadd.f32 0.0, %v1208
    %v1210 = vpop.f32.mrb[0].mxu0
    %1211 = vmatprep.mubr.f32.mxu0 0.0
    %1212 = vmatmul.mubr.f32.gmra.mrb[0].mxu0 %v584
    %v1213 = vpop.f32.mrb[0].mxu0
    %v1214 = vadd.f32 0.0, %v1213
    %v1215 = vpop.f32.mrb[0].mxu0
    %1216 = vmatprep.mubr.f32.mxu0 0.0
    %1217 = vmatmul.mubr.f32.gmra.mrb[0].mxu0 %v587
    %v1218 = vpop.f32.mrb[0].mxu0
    %v1219 = vadd.f32 0.0, %v1218
    %v1220 = vpop.f32.mrb[0].mxu0
    %1221 = vmatprep.mubr.f32.mxu0 0.0
    %1222 = vmatmul.mubr.f32.gmra.mrb[0].mxu0 %v590
    %v1223 = vpop.f32.mrb[0].mxu0
    %v1224 = vadd.f32 0.0, %v1223
    %v1225 = vpop.f32.mrb[0].mxu0
    %1226 = vmatprep.mubr.f32.mxu0 0.0
    %1227 = vmatmul.mubr.f32.gmra.mrb[0].mxu0 %v593
    %v1228 = vpop.f32.mrb[0].mxu0
    %v1229 = vadd.f32 0.0, %v1228
    %v1230 = vpop.f32.mrb[0].mxu0
    %1231 = vmatprep.mubr.f32.mxu0 0.0
    %1232 = vmatmul.mubr.f32.gmra.mrb[0].mxu0 %v596
    %v1233 = vpop.f32.mrb[0].mxu0
    %v1234 = vadd.f32 0.0, %v1233
    %v1235 = vpop.f32.mrb[0].mxu0
    %1236 = vmatprep.mubr.f32.mxu0 0.0
    %1237 = vmatmul.mubr.f32.gmra.mrb[0].mxu0 %v599
    %v1238 = vpop.f32.mrb[0].mxu0
    %v1239 = vadd.f32 0.0, %v1238
    %v1240 = vpop.f32.mrb[0].mxu0
    %1241 = vmatprep.mubr.f32.mxu0 0.0
    %1242 = vmatmul.mubr.f32.gmra.mrb[0].mxu0 %v602
    %v1243 = vpop.f32.mrb[0].mxu0
    %v1244 = vadd.f32 0.0, %v1243
    %v1245 = vpop.f32.mrb[0].mxu0
    %1246 = vmatprep.mubr.f32.mxu0 0.0
    %1247 = vmatmul.mubr.f32.gmra.mrb[0].mxu0 %v605
    %v1248 = vpop.f32.mrb[0].mxu0
    %v1249 = vadd.f32 0.0, %v1248
    %v1250 = vpop.f32.mrb[0].mxu0
    %1251 = vmatprep.mubr.f32.mxu0 0.0
    %1252 = vmatmul.mubr.f32.gmra.mrb[0].mxu0 %v608
    %v1253 = vpop.f32.mrb[0].mxu0
    %v1254 = vadd.f32 0.0, %v1253
    %v1255 = vpop.f32.mrb[0].mxu0
    %1256 = vmatprep.mubr.f32.mxu0 0.0
    %1257 = vmatmul.mubr.f32.gmra.mrb[0].mxu0 %v611
    %v1258 = vpop.f32.mrb[0].mxu0
    %v1259 = vadd.f32 0.0, %v1258
    %v1260 = vpop.f32.mrb[0].mxu0
    %1261 = vmatprep.mubr.f32.mxu0 0.0
    %1262 = vmatmul.mubr.f32.gmra.mrb[0].mxu0 %v614
    %v1263 = vpop.f32.mrb[0].mxu0
    %v1264 = vadd.f32 0.0, %v1263
    %v1265 = vpop.f32.mrb[0].mxu0
    %1266 = vmatprep.mubr.f32.mxu0 0.0
    %1267 = vmatmul.mubr.f32.gmra.mrb[0].mxu0 %v617
    %v1268 = vpop.f32.mrb[0].mxu0
    %v1269 = vadd.f32 0.0, %v1268
    %v1270 = vpop.f32.mrb[0].mxu0
    %1271 = vmatprep.mubr.f32.mxu0 0.0
    %1272 = vmatmul.mubr.f32.gmra.mrb[0].mxu0 %v620
    %v1273 = vpop.f32.mrb[0].mxu0
    %v1274 = vadd.f32 0.0, %v1273
    %v1275 = vpop.f32.mrb[0].mxu0
    %1276 = vmatprep.mubr.f32.mxu0 0.0
    %1277 = vmatmul.mubr.f32.gmra.mrb[0].mxu0 %v623
    %v1278 = vpop.f32.mrb[0].mxu0
    %v1279 = vadd.f32 0.0, %v1278
    %v1280 = vpop.f32.mrb[0].mxu0
    %1281 = vmatprep.mubr.f32.mxu0 0.0
    %1282 = vmatmul.mubr.f32.gmra.mrb[0].mxu0 %v626
    %v1283 = vpop.f32.mrb[0].mxu0
    %v1284 = vadd.f32 0.0, %v1283
    %v1285 = vpop.f32.mrb[0].mxu0
    %1286 = vmatprep.mubr.f32.mxu0 0.0
    %1287 = vmatmul.mubr.f32.gmra.mrb[0].mxu0 %v629
    %v1288 = vpop.f32.mrb[0].mxu0
    %v1289 = vadd.f32 0.0, %v1288
    %v1290 = vpop.f32.mrb[0].mxu0
    %1291 = vmatprep.mubr.f32.mxu0 0.0
    %1292 = vmatmul.mubr.f32.gmra.mrb[0].mxu0 %v632
    %v1293 = vpop.f32.mrb[0].mxu0
    %v1294 = vadd.f32 0.0, %v1293
    %v1295 = vpop.f32.mrb[0].mxu0
    %1296 = vmatprep.mubr.f32.mxu0 0.0
    %1297 = vmatmul.mubr.f32.gmra.mrb[0].mxu0 %v635
    %v1298 = vpop.f32.mrb[0].mxu0
    %v1299 = vadd.f32 0.0, %v1298
    %v1300 = vpop.f32.mrb[0].mxu0
    %1301 = vmatprep.mubr.f32.mxu0 0.0
    %1302 = vmatmul.mubr.f32.gmra.mrb[0].mxu0 %v638
    %v1303 = vpop.f32.mrb[0].mxu0
    %v1304 = vadd.f32 0.0, %v1303
    %v1305 = vpop.f32.mrb[0].mxu0
    %1306 = vmatprep.mubr.f32.mxu0 0.0
    %1307 = vmatmul.mubr.f32.gmra.mrb[0].mxu0 %v641
    %v1308 = vpop.f32.mrb[0].mxu0
    %v1309 = vadd.f32 0.0, %v1308
    %v1310 = vpop.f32.mrb[0].mxu0
    %1311 = vmatprep.mubr.f32.mxu0 0.0
    %1312 = vmatmul.mubr.f32.gmra.mrb[0].mxu0 %v644
    %v1313 = vpop.f32.mrb[0].mxu0
    %v1314 = vadd.f32 0.0, %v1313
    %v1315 = vpop.f32.mrb[0].mxu0
    %1316 = vmatprep.mubr.f32.mxu0 0.0
    %1317 = vmatmul.mubr.f32.gmra.mrb[0].mxu0 %v647
    %v1318 = vpop.f32.mrb[0].mxu0
    %v1319 = vadd.f32 0.0, %v1318
    %v1320 = vpop.f32.mrb[0].mxu0
    %1321 = vmatprep.mubr.f32.mxu0 0.0
    %1322 = vmatmul.mubr.f32.gmra.mrb[0].mxu0 %v650
    %v1323 = vpop.f32.mrb[0].mxu0
    %v1324 = vadd.f32 0.0, %v1323
    %v1325 = vpop.f32.mrb[0].mxu0
    %1326 = vmatprep.mubr.f32.mxu0 0.0
    %1327 = vmatmul.mubr.f32.gmra.mrb[0].mxu0 %v653
    %v1328 = vpop.f32.mrb[0].mxu0
    %v1329 = vadd.f32 0.0, %v1328
    %v1330 = vpop.f32.mrb[0].mxu0
    %1331 = vmatprep.mubr.f32.mxu0 0.0
    %1332 = vmatmul.mubr.f32.gmra.mrb[0].mxu0 %v656
    %v1333 = vpop.f32.mrb[0].mxu0
    %v1334 = vadd.f32 0.0, %v1333
    %v1335 = vpop.f32.mrb[0].mxu0
    %1336 = vmatprep.mubr.f32.mxu0 0.0
    %1337 = vmatmul.mubr.f32.gmra.mrb[0].mxu0 %v659
    %v1338 = vpop.f32.mrb[0].mxu0
    %v1339 = vadd.f32 0.0, %v1338
    %v1340 = vpop.f32.mrb[0].mxu0
    %1341 = vmatprep.mubr.f32.mxu0 0.0
    %1342 = vmatmul.mubr.f32.gmra.mrb[0].mxu0 %v662
    %v1343 = vpop.f32.mrb[0].mxu0
    %v1344 = vadd.f32 0.0, %v1343
    %v1345 = vpop.f32.mrb[0].mxu0
    %1346 = vmatprep.mubr.f32.mxu0 0.0
    %1347 = vmatmul.mubr.f32.gmra.mrb[0].mxu0 %v665
    %v1348 = vpop.f32.mrb[0].mxu0
    %v1349 = vadd.f32 0.0, %v1348
    %v1350 = vpop.f32.mrb[0].mxu0
    %1351 = vmatprep.mubr.f32.mxu0 0.0
    %1352 = vmatmul.mubr.f32.gmra.mrb[0].mxu0 %v668
    %v1353 = vpop.f32.mrb[0].mxu0
    %v1354 = vadd.f32 0.0, %v1353
    %v1355 = vpop.f32.mrb[0].mxu0
    %1356 = vmatprep.mubr.f32.mxu0 0.0
    %1357 = vmatmul.mubr.f32.gmra.mrb[0].mxu0 %v671
    %v1358 = vpop.f32.mrb[0].mxu0
    %v1359 = vadd.f32 0.0, %v1358
    %v1360 = vpop.f32.mrb[0].mxu0
    %1361 = vmatprep.mubr.f32.mxu0 0.0
    %1362 = vmatmul.mubr.f32.gmra.mrb[0].mxu0 %v674
    %v1363 = vpop.f32.mrb[0].mxu0
    %v1364 = vadd.f32 0.0, %v1363
    %v1365 = vpop.f32.mrb[0].mxu0
    %1366 = vmatprep.mubr.f32.mxu0 0.0
    %1367 = vmatmul.mubr.f32.gmra.mrb[0].mxu0 %v677
    %v1368 = vpop.f32.mrb[0].mxu0
    %v1369 = vadd.f32 0.0, %v1368
    %v1370 = vpop.f32.mrb[0].mxu0
    %1371 = vmatprep.mubr.f32.mxu0 0.0
    %1372 = vmatmul.mubr.f32.gmra.mrb[0].mxu0 %v680
    %v1373 = vpop.f32.mrb[0].mxu0
    %v1374 = vadd.f32 0.0, %v1373
    %v1375 = vpop.f32.mrb[0].mxu0
    %1376 = vmatprep.mubr.f32.mxu0 0.0
    %1377 = vmatmul.mubr.f32.gmra.mrb[0].mxu0 %v683
    %v1378 = vpop.f32.mrb[0].mxu0
    %v1379 = vadd.f32 0.0, %v1378
    %v1380 = vpop.f32.mrb[0].mxu0
    %1381 = vmatprep.mubr.f32.mxu0 0.0
    %1382 = vmatmul.mubr.f32.gmra.mrb[0].mxu0 %v686
    %v1383 = vpop.f32.mrb[0].mxu0
    %v1384 = vadd.f32 0.0, %v1383
    %v1385 = vpop.f32.mrb[0].mxu0
    %1386 = vmatprep.mubr.f32.mxu0 0.0
    %1387 = vmatmul.mubr.f32.gmra.mrb[0].mxu0 %v689
    %v1388 = vpop.f32.mrb[0].mxu0
    %v1389 = vadd.f32 0.0, %v1388
    %v1390 = vpop.f32.mrb[0].mxu0
    %1391 = vmatprep.mubr.f32.mxu0 0.0
    %1392 = vmatmul.mubr.f32.gmra.mrb[0].mxu0 %v692
    %v1393 = vpop.f32.mrb[0].mxu0
    %v1394 = vadd.f32 0.0, %v1393
    %v1395 = vpop.f32.mrb[0].mxu0
    %1396 = vmatprep.mubr.f32.mxu0 0.0
    %1397 = vmatmul.mubr.f32.gmra.mrb[0].mxu0 %v695
    %v1398 = vpop.f32.mrb[0].mxu0
    %v1399 = vadd.f32 0.0, %v1398
    %v1400 = vpop.f32.mrb[0].mxu0
    %1401 = vdwg.mxu0
    %v1403 = vcombine.high %v306, %v306
    %v1405 = vunpack.c.l.s4 1966171168
    %v1406 = vunpack.c.0.s8 %v1405
    %v1407 = vlaneseq
    %v1408 = vshrl.u32 %v1407, 7
    %v1409 = vsub.s32 %v1406, %v1408
    %v1410 = vrot.slane %v306, %v1409
    %v1412 = vunpack.c.l.s4 1966171168
    %v1413 = vunpack.c.0.s8 %v1412
    %v1414 = vlaneseq
    %v1415 = vshrl.u32 %v1414, 7
    %v1416 = vsub.s32 %v1413, %v1415
    %v1417 = vrot.slane %v1403, %v1416
    %v1418 = vcombine.high %v1410, %v1410
    %v1419 = vcombine.high %v1417, %v1417
    %v1421 = vunpack.c.l.s4 1966171168
    %v1422 = vunpack.c.0.s8 %v1421
    %v1423 = vlaneseq
    %v1424 = vshrl.u32 %v1423, 7
    %v1425 = vsub.s32 %v1422, %v1424
    %v1426 = vrot.slane %v1410, %v1425
    %v1428 = vunpack.c.l.s4 1966171168
    %v1429 = vunpack.c.0.s8 %v1428
    %v1430 = vlaneseq
    %v1431 = vshrl.u32 %v1430, 7
    %v1432 = vsub.s32 %v1429, %v1431
    %v1433 = vrot.slane %v1417, %v1432
    %v1435 = vunpack.c.l.s4 1966171168
    %v1436 = vunpack.c.0.s8 %v1435
    %v1437 = vlaneseq
    %v1438 = vshrl.u32 %v1437, 7
    %v1439 = vsub.s32 %v1436, %v1438
    %v1440 = vrot.slane %v1418, %v1439
    %v1442 = vunpack.c.l.s4 1966171168
    %v1443 = vunpack.c.0.s8 %v1442
    %v1444 = vlaneseq
    %v1445 = vshrl.u32 %v1444, 7
    %v1446 = vsub.s32 %v1443, %v1445
    %v1447 = vrot.slane %v1419, %v1446
    %v1448 = vcombine.high %v1426, %v1426
    %v1449 = vcombine.high %v1433, %v1433
    %v1450 = vcombine.high %v1440, %v1440
    %v1451 = vcombine.high %v1447, %v1447
    %v1452 = vlaneseq
    %v1453 = vshrl.u32 %v1452, 7
    %v1454 = vsub.s32 0, %v1453
    %v1455 = vrot.slane %v1426, %v1454
    %v1456 = vlaneseq
    %v1457 = vshrl.u32 %v1456, 7
    %v1458 = vsub.s32 0, %v1457
    %v1459 = vrot.slane %v1440, %v1458
    %v1460 = vlaneseq
    %v1461 = vshrl.u32 %v1460, 7
    %v1462 = vsub.s32 0, %v1461
    %v1463 = vrot.slane %v1448, %v1462
    %v1464 = vlaneseq
    %v1465 = vshrl.u32 %v1464, 7
    %v1466 = vsub.s32 0, %v1465
    %v1467 = vrot.slane %v1450, %v1466
    %v1468 = vlaneseq
    %v1469 = vshrl.u32 %v1468, 7
    %v1470 = vsub.s32 0, %v1469
    %v1471 = vrot.slane %v1433, %v1470
    %v1472 = vlaneseq
    %v1473 = vshrl.u32 %v1472, 7
    %v1474 = vsub.s32 0, %v1473
    %v1475 = vrot.slane %v1447, %v1474
    %v1476 = vlaneseq
    %v1477 = vshrl.u32 %v1476, 7
    %v1478 = vsub.s32 0, %v1477
    %v1479 = vrot.slane %v1449, %v1478
    %v1480 = vlaneseq
    %v1481 = vshrl.u32 %v1480, 7
    %v1482 = vsub.s32 0, %v1481
    %v1483 = vrot.slane %v1451, %v1482
    %v1492 = vadd.f32 %v1455, %v764
    %v1493 = vadd.f32 %v1455, %v769
    %v1494 = vadd.f32 %v1455, %v774
    %v1495 = vadd.f32 %v1455, %v779
    %v1496 = vadd.f32 %v1455, %v784
    %v1497 = vadd.f32 %v1455, %v789
    %v1498 = vadd.f32 %v1455, %v794
    %v1499 = vadd.f32 %v1455, %v799
    %v1500 = vadd.f32 %v1455, %v804
    %v1501 = vadd.f32 %v1455, %v809
    %v1502 = vadd.f32 %v1455, %v814
    %v1503 = vadd.f32 %v1455, %v819
    %v1504 = vadd.f32 %v1455, %v824
    %v1505 = vadd.f32 %v1455, %v829
    %v1506 = vadd.f32 %v1455, %v834
    %v1507 = vadd.f32 %v1455, %v839
    %v1508 = vadd.f32 %v1459, %v844
    %v1509 = vadd.f32 %v1459, %v849
    %v1510 = vadd.f32 %v1459, %v854
    %v1511 = vadd.f32 %v1459, %v859
    %v1512 = vadd.f32 %v1459, %v864
    %v1513 = vadd.f32 %v1459, %v869
    %v1514 = vadd.f32 %v1459, %v874
    %v1515 = vadd.f32 %v1459, %v879
    %v1516 = vadd.f32 %v1459, %v884
    %v1517 = vadd.f32 %v1459, %v889
    %v1518 = vadd.f32 %v1459, %v894
    %v1519 = vadd.f32 %v1459, %v899
    %v1520 = vadd.f32 %v1459, %v904
    %v1521 = vadd.f32 %v1459, %v909
    %v1522 = vadd.f32 %v1459, %v914
    %v1523 = vadd.f32 %v1459, %v919
    %v1524 = vadd.f32 %v1463, %v924
    %v1525 = vadd.f32 %v1463, %v929
    %v1526 = vadd.f32 %v1463, %v934
    %v1527 = vadd.f32 %v1463, %v939
    %v1528 = vadd.f32 %v1463, %v944
    %v1529 = vadd.f32 %v1463, %v949
    %v1530 = vadd.f32 %v1463, %v954
    %v1531 = vadd.f32 %v1463, %v959
    %v1532 = vadd.f32 %v1463, %v964
    %v1533 = vadd.f32 %v1463, %v969
    %v1534 = vadd.f32 %v1463, %v974
    %v1535 = vadd.f32 %v1463, %v979
    %v1536 = vadd.f32 %v1463, %v984
    %v1537 = vadd.f32 %v1463, %v989
    %v1538 = vadd.f32 %v1463, %v994
    %v1539 = vadd.f32 %v1463, %v999
    %v1540 = vadd.f32 %v1467, %v1004
    %v1541 = vadd.f32 %v1467, %v1009
    %v1542 = vadd.f32 %v1467, %v1014
    %v1543 = vadd.f32 %v1467, %v1019
    %v1544 = vadd.f32 %v1467, %v1024
    %v1545 = vadd.f32 %v1467, %v1029
    %v1546 = vadd.f32 %v1467, %v1034
    %v1547 = vadd.f32 %v1467, %v1039
    %v1548 = vadd.f32 %v1467, %v1044
    %v1549 = vadd.f32 %v1467, %v1049
    %v1550 = vadd.f32 %v1467, %v1054
    %v1551 = vadd.f32 %v1467, %v1059
    %v1552 = vadd.f32 %v1467, %v1064
    %v1553 = vadd.f32 %v1467, %v1069
    %v1554 = vadd.f32 %v1467, %v1074
    %v1555 = vadd.f32 %v1467, %v1079
    %v1556 = vadd.f32 %v1471, %v1084
    %v1557 = vadd.f32 %v1471, %v1089
    %v1558 = vadd.f32 %v1471, %v1094
    %v1559 = vadd.f32 %v1471, %v1099
    %v1560 = vadd.f32 %v1471, %v1104
    %v1561 = vadd.f32 %v1471, %v1109
    %v1562 = vadd.f32 %v1471, %v1114
    %v1563 = vadd.f32 %v1471, %v1119
    %v1564 = vadd.f32 %v1471, %v1124
    %v1565 = vadd.f32 %v1471, %v1129
    %v1566 = vadd.f32 %v1471, %v1134
    %v1567 = vadd.f32 %v1471, %v1139
    %v1568 = vadd.f32 %v1471, %v1144
    %v1569 = vadd.f32 %v1471, %v1149
    %v1570 = vadd.f32 %v1471, %v1154
    %v1571 = vadd.f32 %v1471, %v1159
    %v1572 = vadd.f32 %v1475, %v1164
    %v1573 = vadd.f32 %v1475, %v1169
    %v1574 = vadd.f32 %v1475, %v1174
    %v1575 = vadd.f32 %v1475, %v1179
    %v1576 = vadd.f32 %v1475, %v1184
    %v1577 = vadd.f32 %v1475, %v1189
    %v1578 = vadd.f32 %v1475, %v1194
    %v1579 = vadd.f32 %v1475, %v1199
    %v1580 = vadd.f32 %v1475, %v1204
    %v1581 = vadd.f32 %v1475, %v1209
    %v1582 = vadd.f32 %v1475, %v1214
    %v1583 = vadd.f32 %v1475, %v1219
    %v1584 = vadd.f32 %v1475, %v1224
    %v1585 = vadd.f32 %v1475, %v1229
    %v1586 = vadd.f32 %v1475, %v1234
    %v1587 = vadd.f32 %v1475, %v1239
    %v1588 = vadd.f32 %v1479, %v1244
    %v1589 = vadd.f32 %v1479, %v1249
    %v1590 = vadd.f32 %v1479, %v1254
    %v1591 = vadd.f32 %v1479, %v1259
    %v1592 = vadd.f32 %v1479, %v1264
    %v1593 = vadd.f32 %v1479, %v1269
    %v1594 = vadd.f32 %v1479, %v1274
    %v1595 = vadd.f32 %v1479, %v1279
    %v1596 = vadd.f32 %v1479, %v1284
    %v1597 = vadd.f32 %v1479, %v1289
    %v1598 = vadd.f32 %v1479, %v1294
    %v1599 = vadd.f32 %v1479, %v1299
    %v1600 = vadd.f32 %v1479, %v1304
    %v1601 = vadd.f32 %v1479, %v1309
    %v1602 = vadd.f32 %v1479, %v1314
    %v1603 = vadd.f32 %v1479, %v1319
    %v1604 = vadd.f32 %v1483, %v1324
    %v1605 = vadd.f32 %v1483, %v1329
    %v1606 = vadd.f32 %v1483, %v1334
    %v1607 = vadd.f32 %v1483, %v1339
    %v1608 = vadd.f32 %v1483, %v1344
    %v1609 = vadd.f32 %v1483, %v1349
    %v1610 = vadd.f32 %v1483, %v1354
    %v1611 = vadd.f32 %v1483, %v1359
    %v1612 = vadd.f32 %v1483, %v1364
    %v1613 = vadd.f32 %v1483, %v1369
    %v1614 = vadd.f32 %v1483, %v1374
    %v1615 = vadd.f32 %v1483, %v1379
    %v1616 = vadd.f32 %v1483, %v1384
    %v1617 = vadd.f32 %v1483, %v1389
    %v1618 = vadd.f32 %v1483, %v1394
    %v1619 = vadd.f32 %v1483, %v1399
    %v1620 = vld [vmem:[%s7] sm:$0x1]
    %v1622 = vlaneseq
    %v1623 = vshrl.u32 %v1622, 7
    %v1624 = vsub.s32 0, %v1623
    %v1625 = vrot.slane %v1620, %v1624
    %v1627 = vadd.f32 %v1492, %v1625
    %v1628 = vadd.f32 %v1493, %v1625
    %v1629 = vadd.f32 %v1494, %v1625
    %v1630 = vadd.f32 %v1495, %v1625
    %v1631 = vadd.f32 %v1496, %v1625
    %v1632 = vadd.f32 %v1497, %v1625
    %v1633 = vadd.f32 %v1498, %v1625
    %v1634 = vadd.f32 %v1499, %v1625
    %v1635 = vadd.f32 %v1500, %v1625
    %v1636 = vadd.f32 %v1501, %v1625
    %v1637 = vadd.f32 %v1502, %v1625
    %v1638 = vadd.f32 %v1503, %v1625
    %v1639 = vadd.f32 %v1504, %v1625
    %v1640 = vadd.f32 %v1505, %v1625
    %v1641 = vadd.f32 %v1506, %v1625
    %v1642 = vadd.f32 %v1507, %v1625
    %v1643 = vadd.f32 %v1508, %v1625
    %v1644 = vadd.f32 %v1509, %v1625
    %v1645 = vadd.f32 %v1510, %v1625
    %v1646 = vadd.f32 %v1511, %v1625
    %v1647 = vadd.f32 %v1512, %v1625
    %v1648 = vadd.f32 %v1513, %v1625
    %v1649 = vadd.f32 %v1514, %v1625
    %v1650 = vadd.f32 %v1515, %v1625
    %v1651 = vadd.f32 %v1516, %v1625
    %v1652 = vadd.f32 %v1517, %v1625
    %v1653 = vadd.f32 %v1518, %v1625
    %v1654 = vadd.f32 %v1519, %v1625
    %v1655 = vadd.f32 %v1520, %v1625
    %v1656 = vadd.f32 %v1521, %v1625
    %v1657 = vadd.f32 %v1522, %v1625
    %v1658 = vadd.f32 %v1523, %v1625
    %v1659 = vadd.f32 %v1524, %v1625
    %v1660 = vadd.f32 %v1525, %v1625
    %v1661 = vadd.f32 %v1526, %v1625
    %v1662 = vadd.f32 %v1527, %v1625
    %v1663 = vadd.f32 %v1528, %v1625
    %v1664 = vadd.f32 %v1529, %v1625
    %v1665 = vadd.f32 %v1530, %v1625
    %v1666 = vadd.f32 %v1531, %v1625
    %v1667 = vadd.f32 %v1532, %v1625
    %v1668 = vadd.f32 %v1533, %v1625
    %v1669 = vadd.f32 %v1534, %v1625
    %v1670 = vadd.f32 %v1535, %v1625
    %v1671 = vadd.f32 %v1536, %v1625
    %v1672 = vadd.f32 %v1537, %v1625
    %v1673 = vadd.f32 %v1538, %v1625
    %v1674 = vadd.f32 %v1539, %v1625
    %v1675 = vadd.f32 %v1540, %v1625
    %v1676 = vadd.f32 %v1541, %v1625
    %v1677 = vadd.f32 %v1542, %v1625
    %v1678 = vadd.f32 %v1543, %v1625
    %v1679 = vadd.f32 %v1544, %v1625
    %v1680 = vadd.f32 %v1545, %v1625
    %v1681 = vadd.f32 %v1546, %v1625
    %v1682 = vadd.f32 %v1547, %v1625
    %v1683 = vadd.f32 %v1548, %v1625
    %v1684 = vadd.f32 %v1549, %v1625
    %v1685 = vadd.f32 %v1550, %v1625
    %v1686 = vadd.f32 %v1551, %v1625
    %v1687 = vadd.f32 %v1552, %v1625
    %v1688 = vadd.f32 %v1553, %v1625
    %v1689 = vadd.f32 %v1554, %v1625
    %v1690 = vadd.f32 %v1555, %v1625
    %v1691 = vadd.f32 %v1556, %v1625
    %v1692 = vadd.f32 %v1557, %v1625
    %v1693 = vadd.f32 %v1558, %v1625
    %v1694 = vadd.f32 %v1559, %v1625
    %v1695 = vadd.f32 %v1560, %v1625
    %v1696 = vadd.f32 %v1561, %v1625
    %v1697 = vadd.f32 %v1562, %v1625
    %v1698 = vadd.f32 %v1563, %v1625
    %v1699 = vadd.f32 %v1564, %v1625
    %v1700 = vadd.f32 %v1565, %v1625
    %v1701 = vadd.f32 %v1566, %v1625
    %v1702 = vadd.f32 %v1567, %v1625
    %v1703 = vadd.f32 %v1568, %v1625
    %v1704 = vadd.f32 %v1569, %v1625
    %v1705 = vadd.f32 %v1570, %v1625
    %v1706 = vadd.f32 %v1571, %v1625
    %v1707 = vadd.f32 %v1572, %v1625
    %v1708 = vadd.f32 %v1573, %v1625
    %v1709 = vadd.f32 %v1574, %v1625
    %v1710 = vadd.f32 %v1575, %v1625
    %v1711 = vadd.f32 %v1576, %v1625
    %v1712 = vadd.f32 %v1577, %v1625
    %v1713 = vadd.f32 %v1578, %v1625
    %v1714 = vadd.f32 %v1579, %v1625
    %v1715 = vadd.f32 %v1580, %v1625
    %v1716 = vadd.f32 %v1581, %v1625
    %v1717 = vadd.f32 %v1582, %v1625
    %v1718 = vadd.f32 %v1583, %v1625
    %v1719 = vadd.f32 %v1584, %v1625
    %v1720 = vadd.f32 %v1585, %v1625
    %v1721 = vadd.f32 %v1586, %v1625
    %v1722 = vadd.f32 %v1587, %v1625
    %v1723 = vadd.f32 %v1588, %v1625
    %v1724 = vadd.f32 %v1589, %v1625
    %v1725 = vadd.f32 %v1590, %v1625
    %v1726 = vadd.f32 %v1591, %v1625
    %v1727 = vadd.f32 %v1592, %v1625
    %v1728 = vadd.f32 %v1593, %v1625
    %v1729 = vadd.f32 %v1594, %v1625
    %v1730 = vadd.f32 %v1595, %v1625
    %v1731 = vadd.f32 %v1596, %v1625
    %v1732 = vadd.f32 %v1597, %v1625
    %v1733 = vadd.f32 %v1598, %v1625
    %v1734 = vadd.f32 %v1599, %v1625
    %v1735 = vadd.f32 %v1600, %v1625
    %v1736 = vadd.f32 %v1601, %v1625
    %v1737 = vadd.f32 %v1602, %v1625
    %v1738 = vadd.f32 %v1603, %v1625
    %v1739 = vadd.f32 %v1604, %v1625
    %v1740 = vadd.f32 %v1605, %v1625
    %v1741 = vadd.f32 %v1606, %v1625
    %v1742 = vadd.f32 %v1607, %v1625
    %v1743 = vadd.f32 %v1608, %v1625
    %v1744 = vadd.f32 %v1609, %v1625
    %v1745 = vadd.f32 %v1610, %v1625
    %v1746 = vadd.f32 %v1611, %v1625
    %v1747 = vadd.f32 %v1612, %v1625
    %v1748 = vadd.f32 %v1613, %v1625
    %v1749 = vadd.f32 %v1614, %v1625
    %v1750 = vadd.f32 %v1615, %v1625
    %v1751 = vadd.f32 %v1616, %v1625
    %v1752 = vadd.f32 %v1617, %v1625
    %v1753 = vadd.f32 %v1618, %v1625
    %v1754 = vadd.f32 %v1619, %v1625
    %v1755 = vtanh.pop %v1627
    %v1756 = vtanh.pop %v1628
    %v1757 = vtanh.pop %v1629
    %v1758 = vtanh.pop %v1630
    %v1759 = vtanh.pop %v1631
    %v1760 = vtanh.pop %v1632
    %v1761 = vtanh.pop %v1633
    %v1762 = vtanh.pop %v1634
    %v1763 = vtanh.pop %v1635
    %v1764 = vtanh.pop %v1636
    %v1765 = vtanh.pop %v1637
    %v1766 = vtanh.pop %v1638
    %v1767 = vtanh.pop %v1639
    %v1768 = vtanh.pop %v1640
    %v1769 = vtanh.pop %v1641
    %v1770 = vtanh.pop %v1642
    %v1771 = vtanh.pop %v1643
    %v1772 = vtanh.pop %v1644
    %v1773 = vtanh.pop %v1645
    %v1774 = vtanh.pop %v1646
    %v1775 = vtanh.pop %v1647
    %v1776 = vtanh.pop %v1648
    %v1777 = vtanh.pop %v1649
    %v1778 = vtanh.pop %v1650
    %v1779 = vtanh.pop %v1651
    %v1780 = vtanh.pop %v1652
    %v1781 = vtanh.pop %v1653
    %v1782 = vtanh.pop %v1654
    %v1783 = vtanh.pop %v1655
    %v1784 = vtanh.pop %v1656
    %v1785 = vtanh.pop %v1657
    %v1786 = vtanh.pop %v1658
    %v1787 = vtanh.pop %v1659
    %v1788 = vtanh.pop %v1660
    %v1789 = vtanh.pop %v1661
    %v1790 = vtanh.pop %v1662
    %v1791 = vtanh.pop %v1663
    %v1792 = vtanh.pop %v1664
    %v1793 = vtanh.pop %v1665
    %v1794 = vtanh.pop %v1666
    %v1795 = vtanh.pop %v1667
    %v1796 = vtanh.pop %v1668
    %v1797 = vtanh.pop %v1669
    %v1798 = vtanh.pop %v1670
    %v1799 = vtanh.pop %v1671
    %v1800 = vtanh.pop %v1672
    %v1801 = vtanh.pop %v1673
    %v1802 = vtanh.pop %v1674
    %v1803 = vtanh.pop %v1675
    %v1804 = vtanh.pop %v1676
    %v1805 = vtanh.pop %v1677
    %v1806 = vtanh.pop %v1678
    %v1807 = vtanh.pop %v1679
    %v1808 = vtanh.pop %v1680
    %v1809 = vtanh.pop %v1681
    %v1810 = vtanh.pop %v1682
    %v1811 = vtanh.pop %v1683
    %v1812 = vtanh.pop %v1684
    %v1813 = vtanh.pop %v1685
    %v1814 = vtanh.pop %v1686
    %v1815 = vtanh.pop %v1687
    %v1816 = vtanh.pop %v1688
    %v1817 = vtanh.pop %v1689
    %v1818 = vtanh.pop %v1690
    %v1819 = vtanh.pop %v1691
    %v1820 = vtanh.pop %v1692
    %v1821 = vtanh.pop %v1693
    %v1822 = vtanh.pop %v1694
    %v1823 = vtanh.pop %v1695
    %v1824 = vtanh.pop %v1696
    %v1825 = vtanh.pop %v1697
    %v1826 = vtanh.pop %v1698
    %v1827 = vtanh.pop %v1699
    %v1828 = vtanh.pop %v1700
    %v1829 = vtanh.pop %v1701
    %v1830 = vtanh.pop %v1702
    %v1831 = vtanh.pop %v1703
    %v1832 = vtanh.pop %v1704
    %v1833 = vtanh.pop %v1705
    %v1834 = vtanh.pop %v1706
    %v1835 = vtanh.pop %v1707
    %v1836 = vtanh.pop %v1708
    %v1837 = vtanh.pop %v1709
    %v1838 = vtanh.pop %v1710
    %v1839 = vtanh.pop %v1711
    %v1840 = vtanh.pop %v1712
    %v1841 = vtanh.pop %v1713
    %v1842 = vtanh.pop %v1714
    %v1843 = vtanh.pop %v1715
    %v1844 = vtanh.pop %v1716
    %v1845 = vtanh.pop %v1717
    %v1846 = vtanh.pop %v1718
    %v1847 = vtanh.pop %v1719
    %v1848 = vtanh.pop %v1720
    %v1849 = vtanh.pop %v1721
    %v1850 = vtanh.pop %v1722
    %v1851 = vtanh.pop %v1723
    %v1852 = vtanh.pop %v1724
    %v1853 = vtanh.pop %v1725
    %v1854 = vtanh.pop %v1726
    %v1855 = vtanh.pop %v1727
    %v1856 = vtanh.pop %v1728
    %v1857 = vtanh.pop %v1729
    %v1858 = vtanh.pop %v1730
    %v1859 = vtanh.pop %v1731
    %v1860 = vtanh.pop %v1732
    %v1861 = vtanh.pop %v1733
    %v1862 = vtanh.pop %v1734
    %v1863 = vtanh.pop %v1735
    %v1864 = vtanh.pop %v1736
    %v1865 = vtanh.pop %v1737
    %v1866 = vtanh.pop %v1738
    %v1867 = vtanh.pop %v1739
    %v1868 = vtanh.pop %v1740
    %v1869 = vtanh.pop %v1741
    %v1870 = vtanh.pop %v1742
    %v1871 = vtanh.pop %v1743
    %v1872 = vtanh.pop %v1744
    %v1873 = vtanh.pop %v1745
    %v1874 = vtanh.pop %v1746
    %v1875 = vtanh.pop %v1747
    %v1876 = vtanh.pop %v1748
    %v1877 = vtanh.pop %v1749
    %v1878 = vtanh.pop %v1750
    %v1879 = vtanh.pop %v1751
    %v1880 = vtanh.pop %v1752
    %v1881 = vtanh.pop %v1753
    %v1882 = vtanh.pop %v1754
    %v1883 = vld [vmem:[%s8] sm:$0x1]
    %v1885 = vlaneseq
    %v1886 = vshrl.u32 %v1885, 7
    %v1887 = vsub.s32 0, %v1886
    %v1888 = vrot.slane %v1883, %v1887
    %v1890 = vmul.f32 %v1755, %v1888
    %v1891 = vmul.f32 %v1756, %v1888
    %v1892 = vmul.f32 %v1757, %v1888
    %v1893 = vmul.f32 %v1758, %v1888
    %v1894 = vmul.f32 %v1759, %v1888
    %v1895 = vmul.f32 %v1760, %v1888
    %v1896 = vmul.f32 %v1761, %v1888
    %v1897 = vmul.f32 %v1762, %v1888
    %v1898 = vmul.f32 %v1763, %v1888
    %v1899 = vmul.f32 %v1764, %v1888
    %v1900 = vmul.f32 %v1765, %v1888
    %v1901 = vmul.f32 %v1766, %v1888
    %v1902 = vmul.f32 %v1767, %v1888
    %v1903 = vmul.f32 %v1768, %v1888
    %v1904 = vmul.f32 %v1769, %v1888
    %v1905 = vmul.f32 %v1770, %v1888
    %v1906 = vmul.f32 %v1771, %v1888
    %v1907 = vmul.f32 %v1772, %v1888
    %v1908 = vmul.f32 %v1773, %v1888
    %v1909 = vmul.f32 %v1774, %v1888
    %v1910 = vmul.f32 %v1775, %v1888
    %v1911 = vmul.f32 %v1776, %v1888
    %v1912 = vmul.f32 %v1777, %v1888
    %v1913 = vmul.f32 %v1778, %v1888
    %v1914 = vmul.f32 %v1779, %v1888
    %v1915 = vmul.f32 %v1780, %v1888
    %v1916 = vmul.f32 %v1781, %v1888
    %v1917 = vmul.f32 %v1782, %v1888
    %v1918 = vmul.f32 %v1783, %v1888
    %v1919 = vmul.f32 %v1784, %v1888
    %v1920 = vmul.f32 %v1785, %v1888
    %v1921 = vmul.f32 %v1786, %v1888
    %v1922 = vmul.f32 %v1787, %v1888
    %v1923 = vmul.f32 %v1788, %v1888
    %v1924 = vmul.f32 %v1789, %v1888
    %v1925 = vmul.f32 %v1790, %v1888
    %v1926 = vmul.f32 %v1791, %v1888
    %v1927 = vmul.f32 %v1792, %v1888
    %v1928 = vmul.f32 %v1793, %v1888
    %v1929 = vmul.f32 %v1794, %v1888
    %v1930 = vmul.f32 %v1795, %v1888
    %v1931 = vmul.f32 %v1796, %v1888
    %v1932 = vmul.f32 %v1797, %v1888
    %v1933 = vmul.f32 %v1798, %v1888
    %v1934 = vmul.f32 %v1799, %v1888
    %v1935 = vmul.f32 %v1800, %v1888
    %v1936 = vmul.f32 %v1801, %v1888
    %v1937 = vmul.f32 %v1802, %v1888
    %v1938 = vmul.f32 %v1803, %v1888
    %v1939 = vmul.f32 %v1804, %v1888
    %v1940 = vmul.f32 %v1805, %v1888
    %v1941 = vmul.f32 %v1806, %v1888
    %v1942 = vmul.f32 %v1807, %v1888
    %v1943 = vmul.f32 %v1808, %v1888
    %v1944 = vmul.f32 %v1809, %v1888
    %v1945 = vmul.f32 %v1810, %v1888
    %v1946 = vmul.f32 %v1811, %v1888
    %v1947 = vmul.f32 %v1812, %v1888
    %v1948 = vmul.f32 %v1813, %v1888
    %v1949 = vmul.f32 %v1814, %v1888
    %v1950 = vmul.f32 %v1815, %v1888
    %v1951 = vmul.f32 %v1816, %v1888
    %v1952 = vmul.f32 %v1817, %v1888
    %v1953 = vmul.f32 %v1818, %v1888
    %v1954 = vmul.f32 %v1819, %v1888
    %v1955 = vmul.f32 %v1820, %v1888
    %v1956 = vmul.f32 %v1821, %v1888
    %v1957 = vmul.f32 %v1822, %v1888
    %v1958 = vmul.f32 %v1823, %v1888
    %v1959 = vmul.f32 %v1824, %v1888
    %v1960 = vmul.f32 %v1825, %v1888
    %v1961 = vmul.f32 %v1826, %v1888
    %v1962 = vmul.f32 %v1827, %v1888
    %v1963 = vmul.f32 %v1828, %v1888
    %v1964 = vmul.f32 %v1829, %v1888
    %v1965 = vmul.f32 %v1830, %v1888
    %v1966 = vmul.f32 %v1831, %v1888
    %v1967 = vmul.f32 %v1832, %v1888
    %v1968 = vmul.f32 %v1833, %v1888
    %v1969 = vmul.f32 %v1834, %v1888
    %v1970 = vmul.f32 %v1835, %v1888
    %v1971 = vmul.f32 %v1836, %v1888
    %v1972 = vmul.f32 %v1837, %v1888
    %v1973 = vmul.f32 %v1838, %v1888
    %v1974 = vmul.f32 %v1839, %v1888
    %v1975 = vmul.f32 %v1840, %v1888
    %v1976 = vmul.f32 %v1841, %v1888
    %v1977 = vmul.f32 %v1842, %v1888
    %v1978 = vmul.f32 %v1843, %v1888
    %v1979 = vmul.f32 %v1844, %v1888
    %v1980 = vmul.f32 %v1845, %v1888
    %v1981 = vmul.f32 %v1846, %v1888
    %v1982 = vmul.f32 %v1847, %v1888
    %v1983 = vmul.f32 %v1848, %v1888
    %v1984 = vmul.f32 %v1849, %v1888
    %v1985 = vmul.f32 %v1850, %v1888
    %v1986 = vmul.f32 %v1851, %v1888
    %v1987 = vmul.f32 %v1852, %v1888
    %v1988 = vmul.f32 %v1853, %v1888
    %v1989 = vmul.f32 %v1854, %v1888
    %v1990 = vmul.f32 %v1855, %v1888
    %v1991 = vmul.f32 %v1856, %v1888
    %v1992 = vmul.f32 %v1857, %v1888
    %v1993 = vmul.f32 %v1858, %v1888
    %v1994 = vmul.f32 %v1859, %v1888
    %v1995 = vmul.f32 %v1860, %v1888
    %v1996 = vmul.f32 %v1861, %v1888
    %v1997 = vmul.f32 %v1862, %v1888
    %v1998 = vmul.f32 %v1863, %v1888
    %v1999 = vmul.f32 %v1864, %v1888
    %v2000 = vmul.f32 %v1865, %v1888
    %v2001 = vmul.f32 %v1866, %v1888
    %v2002 = vmul.f32 %v1867, %v1888
    %v2003 = vmul.f32 %v1868, %v1888
    %v2004 = vmul.f32 %v1869, %v1888
    %v2005 = vmul.f32 %v1870, %v1888
    %v2006 = vmul.f32 %v1871, %v1888
    %v2007 = vmul.f32 %v1872, %v1888
    %v2008 = vmul.f32 %v1873, %v1888
    %v2009 = vmul.f32 %v1874, %v1888
    %v2010 = vmul.f32 %v1875, %v1888
    %v2011 = vmul.f32 %v1876, %v1888
    %v2012 = vmul.f32 %v1877, %v1888
    %v2013 = vmul.f32 %v1878, %v1888
    %v2014 = vmul.f32 %v1879, %v1888
    %v2015 = vmul.f32 %v1880, %v1888
    %v2016 = vmul.f32 %v1881, %v1888
    %v2017 = vmul.f32 %v1882, %v1888
    %v2018 = vsel %vm235, %v1890, 0.0
    %2019 = vadd.xlane.f32.xlu0 %v2018
    %v2020 = vpop.xlane.xlu0 %2019
    %v2021 = vsel %vm235, %v1891, 0.0
    %2022 = vadd.xlane.f32.xlu0 %v2021
    %v2023 = vpop.xlane.xlu0 %2022
    %v2024 = vsel %vm235, %v1892, 0.0
    %2025 = vadd.xlane.f32.xlu0 %v2024
    %v2026 = vpop.xlane.xlu0 %2025
    %v2027 = vsel %vm235, %v1893, 0.0
    %2028 = vadd.xlane.f32.xlu0 %v2027
    %v2029 = vpop.xlane.xlu0 %2028
    %v2030 = vsel %vm235, %v1894, 0.0
    %2031 = vadd.xlane.f32.xlu0 %v2030
    %v2032 = vpop.xlane.xlu0 %2031
    %v2033 = vsel %vm235, %v1895, 0.0
    %2034 = vadd.xlane.f32.xlu0 %v2033
    %v2035 = vpop.xlane.xlu0 %2034
    %v2036 = vsel %vm235, %v1896, 0.0
    %2037 = vadd.xlane.f32.xlu0 %v2036
    %v2038 = vpop.xlane.xlu0 %2037
    %v2039 = vsel %vm235, %v1897, 0.0
    %2040 = vadd.xlane.f32.xlu0 %v2039
    %v2041 = vpop.xlane.xlu0 %2040
    %v2042 = vsel %vm235, %v1898, 0.0
    %2043 = vadd.xlane.f32.xlu0 %v2042
    %v2044 = vpop.xlane.xlu0 %2043
    %v2045 = vsel %vm235, %v1899, 0.0
    %2046 = vadd.xlane.f32.xlu0 %v2045
    %v2047 = vpop.xlane.xlu0 %2046
    %v2048 = vsel %vm235, %v1900, 0.0
    %2049 = vadd.xlane.f32.xlu0 %v2048
    %v2050 = vpop.xlane.xlu0 %2049
    %v2051 = vsel %vm235, %v1901, 0.0
    %2052 = vadd.xlane.f32.xlu0 %v2051
    %v2053 = vpop.xlane.xlu0 %2052
    %v2054 = vsel %vm235, %v1902, 0.0
    %2055 = vadd.xlane.f32.xlu0 %v2054
    %v2056 = vpop.xlane.xlu0 %2055
    %v2057 = vsel %vm235, %v1903, 0.0
    %2058 = vadd.xlane.f32.xlu0 %v2057
    %v2059 = vpop.xlane.xlu0 %2058
    %v2060 = vsel %vm235, %v1904, 0.0
    %2061 = vadd.xlane.f32.xlu0 %v2060
    %v2062 = vpop.xlane.xlu0 %2061
    %v2063 = vsel %vm235, %v1905, 0.0
    %2064 = vadd.xlane.f32.xlu0 %v2063
    %v2065 = vpop.xlane.xlu0 %2064
    %v2066 = vsel %vm235, %v1906, 0.0
    %2067 = vadd.xlane.f32.xlu0 %v2066
    %v2068 = vpop.xlane.xlu0 %2067
    %v2069 = vsel %vm235, %v1907, 0.0
    %2070 = vadd.xlane.f32.xlu0 %v2069
    %v2071 = vpop.xlane.xlu0 %2070
    %v2072 = vsel %vm235, %v1908, 0.0
    %2073 = vadd.xlane.f32.xlu0 %v2072
    %v2074 = vpop.xlane.xlu0 %2073
    %v2075 = vsel %vm235, %v1909, 0.0
    %2076 = vadd.xlane.f32.xlu0 %v2075
    %v2077 = vpop.xlane.xlu0 %2076
    %v2078 = vsel %vm235, %v1910, 0.0
    %2079 = vadd.xlane.f32.xlu0 %v2078
    %v2080 = vpop.xlane.xlu0 %2079
    %v2081 = vsel %vm235, %v1911, 0.0
    %2082 = vadd.xlane.f32.xlu0 %v2081
    %v2083 = vpop.xlane.xlu0 %2082
    %v2084 = vsel %vm235, %v1912, 0.0
    %2085 = vadd.xlane.f32.xlu0 %v2084
    %v2086 = vpop.xlane.xlu0 %2085
    %v2087 = vsel %vm235, %v1913, 0.0
    %2088 = vadd.xlane.f32.xlu0 %v2087
    %v2089 = vpop.xlane.xlu0 %2088
    %v2090 = vsel %vm235, %v1914, 0.0
    %2091 = vadd.xlane.f32.xlu0 %v2090
    %v2092 = vpop.xlane.xlu0 %2091
    %v2093 = vsel %vm235, %v1915, 0.0
    %2094 = vadd.xlane.f32.xlu0 %v2093
    %v2095 = vpop.xlane.xlu0 %2094
    %v2096 = vsel %vm235, %v1916, 0.0
    %2097 = vadd.xlane.f32.xlu0 %v2096
    %v2098 = vpop.xlane.xlu0 %2097
    %v2099 = vsel %vm235, %v1917, 0.0
    %2100 = vadd.xlane.f32.xlu0 %v2099
    %v2101 = vpop.xlane.xlu0 %2100
    %v2102 = vsel %vm235, %v1918, 0.0
    %2103 = vadd.xlane.f32.xlu0 %v2102
    %v2104 = vpop.xlane.xlu0 %2103
    %v2105 = vsel %vm235, %v1919, 0.0
    %2106 = vadd.xlane.f32.xlu0 %v2105
    %v2107 = vpop.xlane.xlu0 %2106
    %v2108 = vsel %vm235, %v1920, 0.0
    %2109 = vadd.xlane.f32.xlu0 %v2108
    %v2110 = vpop.xlane.xlu0 %2109
    %v2111 = vsel %vm235, %v1921, 0.0
    %2112 = vadd.xlane.f32.xlu0 %v2111
    %v2113 = vpop.xlane.xlu0 %2112
    %v2114 = vsel %vm235, %v1922, 0.0
    %2115 = vadd.xlane.f32.xlu0 %v2114
    %v2116 = vpop.xlane.xlu0 %2115
    %v2117 = vsel %vm235, %v1923, 0.0
    %2118 = vadd.xlane.f32.xlu0 %v2117
    %v2119 = vpop.xlane.xlu0 %2118
    %v2120 = vsel %vm235, %v1924, 0.0
    %2121 = vadd.xlane.f32.xlu0 %v2120
    %v2122 = vpop.xlane.xlu0 %2121
    %v2123 = vsel %vm235, %v1925, 0.0
    %2124 = vadd.xlane.f32.xlu0 %v2123
    %v2125 = vpop.xlane.xlu0 %2124
    %v2126 = vsel %vm235, %v1926, 0.0
    %2127 = vadd.xlane.f32.xlu0 %v2126
    %v2128 = vpop.xlane.xlu0 %2127
    %v2129 = vsel %vm235, %v1927, 0.0
    %2130 = vadd.xlane.f32.xlu0 %v2129
    %v2131 = vpop.xlane.xlu0 %2130
    %v2132 = vsel %vm235, %v1928, 0.0
    %2133 = vadd.xlane.f32.xlu0 %v2132
    %v2134 = vpop.xlane.xlu0 %2133
    %v2135 = vsel %vm235, %v1929, 0.0
    %2136 = vadd.xlane.f32.xlu0 %v2135
    %v2137 = vpop.xlane.xlu0 %2136
    %v2138 = vsel %vm235, %v1930, 0.0
    %2139 = vadd.xlane.f32.xlu0 %v2138
    %v2140 = vpop.xlane.xlu0 %2139
    %v2141 = vsel %vm235, %v1931, 0.0
    %2142 = vadd.xlane.f32.xlu0 %v2141
    %v2143 = vpop.xlane.xlu0 %2142
    %v2144 = vsel %vm235, %v1932, 0.0
    %2145 = vadd.xlane.f32.xlu0 %v2144
    %v2146 = vpop.xlane.xlu0 %2145
    %v2147 = vsel %vm235, %v1933, 0.0
    %2148 = vadd.xlane.f32.xlu0 %v2147
    %v2149 = vpop.xlane.xlu0 %2148
    %v2150 = vsel %vm235, %v1934, 0.0
    %2151 = vadd.xlane.f32.xlu0 %v2150
    %v2152 = vpop.xlane.xlu0 %2151
    %v2153 = vsel %vm235, %v1935, 0.0
    %2154 = vadd.xlane.f32.xlu0 %v2153
    %v2155 = vpop.xlane.xlu0 %2154
    %v2156 = vsel %vm235, %v1936, 0.0
    %2157 = vadd.xlane.f32.xlu0 %v2156
    %v2158 = vpop.xlane.xlu0 %2157
    %v2159 = vsel %vm235, %v1937, 0.0
    %2160 = vadd.xlane.f32.xlu0 %v2159
    %v2161 = vpop.xlane.xlu0 %2160
    %v2162 = vsel %vm235, %v1938, 0.0
    %2163 = vadd.xlane.f32.xlu0 %v2162
    %v2164 = vpop.xlane.xlu0 %2163
    %v2165 = vsel %vm235, %v1939, 0.0
    %2166 = vadd.xlane.f32.xlu0 %v2165
    %v2167 = vpop.xlane.xlu0 %2166
    %v2168 = vsel %vm235, %v1940, 0.0
    %2169 = vadd.xlane.f32.xlu0 %v2168
    %v2170 = vpop.xlane.xlu0 %2169
    %v2171 = vsel %vm235, %v1941, 0.0
    %2172 = vadd.xlane.f32.xlu0 %v2171
    %v2173 = vpop.xlane.xlu0 %2172
    %v2174 = vsel %vm235, %v1942, 0.0
    %2175 = vadd.xlane.f32.xlu0 %v2174
    %v2176 = vpop.xlane.xlu0 %2175
    %v2177 = vsel %vm235, %v1943, 0.0
    %2178 = vadd.xlane.f32.xlu0 %v2177
    %v2179 = vpop.xlane.xlu0 %2178
    %v2180 = vsel %vm235, %v1944, 0.0
    %2181 = vadd.xlane.f32.xlu0 %v2180
    %v2182 = vpop.xlane.xlu0 %2181
    %v2183 = vsel %vm235, %v1945, 0.0
    %2184 = vadd.xlane.f32.xlu0 %v2183
    %v2185 = vpop.xlane.xlu0 %2184
    %v2186 = vsel %vm235, %v1946, 0.0
    %2187 = vadd.xlane.f32.xlu0 %v2186
    %v2188 = vpop.xlane.xlu0 %2187
    %v2189 = vsel %vm235, %v1947, 0.0
    %2190 = vadd.xlane.f32.xlu0 %v2189
    %v2191 = vpop.xlane.xlu0 %2190
    %v2192 = vsel %vm235, %v1948, 0.0
    %2193 = vadd.xlane.f32.xlu0 %v2192
    %v2194 = vpop.xlane.xlu0 %2193
    %v2195 = vsel %vm235, %v1949, 0.0
    %2196 = vadd.xlane.f32.xlu0 %v2195
    %v2197 = vpop.xlane.xlu0 %2196
    %v2198 = vsel %vm235, %v1950, 0.0
    %2199 = vadd.xlane.f32.xlu0 %v2198
    %v2200 = vpop.xlane.xlu0 %2199
    %v2201 = vsel %vm235, %v1951, 0.0
    %2202 = vadd.xlane.f32.xlu0 %v2201
    %v2203 = vpop.xlane.xlu0 %2202
    %v2204 = vsel %vm235, %v1952, 0.0
    %2205 = vadd.xlane.f32.xlu0 %v2204
    %v2206 = vpop.xlane.xlu0 %2205
    %v2207 = vsel %vm235, %v1953, 0.0
    %2208 = vadd.xlane.f32.xlu0 %v2207
    %v2209 = vpop.xlane.xlu0 %2208
    %v2210 = vsel %vm235, %v1954, 0.0
    %2211 = vadd.xlane.f32.xlu0 %v2210
    %v2212 = vpop.xlane.xlu0 %2211
    %v2213 = vsel %vm235, %v1955, 0.0
    %2214 = vadd.xlane.f32.xlu0 %v2213
    %v2215 = vpop.xlane.xlu0 %2214
    %v2216 = vsel %vm235, %v1956, 0.0
    %2217 = vadd.xlane.f32.xlu0 %v2216
    %v2218 = vpop.xlane.xlu0 %2217
    %v2219 = vsel %vm235, %v1957, 0.0
    %2220 = vadd.xlane.f32.xlu0 %v2219
    %v2221 = vpop.xlane.xlu0 %2220
    %v2222 = vsel %vm235, %v1958, 0.0
    %2223 = vadd.xlane.f32.xlu0 %v2222
    %v2224 = vpop.xlane.xlu0 %2223
    %v2225 = vsel %vm235, %v1959, 0.0
    %2226 = vadd.xlane.f32.xlu0 %v2225
    %v2227 = vpop.xlane.xlu0 %2226
    %v2228 = vsel %vm235, %v1960, 0.0
    %2229 = vadd.xlane.f32.xlu0 %v2228
    %v2230 = vpop.xlane.xlu0 %2229
    %v2231 = vsel %vm235, %v1961, 0.0
    %2232 = vadd.xlane.f32.xlu0 %v2231
    %v2233 = vpop.xlane.xlu0 %2232
    %v2234 = vsel %vm235, %v1962, 0.0
    %2235 = vadd.xlane.f32.xlu0 %v2234
    %v2236 = vpop.xlane.xlu0 %2235
    %v2237 = vsel %vm235, %v1963, 0.0
    %2238 = vadd.xlane.f32.xlu0 %v2237
    %v2239 = vpop.xlane.xlu0 %2238
    %v2240 = vsel %vm235, %v1964, 0.0
    %2241 = vadd.xlane.f32.xlu0 %v2240
    %v2242 = vpop.xlane.xlu0 %2241
    %v2243 = vsel %vm235, %v1965, 0.0
    %2244 = vadd.xlane.f32.xlu0 %v2243
    %v2245 = vpop.xlane.xlu0 %2244
    %v2246 = vsel %vm235, %v1966, 0.0
    %2247 = vadd.xlane.f32.xlu0 %v2246
    %v2248 = vpop.xlane.xlu0 %2247
    %v2249 = vsel %vm235, %v1967, 0.0
    %2250 = vadd.xlane.f32.xlu0 %v2249
    %v2251 = vpop.xlane.xlu0 %2250
    %v2252 = vsel %vm235, %v1968, 0.0
    %2253 = vadd.xlane.f32.xlu0 %v2252
    %v2254 = vpop.xlane.xlu0 %2253
    %v2255 = vsel %vm235, %v1969, 0.0
    %2256 = vadd.xlane.f32.xlu0 %v2255
    %v2257 = vpop.xlane.xlu0 %2256
    %v2258 = vsel %vm235, %v1970, 0.0
    %2259 = vadd.xlane.f32.xlu0 %v2258
    %v2260 = vpop.xlane.xlu0 %2259
    %v2261 = vsel %vm235, %v1971, 0.0
    %2262 = vadd.xlane.f32.xlu0 %v2261
    %v2263 = vpop.xlane.xlu0 %2262
    %v2264 = vsel %vm235, %v1972, 0.0
    %2265 = vadd.xlane.f32.xlu0 %v2264
    %v2266 = vpop.xlane.xlu0 %2265
    %v2267 = vsel %vm235, %v1973, 0.0
    %2268 = vadd.xlane.f32.xlu0 %v2267
    %v2269 = vpop.xlane.xlu0 %2268
    %v2270 = vsel %vm235, %v1974, 0.0
    %2271 = vadd.xlane.f32.xlu0 %v2270
    %v2272 = vpop.xlane.xlu0 %2271
    %v2273 = vsel %vm235, %v1975, 0.0
    %2274 = vadd.xlane.f32.xlu0 %v2273
    %v2275 = vpop.xlane.xlu0 %2274
    %v2276 = vsel %vm235, %v1976, 0.0
    %2277 = vadd.xlane.f32.xlu0 %v2276
    %v2278 = vpop.xlane.xlu0 %2277
    %v2279 = vsel %vm235, %v1977, 0.0
    %2280 = vadd.xlane.f32.xlu0 %v2279
    %v2281 = vpop.xlane.xlu0 %2280
    %v2282 = vsel %vm235, %v1978, 0.0
    %2283 = vadd.xlane.f32.xlu0 %v2282
    %v2284 = vpop.xlane.xlu0 %2283
    %v2285 = vsel %vm235, %v1979, 0.0
    %2286 = vadd.xlane.f32.xlu0 %v2285
    %v2287 = vpop.xlane.xlu0 %2286
    %v2288 = vsel %vm235, %v1980, 0.0
    %2289 = vadd.xlane.f32.xlu0 %v2288
    %v2290 = vpop.xlane.xlu0 %2289
    %v2291 = vsel %vm235, %v1981, 0.0
    %2292 = vadd.xlane.f32.xlu0 %v2291
    %v2293 = vpop.xlane.xlu0 %2292
    %v2294 = vsel %vm235, %v1982, 0.0
    %2295 = vadd.xlane.f32.xlu0 %v2294
    %v2296 = vpop.xlane.xlu0 %2295
    %v2297 = vsel %vm235, %v1983, 0.0
    %2298 = vadd.xlane.f32.xlu0 %v2297
    %v2299 = vpop.xlane.xlu0 %2298
    %v2300 = vsel %vm235, %v1984, 0.0
    %2301 = vadd.xlane.f32.xlu0 %v2300
    %v2302 = vpop.xlane.xlu0 %2301
    %v2303 = vsel %vm235, %v1985, 0.0
    %2304 = vadd.xlane.f32.xlu0 %v2303
    %v2305 = vpop.xlane.xlu0 %2304
    %v2306 = vsel %vm235, %v1986, 0.0
    %2307 = vadd.xlane.f32.xlu0 %v2306
    %v2308 = vpop.xlane.xlu0 %2307
    %v2309 = vsel %vm235, %v1987, 0.0
    %2310 = vadd.xlane.f32.xlu0 %v2309
    %v2311 = vpop.xlane.xlu0 %2310
    %v2312 = vsel %vm235, %v1988, 0.0
    %2313 = vadd.xlane.f32.xlu0 %v2312
    %v2314 = vpop.xlane.xlu0 %2313
    %v2315 = vsel %vm235, %v1989, 0.0
    %2316 = vadd.xlane.f32.xlu0 %v2315
    %v2317 = vpop.xlane.xlu0 %2316
    %v2318 = vsel %vm235, %v1990, 0.0
    %2319 = vadd.xlane.f32.xlu0 %v2318
    %v2320 = vpop.xlane.xlu0 %2319
    %v2321 = vsel %vm235, %v1991, 0.0
    %2322 = vadd.xlane.f32.xlu0 %v2321
    %v2323 = vpop.xlane.xlu0 %2322
    %v2324 = vsel %vm235, %v1992, 0.0
    %2325 = vadd.xlane.f32.xlu0 %v2324
    %v2326 = vpop.xlane.xlu0 %2325
    %v2327 = vsel %vm235, %v1993, 0.0
    %2328 = vadd.xlane.f32.xlu0 %v2327
    %v2329 = vpop.xlane.xlu0 %2328
    %v2330 = vsel %vm235, %v1994, 0.0
    %2331 = vadd.xlane.f32.xlu0 %v2330
    %v2332 = vpop.xlane.xlu0 %2331
    %v2333 = vsel %vm235, %v1995, 0.0
    %2334 = vadd.xlane.f32.xlu0 %v2333
    %v2335 = vpop.xlane.xlu0 %2334
    %v2336 = vsel %vm235, %v1996, 0.0
    %2337 = vadd.xlane.f32.xlu0 %v2336
    %v2338 = vpop.xlane.xlu0 %2337
    %v2339 = vsel %vm235, %v1997, 0.0
    %2340 = vadd.xlane.f32.xlu0 %v2339
    %v2341 = vpop.xlane.xlu0 %2340
    %v2342 = vsel %vm235, %v1998, 0.0
    %2343 = vadd.xlane.f32.xlu0 %v2342
    %v2344 = vpop.xlane.xlu0 %2343
    %v2345 = vsel %vm235, %v1999, 0.0
    %2346 = vadd.xlane.f32.xlu0 %v2345
    %v2347 = vpop.xlane.xlu0 %2346
    %v2348 = vsel %vm235, %v2000, 0.0
    %2349 = vadd.xlane.f32.xlu0 %v2348
    %v2350 = vpop.xlane.xlu0 %2349
    %v2351 = vsel %vm235, %v2001, 0.0
    %2352 = vadd.xlane.f32.xlu0 %v2351
    %v2353 = vpop.xlane.xlu0 %2352
    %v2354 = vsel %vm235, %v2002, 0.0
    %2355 = vadd.xlane.f32.xlu0 %v2354
    %v2356 = vpop.xlane.xlu0 %2355
    %v2357 = vsel %vm235, %v2003, 0.0
    %2358 = vadd.xlane.f32.xlu0 %v2357
    %v2359 = vpop.xlane.xlu0 %2358
    %v2360 = vsel %vm235, %v2004, 0.0
    %2361 = vadd.xlane.f32.xlu0 %v2360
    %v2362 = vpop.xlane.xlu0 %2361
    %v2363 = vsel %vm235, %v2005, 0.0
    %2364 = vadd.xlane.f32.xlu0 %v2363
    %v2365 = vpop.xlane.xlu0 %2364
    %v2366 = vsel %vm235, %v2006, 0.0
    %2367 = vadd.xlane.f32.xlu0 %v2366
    %v2368 = vpop.xlane.xlu0 %2367
    %v2369 = vsel %vm235, %v2007, 0.0
    %2370 = vadd.xlane.f32.xlu0 %v2369
    %v2371 = vpop.xlane.xlu0 %2370
    %v2372 = vsel %vm235, %v2008, 0.0
    %2373 = vadd.xlane.f32.xlu0 %v2372
    %v2374 = vpop.xlane.xlu0 %2373
    %v2375 = vsel %vm235, %v2009, 0.0
    %2376 = vadd.xlane.f32.xlu0 %v2375
    %v2377 = vpop.xlane.xlu0 %2376
    %v2378 = vsel %vm235, %v2010, 0.0
    %2379 = vadd.xlane.f32.xlu0 %v2378
    %v2380 = vpop.xlane.xlu0 %2379
    %v2381 = vsel %vm235, %v2011, 0.0
    %2382 = vadd.xlane.f32.xlu0 %v2381
    %v2383 = vpop.xlane.xlu0 %2382
    %v2384 = vsel %vm235, %v2012, 0.0
    %2385 = vadd.xlane.f32.xlu0 %v2384
    %v2386 = vpop.xlane.xlu0 %2385
    %v2387 = vsel %vm235, %v2013, 0.0
    %2388 = vadd.xlane.f32.xlu0 %v2387
    %v2389 = vpop.xlane.xlu0 %2388
    %v2390 = vsel %vm235, %v2014, 0.0
    %2391 = vadd.xlane.f32.xlu0 %v2390
    %v2392 = vpop.xlane.xlu0 %2391
    %v2393 = vsel %vm235, %v2015, 0.0
    %2394 = vadd.xlane.f32.xlu0 %v2393
    %v2395 = vpop.xlane.xlu0 %2394
    %v2396 = vsel %vm235, %v2016, 0.0
    %2397 = vadd.xlane.f32.xlu0 %v2396
    %v2398 = vpop.xlane.xlu0 %2397
    %v2399 = vsel %vm235, %v2017, 0.0
    %2400 = vadd.xlane.f32.xlu0 %v2399
    %v2401 = vpop.xlane.xlu0 %2400
    %v2402 = vlaneseq
    %v2403 = vand.u32 %v2402, 127
    %vm2404 = vcmp.lt.s32.totalorder %v2403, 8
    %v2533 = vlaneseq
    %v2534 = vshrl.u32 %v2533, 7
    %v2535 = vsub.s32 %v2403, %v2534
    %v2536 = vrot.slane %v2020, %v2535
    %v2537 = vadd.s32 %v2403, 4294967288
    %v2538 = vlaneseq
    %v2539 = vshrl.u32 %v2538, 7
    %v2540 = vsub.s32 %v2537, %v2539
    %v2541 = vrot.slane %v2023, %v2540
    %vm2542 = vcmask 130112
    %v2543 = vsel %vm2542, %v2541, %v2536
    %v2544 = vadd.s32 %v2403, 4294967280
    %v2545 = vlaneseq
    %v2546 = vshrl.u32 %v2545, 7
    %v2547 = vsub.s32 %v2544, %v2546
    %v2548 = vrot.slane %v2026, %v2547
    %vm2549 = vcmask 195712
    %v2550 = vsel %vm2549, %v2548, %v2543
    %v2551 = vadd.s32 %v2403, 4294967272
    %v2552 = vlaneseq
    %v2553 = vshrl.u32 %v2552, 7
    %v2554 = vsub.s32 %v2551, %v2553
    %v2555 = vrot.slane %v2029, %v2554
    %vm2556 = vcmask 261312
    %v2557 = vsel %vm2556, %v2555, %v2550
    %v2558 = vadd.s32 %v2403, 4294967264
    %v2559 = vlaneseq
    %v2560 = vshrl.u32 %v2559, 7
    %v2561 = vsub.s32 %v2558, %v2560
    %v2562 = vrot.slane %v2032, %v2561
    %vm2563 = vcmask 326912
    %v2564 = vsel %vm2563, %v2562, %v2557
    %v2565 = vadd.s32 %v2403, 4294967256
    %v2566 = vlaneseq
    %v2567 = vshrl.u32 %v2566, 7
    %v2568 = vsub.s32 %v2565, %v2567
    %v2569 = vrot.slane %v2035, %v2568
    %vm2570 = vcmask 392512
    %v2571 = vsel %vm2570, %v2569, %v2564
    %v2572 = vadd.s32 %v2403, 4294967248
    %v2573 = vlaneseq
    %v2574 = vshrl.u32 %v2573, 7
    %v2575 = vsub.s32 %v2572, %v2574
    %v2576 = vrot.slane %v2038, %v2575
    %vm2577 = vcmask 458112
    %v2578 = vsel %vm2577, %v2576, %v2571
    %v2579 = vadd.s32 %v2403, 4294967240
    %v2580 = vlaneseq
    %v2581 = vshrl.u32 %v2580, 7
    %v2582 = vsub.s32 %v2579, %v2581
    %v2583 = vrot.slane %v2041, %v2582
    %vm2584 = vcmask 523712
    %v2585 = vsel %vm2584, %v2583, %v2578
    %v2586 = vadd.s32 %v2403, 4294967232
    %v2587 = vlaneseq
    %v2588 = vshrl.u32 %v2587, 7
    %v2589 = vsub.s32 %v2586, %v2588
    %v2590 = vrot.slane %v2044, %v2589
    %vm2591 = vcmask 589312
    %v2592 = vsel %vm2591, %v2590, %v2585
    %v2593 = vadd.s32 %v2403, 4294967224
    %v2594 = vlaneseq
    %v2595 = vshrl.u32 %v2594, 7
    %v2596 = vsub.s32 %v2593, %v2595
    %v2597 = vrot.slane %v2047, %v2596
    %vm2598 = vcmask 654912
    %v2599 = vsel %vm2598, %v2597, %v2592
    %v2600 = vadd.s32 %v2403, 4294967216
    %v2601 = vlaneseq
    %v2602 = vshrl.u32 %v2601, 7
    %v2603 = vsub.s32 %v2600, %v2602
    %v2604 = vrot.slane %v2050, %v2603
    %vm2605 = vcmask 720512
    %v2606 = vsel %vm2605, %v2604, %v2599
    %v2607 = vadd.s32 %v2403, 4294967208
    %v2608 = vlaneseq
    %v2609 = vshrl.u32 %v2608, 7
    %v2610 = vsub.s32 %v2607, %v2609
    %v2611 = vrot.slane %v2053, %v2610
    %vm2612 = vcmask 786112
    %v2613 = vsel %vm2612, %v2611, %v2606
    %v2614 = vadd.s32 %v2403, 4294967200
    %v2615 = vlaneseq
    %v2616 = vshrl.u32 %v2615, 7
    %v2617 = vsub.s32 %v2614, %v2616
    %v2618 = vrot.slane %v2056, %v2617
    %vm2619 = vcmask 851712
    %v2620 = vsel %vm2619, %v2618, %v2613
    %v2621 = vadd.s32 %v2403, 4294967192
    %v2622 = vlaneseq
    %v2623 = vshrl.u32 %v2622, 7
    %v2624 = vsub.s32 %v2621, %v2623
    %v2625 = vrot.slane %v2059, %v2624
    %vm2626 = vcmask 917312
    %v2627 = vsel %vm2626, %v2625, %v2620
    %v2628 = vadd.s32 %v2403, 4294967184
    %v2629 = vlaneseq
    %v2630 = vshrl.u32 %v2629, 7
    %v2631 = vsub.s32 %v2628, %v2630
    %v2632 = vrot.slane %v2062, %v2631
    %vm2633 = vcmask 982912
    %v2634 = vsel %vm2633, %v2632, %v2627
    %v2635 = vadd.s32 %v2403, 4294967176
    %v2636 = vlaneseq
    %v2637 = vshrl.u32 %v2636, 7
    %v2638 = vsub.s32 %v2635, %v2637
    %v2639 = vrot.slane %v2065, %v2638
    %vm2640 = vcmask 1048512
    %v2641 = vsel %vm2640, %v2639, %v2634
    %v2642 = vlaneseq
    %v2643 = vshrl.u32 %v2642, 7
    %v2644 = vsub.s32 %v2403, %v2643
    %v2645 = vrot.slane %v2068, %v2644
    %v2646 = vlaneseq
    %v2647 = vshrl.u32 %v2646, 7
    %v2648 = vsub.s32 %v2537, %v2647
    %v2649 = vrot.slane %v2071, %v2648
    %v2650 = vsel %vm2542, %v2649, %v2645
    %v2651 = vlaneseq
    %v2652 = vshrl.u32 %v2651, 7
    %v2653 = vsub.s32 %v2544, %v2652
    %v2654 = vrot.slane %v2074, %v2653
    %v2655 = vsel %vm2549, %v2654, %v2650
    %v2656 = vlaneseq
    %v2657 = vshrl.u32 %v2656, 7
    %v2658 = vsub.s32 %v2551, %v2657
    %v2659 = vrot.slane %v2077, %v2658
    %v2660 = vsel %vm2556, %v2659, %v2655
    %v2661 = vlaneseq
    %v2662 = vshrl.u32 %v2661, 7
    %v2663 = vsub.s32 %v2558, %v2662
    %v2664 = vrot.slane %v2080, %v2663
    %v2665 = vsel %vm2563, %v2664, %v2660
    %v2666 = vlaneseq
    %v2667 = vshrl.u32 %v2666, 7
    %v2668 = vsub.s32 %v2565, %v2667
    %v2669 = vrot.slane %v2083, %v2668
    %v2670 = vsel %vm2570, %v2669, %v2665
    %v2671 = vlaneseq
    %v2672 = vshrl.u32 %v2671, 7
    %v2673 = vsub.s32 %v2572, %v2672
    %v2674 = vrot.slane %v2086, %v2673
    %v2675 = vsel %vm2577, %v2674, %v2670
    %v2676 = vlaneseq
    %v2677 = vshrl.u32 %v2676, 7
    %v2678 = vsub.s32 %v2579, %v2677
    %v2679 = vrot.slane %v2089, %v2678
    %v2680 = vsel %vm2584, %v2679, %v2675
    %v2681 = vlaneseq
    %v2682 = vshrl.u32 %v2681, 7
    %v2683 = vsub.s32 %v2586, %v2682
    %v2684 = vrot.slane %v2092, %v2683
    %v2685 = vsel %vm2591, %v2684, %v2680
    %v2686 = vlaneseq
    %v2687 = vshrl.u32 %v2686, 7
    %v2688 = vsub.s32 %v2593, %v2687
    %v2689 = vrot.slane %v2095, %v2688
    %v2690 = vsel %vm2598, %v2689, %v2685
    %v2691 = vlaneseq
    %v2692 = vshrl.u32 %v2691, 7
    %v2693 = vsub.s32 %v2600, %v2692
    %v2694 = vrot.slane %v2098, %v2693
    %v2695 = vsel %vm2605, %v2694, %v2690
    %v2696 = vlaneseq
    %v2697 = vshrl.u32 %v2696, 7
    %v2698 = vsub.s32 %v2607, %v2697
    %v2699 = vrot.slane %v2101, %v2698
    %v2700 = vsel %vm2612, %v2699, %v2695
    %v2701 = vlaneseq
    %v2702 = vshrl.u32 %v2701, 7
    %v2703 = vsub.s32 %v2614, %v2702
    %v2704 = vrot.slane %v2104, %v2703
    %v2705 = vsel %vm2619, %v2704, %v2700
    %v2706 = vlaneseq
    %v2707 = vshrl.u32 %v2706, 7
    %v2708 = vsub.s32 %v2621, %v2707
    %v2709 = vrot.slane %v2107, %v2708
    %v2710 = vsel %vm2626, %v2709, %v2705
    %v2711 = vlaneseq
    %v2712 = vshrl.u32 %v2711, 7
    %v2713 = vsub.s32 %v2628, %v2712
    %v2714 = vrot.slane %v2110, %v2713
    %v2715 = vsel %vm2633, %v2714, %v2710
    %v2716 = vlaneseq
    %v2717 = vshrl.u32 %v2716, 7
    %v2718 = vsub.s32 %v2635, %v2717
    %v2719 = vrot.slane %v2113, %v2718
    %v2720 = vsel %vm2640, %v2719, %v2715
    %v2721 = vlaneseq
    %v2722 = vshrl.u32 %v2721, 7
    %v2723 = vsub.s32 %v2403, %v2722
    %v2724 = vrot.slane %v2116, %v2723
    %v2725 = vlaneseq
    %v2726 = vshrl.u32 %v2725, 7
    %v2727 = vsub.s32 %v2537, %v2726
    %v2728 = vrot.slane %v2119, %v2727
    %v2729 = vsel %vm2542, %v2728, %v2724
    %v2730 = vlaneseq
    %v2731 = vshrl.u32 %v2730, 7
    %v2732 = vsub.s32 %v2544, %v2731
    %v2733 = vrot.slane %v2122, %v2732
    %v2734 = vsel %vm2549, %v2733, %v2729
    %v2735 = vlaneseq
    %v2736 = vshrl.u32 %v2735, 7
    %v2737 = vsub.s32 %v2551, %v2736
    %v2738 = vrot.slane %v2125, %v2737
    %v2739 = vsel %vm2556, %v2738, %v2734
    %v2740 = vlaneseq
    %v2741 = vshrl.u32 %v2740, 7
    %v2742 = vsub.s32 %v2558, %v2741
    %v2743 = vrot.slane %v2128, %v2742
    %v2744 = vsel %vm2563, %v2743, %v2739
    %v2745 = vlaneseq
    %v2746 = vshrl.u32 %v2745, 7
    %v2747 = vsub.s32 %v2565, %v2746
    %v2748 = vrot.slane %v2131, %v2747
    %v2749 = vsel %vm2570, %v2748, %v2744
    %v2750 = vlaneseq
    %v2751 = vshrl.u32 %v2750, 7
    %v2752 = vsub.s32 %v2572, %v2751
    %v2753 = vrot.slane %v2134, %v2752
    %v2754 = vsel %vm2577, %v2753, %v2749
    %v2755 = vlaneseq
    %v2756 = vshrl.u32 %v2755, 7
    %v2757 = vsub.s32 %v2579, %v2756
    %v2758 = vrot.slane %v2137, %v2757
    %v2759 = vsel %vm2584, %v2758, %v2754
    %v2760 = vlaneseq
    %v2761 = vshrl.u32 %v2760, 7
    %v2762 = vsub.s32 %v2586, %v2761
    %v2763 = vrot.slane %v2140, %v2762
    %v2764 = vsel %vm2591, %v2763, %v2759
    %v2765 = vlaneseq
    %v2766 = vshrl.u32 %v2765, 7
    %v2767 = vsub.s32 %v2593, %v2766
    %v2768 = vrot.slane %v2143, %v2767
    %v2769 = vsel %vm2598, %v2768, %v2764
    %v2770 = vlaneseq
    %v2771 = vshrl.u32 %v2770, 7
    %v2772 = vsub.s32 %v2600, %v2771
    %v2773 = vrot.slane %v2146, %v2772
    %v2774 = vsel %vm2605, %v2773, %v2769
    %v2775 = vlaneseq
    %v2776 = vshrl.u32 %v2775, 7
    %v2777 = vsub.s32 %v2607, %v2776
    %v2778 = vrot.slane %v2149, %v2777
    %v2779 = vsel %vm2612, %v2778, %v2774
    %v2780 = vlaneseq
    %v2781 = vshrl.u32 %v2780, 7
    %v2782 = vsub.s32 %v2614, %v2781
    %v2783 = vrot.slane %v2152, %v2782
    %v2784 = vsel %vm2619, %v2783, %v2779
    %v2785 = vlaneseq
    %v2786 = vshrl.u32 %v2785, 7
    %v2787 = vsub.s32 %v2621, %v2786
    %v2788 = vrot.slane %v2155, %v2787
    %v2789 = vsel %vm2626, %v2788, %v2784
    %v2790 = vlaneseq
    %v2791 = vshrl.u32 %v2790, 7
    %v2792 = vsub.s32 %v2628, %v2791
    %v2793 = vrot.slane %v2158, %v2792
    %v2794 = vsel %vm2633, %v2793, %v2789
    %v2795 = vlaneseq
    %v2796 = vshrl.u32 %v2795, 7
    %v2797 = vsub.s32 %v2635, %v2796
    %v2798 = vrot.slane %v2161, %v2797
    %v2799 = vsel %vm2640, %v2798, %v2794
    %v2800 = vlaneseq
    %v2801 = vshrl.u32 %v2800, 7
    %v2802 = vsub.s32 %v2403, %v2801
    %v2803 = vrot.slane %v2164, %v2802
    %v2804 = vlaneseq
    %v2805 = vshrl.u32 %v2804, 7
    %v2806 = vsub.s32 %v2537, %v2805
    %v2807 = vrot.slane %v2167, %v2806
    %v2808 = vsel %vm2542, %v2807, %v2803
    %v2809 = vlaneseq
    %v2810 = vshrl.u32 %v2809, 7
    %v2811 = vsub.s32 %v2544, %v2810
    %v2812 = vrot.slane %v2170, %v2811
    %v2813 = vsel %vm2549, %v2812, %v2808
    %v2814 = vlaneseq
    %v2815 = vshrl.u32 %v2814, 7
    %v2816 = vsub.s32 %v2551, %v2815
    %v2817 = vrot.slane %v2173, %v2816
    %v2818 = vsel %vm2556, %v2817, %v2813
    %v2819 = vlaneseq
    %v2820 = vshrl.u32 %v2819, 7
    %v2821 = vsub.s32 %v2558, %v2820
    %v2822 = vrot.slane %v2176, %v2821
    %v2823 = vsel %vm2563, %v2822, %v2818
    %v2824 = vlaneseq
    %v2825 = vshrl.u32 %v2824, 7
    %v2826 = vsub.s32 %v2565, %v2825
    %v2827 = vrot.slane %v2179, %v2826
    %v2828 = vsel %vm2570, %v2827, %v2823
    %v2829 = vlaneseq
    %v2830 = vshrl.u32 %v2829, 7
    %v2831 = vsub.s32 %v2572, %v2830
    %v2832 = vrot.slane %v2182, %v2831
    %v2833 = vsel %vm2577, %v2832, %v2828
    %v2834 = vlaneseq
    %v2835 = vshrl.u32 %v2834, 7
    %v2836 = vsub.s32 %v2579, %v2835
    %v2837 = vrot.slane %v2185, %v2836
    %v2838 = vsel %vm2584, %v2837, %v2833
    %v2839 = vlaneseq
    %v2840 = vshrl.u32 %v2839, 7
    %v2841 = vsub.s32 %v2586, %v2840
    %v2842 = vrot.slane %v2188, %v2841
    %v2843 = vsel %vm2591, %v2842, %v2838
    %v2844 = vlaneseq
    %v2845 = vshrl.u32 %v2844, 7
    %v2846 = vsub.s32 %v2593, %v2845
    %v2847 = vrot.slane %v2191, %v2846
    %v2848 = vsel %vm2598, %v2847, %v2843
    %v2849 = vlaneseq
    %v2850 = vshrl.u32 %v2849, 7
    %v2851 = vsub.s32 %v2600, %v2850
    %v2852 = vrot.slane %v2194, %v2851
    %v2853 = vsel %vm2605, %v2852, %v2848
    %v2854 = vlaneseq
    %v2855 = vshrl.u32 %v2854, 7
    %v2856 = vsub.s32 %v2607, %v2855
    %v2857 = vrot.slane %v2197, %v2856
    %v2858 = vsel %vm2612, %v2857, %v2853
    %v2859 = vlaneseq
    %v2860 = vshrl.u32 %v2859, 7
    %v2861 = vsub.s32 %v2614, %v2860
    %v2862 = vrot.slane %v2200, %v2861
    %v2863 = vsel %vm2619, %v2862, %v2858
    %v2864 = vlaneseq
    %v2865 = vshrl.u32 %v2864, 7
    %v2866 = vsub.s32 %v2621, %v2865
    %v2867 = vrot.slane %v2203, %v2866
    %v2868 = vsel %vm2626, %v2867, %v2863
    %v2869 = vlaneseq
    %v2870 = vshrl.u32 %v2869, 7
    %v2871 = vsub.s32 %v2628, %v2870
    %v2872 = vrot.slane %v2206, %v2871
    %v2873 = vsel %vm2633, %v2872, %v2868
    %v2874 = vlaneseq
    %v2875 = vshrl.u32 %v2874, 7
    %v2876 = vsub.s32 %v2635, %v2875
    %v2877 = vrot.slane %v2209, %v2876
    %v2878 = vsel %vm2640, %v2877, %v2873
    %v2879 = vlaneseq
    %v2880 = vshrl.u32 %v2879, 7
    %v2881 = vsub.s32 %v2403, %v2880
    %v2882 = vrot.slane %v2212, %v2881
    %v2883 = vlaneseq
    %v2884 = vshrl.u32 %v2883, 7
    %v2885 = vsub.s32 %v2537, %v2884
    %v2886 = vrot.slane %v2215, %v2885
    %v2887 = vsel %vm2542, %v2886, %v2882
    %v2888 = vlaneseq
    %v2889 = vshrl.u32 %v2888, 7
    %v2890 = vsub.s32 %v2544, %v2889
    %v2891 = vrot.slane %v2218, %v2890
    %v2892 = vsel %vm2549, %v2891, %v2887
    %v2893 = vlaneseq
    %v2894 = vshrl.u32 %v2893, 7
    %v2895 = vsub.s32 %v2551, %v2894
    %v2896 = vrot.slane %v2221, %v2895
    %v2897 = vsel %vm2556, %v2896, %v2892
    %v2898 = vlaneseq
    %v2899 = vshrl.u32 %v2898, 7
    %v2900 = vsub.s32 %v2558, %v2899
    %v2901 = vrot.slane %v2224, %v2900
    %v2902 = vsel %vm2563, %v2901, %v2897
    %v2903 = vlaneseq
    %v2904 = vshrl.u32 %v2903, 7
    %v2905 = vsub.s32 %v2565, %v2904
    %v2906 = vrot.slane %v2227, %v2905
    %v2907 = vsel %vm2570, %v2906, %v2902
    %v2908 = vlaneseq
    %v2909 = vshrl.u32 %v2908, 7
    %v2910 = vsub.s32 %v2572, %v2909
    %v2911 = vrot.slane %v2230, %v2910
    %v2912 = vsel %vm2577, %v2911, %v2907
    %v2913 = vlaneseq
    %v2914 = vshrl.u32 %v2913, 7
    %v2915 = vsub.s32 %v2579, %v2914
    %v2916 = vrot.slane %v2233, %v2915
    %v2917 = vsel %vm2584, %v2916, %v2912
    %v2918 = vlaneseq
    %v2919 = vshrl.u32 %v2918, 7
    %v2920 = vsub.s32 %v2586, %v2919
    %v2921 = vrot.slane %v2236, %v2920
    %v2922 = vsel %vm2591, %v2921, %v2917
    %v2923 = vlaneseq
    %v2924 = vshrl.u32 %v2923, 7
    %v2925 = vsub.s32 %v2593, %v2924
    %v2926 = vrot.slane %v2239, %v2925
    %v2927 = vsel %vm2598, %v2926, %v2922
    %v2928 = vlaneseq
    %v2929 = vshrl.u32 %v2928, 7
    %v2930 = vsub.s32 %v2600, %v2929
    %v2931 = vrot.slane %v2242, %v2930
    %v2932 = vsel %vm2605, %v2931, %v2927
    %v2933 = vlaneseq
    %v2934 = vshrl.u32 %v2933, 7
    %v2935 = vsub.s32 %v2607, %v2934
    %v2936 = vrot.slane %v2245, %v2935
    %v2937 = vsel %vm2612, %v2936, %v2932
    %v2938 = vlaneseq
    %v2939 = vshrl.u32 %v2938, 7
    %v2940 = vsub.s32 %v2614, %v2939
    %v2941 = vrot.slane %v2248, %v2940
    %v2942 = vsel %vm2619, %v2941, %v2937
    %v2943 = vlaneseq
    %v2944 = vshrl.u32 %v2943, 7
    %v2945 = vsub.s32 %v2621, %v2944
    %v2946 = vrot.slane %v2251, %v2945
    %v2947 = vsel %vm2626, %v2946, %v2942
    %v2948 = vlaneseq
    %v2949 = vshrl.u32 %v2948, 7
    %v2950 = vsub.s32 %v2628, %v2949
    %v2951 = vrot.slane %v2254, %v2950
    %v2952 = vsel %vm2633, %v2951, %v2947
    %v2953 = vlaneseq
    %v2954 = vshrl.u32 %v2953, 7
    %v2955 = vsub.s32 %v2635, %v2954
    %v2956 = vrot.slane %v2257, %v2955
    %v2957 = vsel %vm2640, %v2956, %v2952
    %v2958 = vlaneseq
    %v2959 = vshrl.u32 %v2958, 7
    %v2960 = vsub.s32 %v2403, %v2959
    %v2961 = vrot.slane %v2260, %v2960
    %v2962 = vlaneseq
    %v2963 = vshrl.u32 %v2962, 7
    %v2964 = vsub.s32 %v2537, %v2963
    %v2965 = vrot.slane %v2263, %v2964
    %v2966 = vsel %vm2542, %v2965, %v2961
    %v2967 = vlaneseq
    %v2968 = vshrl.u32 %v2967, 7
    %v2969 = vsub.s32 %v2544, %v2968
    %v2970 = vrot.slane %v2266, %v2969
    %v2971 = vsel %vm2549, %v2970, %v2966
    %v2972 = vlaneseq
    %v2973 = vshrl.u32 %v2972, 7
    %v2974 = vsub.s32 %v2551, %v2973
    %v2975 = vrot.slane %v2269, %v2974
    %v2976 = vsel %vm2556, %v2975, %v2971
    %v2977 = vlaneseq
    %v2978 = vshrl.u32 %v2977, 7
    %v2979 = vsub.s32 %v2558, %v2978
    %v2980 = vrot.slane %v2272, %v2979
    %v2981 = vsel %vm2563, %v2980, %v2976
    %v2982 = vlaneseq
    %v2983 = vshrl.u32 %v2982, 7
    %v2984 = vsub.s32 %v2565, %v2983
    %v2985 = vrot.slane %v2275, %v2984
    %v2986 = vsel %vm2570, %v2985, %v2981
    %v2987 = vlaneseq
    %v2988 = vshrl.u32 %v2987, 7
    %v2989 = vsub.s32 %v2572, %v2988
    %v2990 = vrot.slane %v2278, %v2989
    %v2991 = vsel %vm2577, %v2990, %v2986
    %v2992 = vlaneseq
    %v2993 = vshrl.u32 %v2992, 7
    %v2994 = vsub.s32 %v2579, %v2993
    %v2995 = vrot.slane %v2281, %v2994
    %v2996 = vsel %vm2584, %v2995, %v2991
    %v2997 = vlaneseq
    %v2998 = vshrl.u32 %v2997, 7
    %v2999 = vsub.s32 %v2586, %v2998
    %v3000 = vrot.slane %v2284, %v2999
    %v3001 = vsel %vm2591, %v3000, %v2996
    %v3002 = vlaneseq
    %v3003 = vshrl.u32 %v3002, 7
    %v3004 = vsub.s32 %v2593, %v3003
    %v3005 = vrot.slane %v2287, %v3004
    %v3006 = vsel %vm2598, %v3005, %v3001
    %v3007 = vlaneseq
    %v3008 = vshrl.u32 %v3007, 7
    %v3009 = vsub.s32 %v2600, %v3008
    %v3010 = vrot.slane %v2290, %v3009
    %v3011 = vsel %vm2605, %v3010, %v3006
    %v3012 = vlaneseq
    %v3013 = vshrl.u32 %v3012, 7
    %v3014 = vsub.s32 %v2607, %v3013
    %v3015 = vrot.slane %v2293, %v3014
    %v3016 = vsel %vm2612, %v3015, %v3011
    %v3017 = vlaneseq
    %v3018 = vshrl.u32 %v3017, 7
    %v3019 = vsub.s32 %v2614, %v3018
    %v3020 = vrot.slane %v2296, %v3019
    %v3021 = vsel %vm2619, %v3020, %v3016
    %v3022 = vlaneseq
    %v3023 = vshrl.u32 %v3022, 7
    %v3024 = vsub.s32 %v2621, %v3023
    %v3025 = vrot.slane %v2299, %v3024
    %v3026 = vsel %vm2626, %v3025, %v3021
    %v3027 = vlaneseq
    %v3028 = vshrl.u32 %v3027, 7
    %v3029 = vsub.s32 %v2628, %v3028
    %v3030 = vrot.slane %v2302, %v3029
    %v3031 = vsel %vm2633, %v3030, %v3026
    %v3032 = vlaneseq
    %v3033 = vshrl.u32 %v3032, 7
    %v3034 = vsub.s32 %v2635, %v3033
    %v3035 = vrot.slane %v2305, %v3034
    %v3036 = vsel %vm2640, %v3035, %v3031
    %v3037 = vlaneseq
    %v3038 = vshrl.u32 %v3037, 7
    %v3039 = vsub.s32 %v2403, %v3038
    %v3040 = vrot.slane %v2308, %v3039
    %v3041 = vlaneseq
    %v3042 = vshrl.u32 %v3041, 7
    %v3043 = vsub.s32 %v2537, %v3042
    %v3044 = vrot.slane %v2311, %v3043
    %v3045 = vsel %vm2542, %v3044, %v3040
    %v3046 = vlaneseq
    %v3047 = vshrl.u32 %v3046, 7
    %v3048 = vsub.s32 %v2544, %v3047
    %v3049 = vrot.slane %v2314, %v3048
    %v3050 = vsel %vm2549, %v3049, %v3045
    %v3051 = vlaneseq
    %v3052 = vshrl.u32 %v3051, 7
    %v3053 = vsub.s32 %v2551, %v3052
    %v3054 = vrot.slane %v2317, %v3053
    %v3055 = vsel %vm2556, %v3054, %v3050
    %v3056 = vlaneseq
    %v3057 = vshrl.u32 %v3056, 7
    %v3058 = vsub.s32 %v2558, %v3057
    %v3059 = vrot.slane %v2320, %v3058
    %v3060 = vsel %vm2563, %v3059, %v3055
    %v3061 = vlaneseq
    %v3062 = vshrl.u32 %v3061, 7
    %v3063 = vsub.s32 %v2565, %v3062
    %v3064 = vrot.slane %v2323, %v3063
    %v3065 = vsel %vm2570, %v3064, %v3060
    %v3066 = vlaneseq
    %v3067 = vshrl.u32 %v3066, 7
    %v3068 = vsub.s32 %v2572, %v3067
    %v3069 = vrot.slane %v2326, %v3068
    %v3070 = vsel %vm2577, %v3069, %v3065
    %v3071 = vlaneseq
    %v3072 = vshrl.u32 %v3071, 7
    %v3073 = vsub.s32 %v2579, %v3072
    %v3074 = vrot.slane %v2329, %v3073
    %v3075 = vsel %vm2584, %v3074, %v3070
    %v3076 = vlaneseq
    %v3077 = vshrl.u32 %v3076, 7
    %v3078 = vsub.s32 %v2586, %v3077
    %v3079 = vrot.slane %v2332, %v3078
    %v3080 = vsel %vm2591, %v3079, %v3075
    %v3081 = vlaneseq
    %v3082 = vshrl.u32 %v3081, 7
    %v3083 = vsub.s32 %v2593, %v3082
    %v3084 = vrot.slane %v2335, %v3083
    %v3085 = vsel %vm2598, %v3084, %v3080
    %v3086 = vlaneseq
    %v3087 = vshrl.u32 %v3086, 7
    %v3088 = vsub.s32 %v2600, %v3087
    %v3089 = vrot.slane %v2338, %v3088
    %v3090 = vsel %vm2605, %v3089, %v3085
    %v3091 = vlaneseq
    %v3092 = vshrl.u32 %v3091, 7
    %v3093 = vsub.s32 %v2607, %v3092
    %v3094 = vrot.slane %v2341, %v3093
    %v3095 = vsel %vm2612, %v3094, %v3090
    %v3096 = vlaneseq
    %v3097 = vshrl.u32 %v3096, 7
    %v3098 = vsub.s32 %v2614, %v3097
    %v3099 = vrot.slane %v2344, %v3098
    %v3100 = vsel %vm2619, %v3099, %v3095
    %v3101 = vlaneseq
    %v3102 = vshrl.u32 %v3101, 7
    %v3103 = vsub.s32 %v2621, %v3102
    %v3104 = vrot.slane %v2347, %v3103
    %v3105 = vsel %vm2626, %v3104, %v3100
    %v3106 = vlaneseq
    %v3107 = vshrl.u32 %v3106, 7
    %v3108 = vsub.s32 %v2628, %v3107
    %v3109 = vrot.slane %v2350, %v3108
    %v3110 = vsel %vm2633, %v3109, %v3105
    %v3111 = vlaneseq
    %v3112 = vshrl.u32 %v3111, 7
    %v3113 = vsub.s32 %v2635, %v3112
    %v3114 = vrot.slane %v2353, %v3113
    %v3115 = vsel %vm2640, %v3114, %v3110
    %v3116 = vlaneseq
    %v3117 = vshrl.u32 %v3116, 7
    %v3118 = vsub.s32 %v2403, %v3117
    %v3119 = vrot.slane %v2356, %v3118
    %v3120 = vlaneseq
    %v3121 = vshrl.u32 %v3120, 7
    %v3122 = vsub.s32 %v2537, %v3121
    %v3123 = vrot.slane %v2359, %v3122
    %v3124 = vsel %vm2542, %v3123, %v3119
    %v3125 = vlaneseq
    %v3126 = vshrl.u32 %v3125, 7
    %v3127 = vsub.s32 %v2544, %v3126
    %v3128 = vrot.slane %v2362, %v3127
    %v3129 = vsel %vm2549, %v3128, %v3124
    %v3130 = vlaneseq
    %v3131 = vshrl.u32 %v3130, 7
    %v3132 = vsub.s32 %v2551, %v3131
    %v3133 = vrot.slane %v2365, %v3132
    %v3134 = vsel %vm2556, %v3133, %v3129
    %v3135 = vlaneseq
    %v3136 = vshrl.u32 %v3135, 7
    %v3137 = vsub.s32 %v2558, %v3136
    %v3138 = vrot.slane %v2368, %v3137
    %v3139 = vsel %vm2563, %v3138, %v3134
    %v3140 = vlaneseq
    %v3141 = vshrl.u32 %v3140, 7
    %v3142 = vsub.s32 %v2565, %v3141
    %v3143 = vrot.slane %v2371, %v3142
    %v3144 = vsel %vm2570, %v3143, %v3139
    %v3145 = vlaneseq
    %v3146 = vshrl.u32 %v3145, 7
    %v3147 = vsub.s32 %v2572, %v3146
    %v3148 = vrot.slane %v2374, %v3147
    %v3149 = vsel %vm2577, %v3148, %v3144
    %v3150 = vlaneseq
    %v3151 = vshrl.u32 %v3150, 7
    %v3152 = vsub.s32 %v2579, %v3151
    %v3153 = vrot.slane %v2377, %v3152
    %v3154 = vsel %vm2584, %v3153, %v3149
    %v3155 = vlaneseq
    %v3156 = vshrl.u32 %v3155, 7
    %v3157 = vsub.s32 %v2586, %v3156
    %v3158 = vrot.slane %v2380, %v3157
    %v3159 = vsel %vm2591, %v3158, %v3154
    %v3160 = vlaneseq
    %v3161 = vshrl.u32 %v3160, 7
    %v3162 = vsub.s32 %v2593, %v3161
    %v3163 = vrot.slane %v2383, %v3162
    %v3164 = vsel %vm2598, %v3163, %v3159
    %v3165 = vlaneseq
    %v3166 = vshrl.u32 %v3165, 7
    %v3167 = vsub.s32 %v2600, %v3166
    %v3168 = vrot.slane %v2386, %v3167
    %v3169 = vsel %vm2605, %v3168, %v3164
    %v3170 = vlaneseq
    %v3171 = vshrl.u32 %v3170, 7
    %v3172 = vsub.s32 %v2607, %v3171
    %v3173 = vrot.slane %v2389, %v3172
    %v3174 = vsel %vm2612, %v3173, %v3169
    %v3175 = vlaneseq
    %v3176 = vshrl.u32 %v3175, 7
    %v3177 = vsub.s32 %v2614, %v3176
    %v3178 = vrot.slane %v2392, %v3177
    %v3179 = vsel %vm2619, %v3178, %v3174
    %v3180 = vlaneseq
    %v3181 = vshrl.u32 %v3180, 7
    %v3182 = vsub.s32 %v2621, %v3181
    %v3183 = vrot.slane %v2395, %v3182
    %v3184 = vsel %vm2626, %v3183, %v3179
    %v3185 = vlaneseq
    %v3186 = vshrl.u32 %v3185, 7
    %v3187 = vsub.s32 %v2628, %v3186
    %v3188 = vrot.slane %v2398, %v3187
    %v3189 = vsel %vm2633, %v3188, %v3184
    %v3190 = vlaneseq
    %v3191 = vshrl.u32 %v3190, 7
    %v3192 = vsub.s32 %v2635, %v3191
    %v3193 = vrot.slane %v2401, %v3192
    %v3194 = vsel %vm2640, %v3193, %v3189
    %vm3195 = vcmask 1041409
    %v3196 = vsel %vm3195, %v2720, %v2641
    %vm3197 = vcmask 1042434
    %v3198 = vsel %vm3197, %v2799, %v3196
    %vm3199 = vcmask 1043459
    %v3200 = vsel %vm3199, %v2878, %v3198
    %vm3201 = vcmask 1044484
    %v3202 = vsel %vm3201, %v2957, %v3200
    %vm3203 = vcmask 1045509
    %v3204 = vsel %vm3203, %v3036, %v3202
    %vm3205 = vcmask 1046534
    %v3206 = vsel %vm3205, %v3115, %v3204
    %vm3207 = vcmask 1047559
    %v3208 = vsel %vm3207, %v3194, %v3206
    %v3210 = vsel %vm2404, %v3208, -1e+30
    %3211 = vmax.xlane.f32.xlu0 %v3210
    %v3212 = vpop.xlane.xlu0 %3211
    %v3213 = vsub.f32 %v3210, %v3212
    %v3214 = vmul.f32 %v3213, 1.442695
    %v3215 = vpow.pop %v3214
    %3216 = vadd.xlane.f32.xlu0 %v3215
    %v3217 = vpop.xlane.xlu0 %3216
    %v3218 = vrcp.pop %v3217
    %v3219 = vmul.f32 %v3215, %v3218
    %v3221 = vcombine.high %v3219, %v3219
    %v3223 = vunpack.c.l.s4 1966171168
    %v3224 = vunpack.c.0.s8 %v3223
    %v3225 = vlaneseq
    %v3226 = vshrl.u32 %v3225, 7
    %v3227 = vsub.s32 %v3224, %v3226
    %v3228 = vrot.slane %v3219, %v3227
    %v3230 = vunpack.c.l.s4 1966171168
    %v3231 = vunpack.c.0.s8 %v3230
    %v3232 = vlaneseq
    %v3233 = vshrl.u32 %v3232, 7
    %v3234 = vsub.s32 %v3231, %v3233
    %v3235 = vrot.slane %v3221, %v3234
    %v3236 = vcombine.high %v3228, %v3228
    %v3237 = vcombine.high %v3235, %v3235
    %v3239 = vunpack.c.l.s4 1966171168
    %v3240 = vunpack.c.0.s8 %v3239
    %v3241 = vlaneseq
    %v3242 = vshrl.u32 %v3241, 7
    %v3243 = vsub.s32 %v3240, %v3242
    %v3244 = vrot.slane %v3228, %v3243
    %v3246 = vunpack.c.l.s4 1966171168
    %v3247 = vunpack.c.0.s8 %v3246
    %v3248 = vlaneseq
    %v3249 = vshrl.u32 %v3248, 7
    %v3250 = vsub.s32 %v3247, %v3249
    %v3251 = vrot.slane %v3235, %v3250
    %v3253 = vunpack.c.l.s4 1966171168
    %v3254 = vunpack.c.0.s8 %v3253
    %v3255 = vlaneseq
    %v3256 = vshrl.u32 %v3255, 7
    %v3257 = vsub.s32 %v3254, %v3256
    %v3258 = vrot.slane %v3236, %v3257
    %v3260 = vunpack.c.l.s4 1966171168
    %v3261 = vunpack.c.0.s8 %v3260
    %v3262 = vlaneseq
    %v3263 = vshrl.u32 %v3262, 7
    %v3264 = vsub.s32 %v3261, %v3263
    %v3265 = vrot.slane %v3237, %v3264
    %v3266 = vcombine.high %v3244, %v3244
    %v3267 = vcombine.high %v3251, %v3251
    %v3268 = vcombine.high %v3258, %v3258
    %v3269 = vcombine.high %v3265, %v3265
    %3278 = vmatprep.subr.mxu0 0.0
    %3279 = vmatpush1.msra.mxu0 %v103
    %3280 = vmatprep.subr.mxu0 0.0
    %3281 = vmatpush1.msra.mxu0 %v104
    %3282 = vmatprep.subr.mxu0 0.0
    %3283 = vmatpush1.msra.mxu0 %v105
    %3284 = vmatprep.subr.mxu0 0.0
    %3285 = vmatpush1.msra.mxu0 %v106
    %3286 = vmatprep.subr.mxu0 0.0
    %3287 = vmatpush1.msra.mxu0 %v107
    %3288 = vmatprep.subr.mxu0 0.0
    %3289 = vmatpush1.msra.mxu0 %v108
    %3290 = vmatprep.subr.mxu0 0.0
    %3291 = vmatpush1.msra.mxu0 %v109
    %3292 = vmatprep.subr.mxu0 0.0
    %3293 = vmatpush1.msra.mxu0 %v110
    %3294 = vmatprep.subr.mxu0 0.0
    %3295 = vmatpush1.msra.mxu0 %v111
    %3296 = vmatprep.subr.mxu0 0.0
    %3297 = vmatpush1.msra.mxu0 %v112
    %3298 = vmatprep.subr.mxu0 0.0
    %3299 = vmatpush1.msra.mxu0 %v113
    %3300 = vmatprep.subr.mxu0 0.0
    %3301 = vmatpush1.msra.mxu0 %v114
    %3302 = vmatprep.subr.mxu0 0.0
    %3303 = vmatpush1.msra.mxu0 %v115
    %3304 = vmatprep.subr.mxu0 0.0
    %3305 = vmatpush1.msra.mxu0 %v116
    %3306 = vmatprep.subr.mxu0 0.0
    %3307 = vmatpush1.msra.mxu0 %v117
    %3308 = vmatprep.subr.mxu0 0.0
    %3309 = vmatpush1.msra.mxu0 %v118
    %3310 = vmatprep.subr.mxu0 0.0
    %3311 = vmatpush1.msra.mxu0 0.0
    %3312 = vmatprep.subr.mxu0 0.0
    %3313 = vmatpush1.msra.mxu0 0.0
    %3314 = vmatprep.subr.mxu0 0.0
    %3315 = vmatpush1.msra.mxu0 0.0
    %3316 = vmatprep.subr.mxu0 0.0
    %3317 = vmatpush1.msra.mxu0 0.0
    %3318 = vmatprep.subr.mxu0 0.0
    %3319 = vmatpush1.msra.mxu0 0.0
    %3320 = vmatprep.subr.mxu0 0.0
    %3321 = vmatpush1.msra.mxu0 0.0
    %3322 = vmatprep.subr.mxu0 0.0
    %3323 = vmatpush1.msra.mxu0 0.0
    %3324 = vmatprep.subr.mxu0 0.0
    %3325 = vmatpush1.msra.mxu0 0.0
    %3326 = vmatprep.subr.mxu0 0.0
    %3327 = vmatpush1.msra.mxu0 0.0
    %3328 = vmatprep.subr.mxu0 0.0
    %3329 = vmatpush1.msra.mxu0 0.0
    %3330 = vmatprep.subr.mxu0 0.0
    %3331 = vmatpush1.msra.mxu0 0.0
    %3332 = vmatprep.subr.mxu0 0.0
    %3333 = vmatpush1.msra.mxu0 0.0
    %3334 = vmatprep.subr.mxu0 0.0
    %3335 = vmatpush1.msra.mxu0 0.0
    %3336 = vmatprep.subr.mxu0 0.0
    %3337 = vmatpush1.msra.mxu0 0.0
    %3338 = vmatprep.subr.mxu0 0.0
    %3339 = vmatpush1.msra.mxu0 0.0
    %3340 = vmatprep.subr.mxu0 0.0
    %3341 = vmatpush1.msra.mxu0 0.0
    %3342 = vmatprep.mubr.f32.mxu0 0.0
    %3343 = vmatmul.mubr.f32.gmra.mrb[0].mxu0 %v3244
    %v3344 = vpop.f32.mrb[0].mxu0
    %v3345 = vadd.f32 0.0, %v3344
    %v3346 = vpop.f32.mrb[0].mxu0
    %3347 = vdwg.mxu0
    %3348 = vmatprep.subr.mxu0 0.0
    %3349 = vmatpush1.msra.mxu0 %v119
    %3350 = vmatprep.subr.mxu0 0.0
    %3351 = vmatpush1.msra.mxu0 %v120
    %3352 = vmatprep.subr.mxu0 0.0
    %3353 = vmatpush1.msra.mxu0 %v121
    %3354 = vmatprep.subr.mxu0 0.0
    %3355 = vmatpush1.msra.mxu0 %v122
    %3356 = vmatprep.subr.mxu0 0.0
    %3357 = vmatpush1.msra.mxu0 %v123
    %3358 = vmatprep.subr.mxu0 0.0
    %3359 = vmatpush1.msra.mxu0 %v124
    %3360 = vmatprep.subr.mxu0 0.0
    %3361 = vmatpush1.msra.mxu0 %v125
    %3362 = vmatprep.subr.mxu0 0.0
    %3363 = vmatpush1.msra.mxu0 %v126
    %3364 = vmatprep.subr.mxu0 0.0
    %3365 = vmatpush1.msra.mxu0 %v127
    %3366 = vmatprep.subr.mxu0 0.0
    %3367 = vmatpush1.msra.mxu0 %v128
    %3368 = vmatprep.subr.mxu0 0.0
    %3369 = vmatpush1.msra.mxu0 %v129
    %3370 = vmatprep.subr.mxu0 0.0
    %3371 = vmatpush1.msra.mxu0 %v130
    %3372 = vmatprep.subr.mxu0 0.0
    %3373 = vmatpush1.msra.mxu0 %v131
    %3374 = vmatprep.subr.mxu0 0.0
    %3375 = vmatpush1.msra.mxu0 %v132
    %3376 = vmatprep.subr.mxu0 0.0
    %3377 = vmatpush1.msra.mxu0 %v133
    %3378 = vmatprep.subr.mxu0 0.0
    %3379 = vmatpush1.msra.mxu0 %v134
    %3380 = vmatprep.subr.mxu0 0.0
    %3381 = vmatpush1.msra.mxu0 0.0
    %3382 = vmatprep.subr.mxu0 0.0
    %3383 = vmatpush1.msra.mxu0 0.0
    %3384 = vmatprep.subr.mxu0 0.0
    %3385 = vmatpush1.msra.mxu0 0.0
    %3386 = vmatprep.subr.mxu0 0.0
    %3387 = vmatpush1.msra.mxu0 0.0
    %3388 = vmatprep.subr.mxu0 0.0
    %3389 = vmatpush1.msra.mxu0 0.0
    %3390 = vmatprep.subr.mxu0 0.0
    %3391 = vmatpush1.msra.mxu0 0.0
    %3392 = vmatprep.subr.mxu0 0.0
    %3393 = vmatpush1.msra.mxu0 0.0
    %3394 = vmatprep.subr.mxu0 0.0
    %3395 = vmatpush1.msra.mxu0 0.0
    %3396 = vmatprep.subr.mxu0 0.0
    %3397 = vmatpush1.msra.mxu0 0.0
    %3398 = vmatprep.subr.mxu0 0.0
    %3399 = vmatpush1.msra.mxu0 0.0
    %3400 = vmatprep.subr.mxu0 0.0
    %3401 = vmatpush1.msra.mxu0 0.0
    %3402 = vmatprep.subr.mxu0 0.0
    %3403 = vmatpush1.msra.mxu0 0.0
    %3404 = vmatprep.subr.mxu0 0.0
    %3405 = vmatpush1.msra.mxu0 0.0
    %3406 = vmatprep.subr.mxu0 0.0
    %3407 = vmatpush1.msra.mxu0 0.0
    %3408 = vmatprep.subr.mxu0 0.0
    %3409 = vmatpush1.msra.mxu0 0.0
    %3410 = vmatprep.subr.mxu0 0.0
    %3411 = vmatpush1.msra.mxu0 0.0
    %3412 = vmatprep.mubr.f32.mxu0 0.0
    %3413 = vmatmul.mubr.f32.gmra.mrb[0].mxu0 %v3258
    %v3414 = vpop.f32.mrb[0].mxu0
    %v3415 = vadd.f32 0.0, %v3414
    %v3416 = vpop.f32.mrb[0].mxu0
    %3417 = vdwg.mxu0
    %3418 = vmatprep.subr.mxu0 0.0
    %3419 = vmatpush1.msra.mxu0 %v135
    %3420 = vmatprep.subr.mxu0 0.0
    %3421 = vmatpush1.msra.mxu0 %v136
    %3422 = vmatprep.subr.mxu0 0.0
    %3423 = vmatpush1.msra.mxu0 %v137
    %3424 = vmatprep.subr.mxu0 0.0
    %3425 = vmatpush1.msra.mxu0 %v138
    %3426 = vmatprep.subr.mxu0 0.0
    %3427 = vmatpush1.msra.mxu0 %v139
    %3428 = vmatprep.subr.mxu0 0.0
    %3429 = vmatpush1.msra.mxu0 %v140
    %3430 = vmatprep.subr.mxu0 0.0
    %3431 = vmatpush1.msra.mxu0 %v141
    %3432 = vmatprep.subr.mxu0 0.0
    %3433 = vmatpush1.msra.mxu0 %v142
    %3434 = vmatprep.subr.mxu0 0.0
    %3435 = vmatpush1.msra.mxu0 %v143
    %3436 = vmatprep.subr.mxu0 0.0
    %3437 = vmatpush1.msra.mxu0 %v144
    %3438 = vmatprep.subr.mxu0 0.0
    %3439 = vmatpush1.msra.mxu0 %v145
    %3440 = vmatprep.subr.mxu0 0.0
    %3441 = vmatpush1.msra.mxu0 %v146
    %3442 = vmatprep.subr.mxu0 0.0
    %3443 = vmatpush1.msra.mxu0 %v147
    %3444 = vmatprep.subr.mxu0 0.0
    %3445 = vmatpush1.msra.mxu0 %v148
    %3446 = vmatprep.subr.mxu0 0.0
    %3447 = vmatpush1.msra.mxu0 %v149
    %3448 = vmatprep.subr.mxu0 0.0
    %3449 = vmatpush1.msra.mxu0 %v150
    %3450 = vmatprep.subr.mxu0 0.0
    %3451 = vmatpush1.msra.mxu0 0.0
    %3452 = vmatprep.subr.mxu0 0.0
    %3453 = vmatpush1.msra.mxu0 0.0
    %3454 = vmatprep.subr.mxu0 0.0
    %3455 = vmatpush1.msra.mxu0 0.0
    %3456 = vmatprep.subr.mxu0 0.0
    %3457 = vmatpush1.msra.mxu0 0.0
    %3458 = vmatprep.subr.mxu0 0.0
    %3459 = vmatpush1.msra.mxu0 0.0
    %3460 = vmatprep.subr.mxu0 0.0
    %3461 = vmatpush1.msra.mxu0 0.0
    %3462 = vmatprep.subr.mxu0 0.0
    %3463 = vmatpush1.msra.mxu0 0.0
    %3464 = vmatprep.subr.mxu0 0.0
    %3465 = vmatpush1.msra.mxu0 0.0
    %3466 = vmatprep.subr.mxu0 0.0
    %3467 = vmatpush1.msra.mxu0 0.0
    %3468 = vmatprep.subr.mxu0 0.0
    %3469 = vmatpush1.msra.mxu0 0.0
    %3470 = vmatprep.subr.mxu0 0.0
    %3471 = vmatpush1.msra.mxu0 0.0
    %3472 = vmatprep.subr.mxu0 0.0
    %3473 = vmatpush1.msra.mxu0 0.0
    %3474 = vmatprep.subr.mxu0 0.0
    %3475 = vmatpush1.msra.mxu0 0.0
    %3476 = vmatprep.subr.mxu0 0.0
    %3477 = vmatpush1.msra.mxu0 0.0
    %3478 = vmatprep.subr.mxu0 0.0
    %3479 = vmatpush1.msra.mxu0 0.0
    %3480 = vmatprep.subr.mxu0 0.0
    %3481 = vmatpush1.msra.mxu0 0.0
    %3482 = vmatprep.mubr.f32.mxu0 0.0
    %3483 = vmatmul.mubr.f32.gmra.mrb[0].mxu0 %v3266
    %v3484 = vpop.f32.mrb[0].mxu0
    %v3485 = vadd.f32 0.0, %v3484
    %v3486 = vpop.f32.mrb[0].mxu0
    %3487 = vdwg.mxu0
    %3488 = vmatprep.subr.mxu0 0.0
    %3489 = vmatpush1.msra.mxu0 %v151
    %3490 = vmatprep.subr.mxu0 0.0
    %3491 = vmatpush1.msra.mxu0 %v152
    %3492 = vmatprep.subr.mxu0 0.0
    %3493 = vmatpush1.msra.mxu0 %v153
    %3494 = vmatprep.subr.mxu0 0.0
    %3495 = vmatpush1.msra.mxu0 %v154
    %3496 = vmatprep.subr.mxu0 0.0
    %3497 = vmatpush1.msra.mxu0 %v155
    %3498 = vmatprep.subr.mxu0 0.0
    %3499 = vmatpush1.msra.mxu0 %v156
    %3500 = vmatprep.subr.mxu0 0.0
    %3501 = vmatpush1.msra.mxu0 %v157
    %3502 = vmatprep.subr.mxu0 0.0
    %3503 = vmatpush1.msra.mxu0 %v158
    %3504 = vmatprep.subr.mxu0 0.0
    %3505 = vmatpush1.msra.mxu0 %v159
    %3506 = vmatprep.subr.mxu0 0.0
    %3507 = vmatpush1.msra.mxu0 %v160
    %3508 = vmatprep.subr.mxu0 0.0
    %3509 = vmatpush1.msra.mxu0 %v161
    %3510 = vmatprep.subr.mxu0 0.0
    %3511 = vmatpush1.msra.mxu0 %v162
    %3512 = vmatprep.subr.mxu0 0.0
    %3513 = vmatpush1.msra.mxu0 %v163
    %3514 = vmatprep.subr.mxu0 0.0
    %3515 = vmatpush1.msra.mxu0 %v164
    %3516 = vmatprep.subr.mxu0 0.0
    %3517 = vmatpush1.msra.mxu0 %v165
    %3518 = vmatprep.subr.mxu0 0.0
    %3519 = vmatpush1.msra.mxu0 %v166
    %3520 = vmatprep.subr.mxu0 0.0
    %3521 = vmatpush1.msra.mxu0 0.0
    %3522 = vmatprep.subr.mxu0 0.0
    %3523 = vmatpush1.msra.mxu0 0.0
    %3524 = vmatprep.subr.mxu0 0.0
    %3525 = vmatpush1.msra.mxu0 0.0
    %3526 = vmatprep.subr.mxu0 0.0
    %3527 = vmatpush1.msra.mxu0 0.0
    %3528 = vmatprep.subr.mxu0 0.0
    %3529 = vmatpush1.msra.mxu0 0.0
    %3530 = vmatprep.subr.mxu0 0.0
    %3531 = vmatpush1.msra.mxu0 0.0
    %3532 = vmatprep.subr.mxu0 0.0
    %3533 = vmatpush1.msra.mxu0 0.0
    %3534 = vmatprep.subr.mxu0 0.0
    %3535 = vmatpush1.msra.mxu0 0.0
    %3536 = vmatprep.subr.mxu0 0.0
    %3537 = vmatpush1.msra.mxu0 0.0
    %3538 = vmatprep.subr.mxu0 0.0
    %3539 = vmatpush1.msra.mxu0 0.0
    %3540 = vmatprep.subr.mxu0 0.0
    %3541 = vmatpush1.msra.mxu0 0.0
    %3542 = vmatprep.subr.mxu0 0.0
    %3543 = vmatpush1.msra.mxu0 0.0
    %3544 = vmatprep.subr.mxu0 0.0
    %3545 = vmatpush1.msra.mxu0 0.0
    %3546 = vmatprep.subr.mxu0 0.0
    %3547 = vmatpush1.msra.mxu0 0.0
    %3548 = vmatprep.subr.mxu0 0.0
    %3549 = vmatpush1.msra.mxu0 0.0
    %3550 = vmatprep.subr.mxu0 0.0
    %3551 = vmatpush1.msra.mxu0 0.0
    %3552 = vmatprep.mubr.f32.mxu0 0.0
    %3553 = vmatmul.mubr.f32.gmra.mrb[0].mxu0 %v3268
    %v3554 = vpop.f32.mrb[0].mxu0
    %v3555 = vadd.f32 0.0, %v3554
    %v3556 = vpop.f32.mrb[0].mxu0
    %3557 = vdwg.mxu0
    %3558 = vmatprep.subr.mxu0 0.0
    %3559 = vmatpush1.msra.mxu0 %v167
    %3560 = vmatprep.subr.mxu0 0.0
    %3561 = vmatpush1.msra.mxu0 %v168
    %3562 = vmatprep.subr.mxu0 0.0
    %3563 = vmatpush1.msra.mxu0 %v169
    %3564 = vmatprep.subr.mxu0 0.0
    %3565 = vmatpush1.msra.mxu0 %v170
    %3566 = vmatprep.subr.mxu0 0.0
    %3567 = vmatpush1.msra.mxu0 %v171
    %3568 = vmatprep.subr.mxu0 0.0
    %3569 = vmatpush1.msra.mxu0 %v172
    %3570 = vmatprep.subr.mxu0 0.0
    %3571 = vmatpush1.msra.mxu0 %v173
    %3572 = vmatprep.subr.mxu0 0.0
    %3573 = vmatpush1.msra.mxu0 %v174
    %3574 = vmatprep.subr.mxu0 0.0
    %3575 = vmatpush1.msra.mxu0 %v175
    %3576 = vmatprep.subr.mxu0 0.0
    %3577 = vmatpush1.msra.mxu0 %v176
    %3578 = vmatprep.subr.mxu0 0.0
    %3579 = vmatpush1.msra.mxu0 %v177
    %3580 = vmatprep.subr.mxu0 0.0
    %3581 = vmatpush1.msra.mxu0 %v178
    %3582 = vmatprep.subr.mxu0 0.0
    %3583 = vmatpush1.msra.mxu0 %v179
    %3584 = vmatprep.subr.mxu0 0.0
    %3585 = vmatpush1.msra.mxu0 %v180
    %3586 = vmatprep.subr.mxu0 0.0
    %3587 = vmatpush1.msra.mxu0 %v181
    %3588 = vmatprep.subr.mxu0 0.0
    %3589 = vmatpush1.msra.mxu0 %v182
    %3590 = vmatprep.subr.mxu0 0.0
    %3591 = vmatpush1.msra.mxu0 0.0
    %3592 = vmatprep.subr.mxu0 0.0
    %3593 = vmatpush1.msra.mxu0 0.0
    %3594 = vmatprep.subr.mxu0 0.0
    %3595 = vmatpush1.msra.mxu0 0.0
    %3596 = vmatprep.subr.mxu0 0.0
    %3597 = vmatpush1.msra.mxu0 0.0
    %3598 = vmatprep.subr.mxu0 0.0
    %3599 = vmatpush1.msra.mxu0 0.0
    %3600 = vmatprep.subr.mxu0 0.0
    %3601 = vmatpush1.msra.mxu0 0.0
    %3602 = vmatprep.subr.mxu0 0.0
    %3603 = vmatpush1.msra.mxu0 0.0
    %3604 = vmatprep.subr.mxu0 0.0
    %3605 = vmatpush1.msra.mxu0 0.0
    %3606 = vmatprep.subr.mxu0 0.0
    %3607 = vmatpush1.msra.mxu0 0.0
    %3608 = vmatprep.subr.mxu0 0.0
    %3609 = vmatpush1.msra.mxu0 0.0
    %3610 = vmatprep.subr.mxu0 0.0
    %3611 = vmatpush1.msra.mxu0 0.0
    %3612 = vmatprep.subr.mxu0 0.0
    %3613 = vmatpush1.msra.mxu0 0.0
    %3614 = vmatprep.subr.mxu0 0.0
    %3615 = vmatpush1.msra.mxu0 0.0
    %3616 = vmatprep.subr.mxu0 0.0
    %3617 = vmatpush1.msra.mxu0 0.0
    %3618 = vmatprep.subr.mxu0 0.0
    %3619 = vmatpush1.msra.mxu0 0.0
    %3620 = vmatprep.subr.mxu0 0.0
    %3621 = vmatpush1.msra.mxu0 0.0
    %3622 = vmatprep.mubr.f32.mxu0 0.0
    %3623 = vmatmul.mubr.f32.gmra.mrb[0].mxu0 %v3251
    %v3624 = vpop.f32.mrb[0].mxu0
    %v3625 = vadd.f32 0.0, %v3624
    %v3626 = vpop.f32.mrb[0].mxu0
    %3627 = vdwg.mxu0
    %3628 = vmatprep.subr.mxu0 0.0
    %3629 = vmatpush1.msra.mxu0 %v183
    %3630 = vmatprep.subr.mxu0 0.0
    %3631 = vmatpush1.msra.mxu0 %v184
    %3632 = vmatprep.subr.mxu0 0.0
    %3633 = vmatpush1.msra.mxu0 %v185
    %3634 = vmatprep.subr.mxu0 0.0
    %3635 = vmatpush1.msra.mxu0 %v186
    %3636 = vmatprep.subr.mxu0 0.0
    %3637 = vmatpush1.msra.mxu0 %v187
    %3638 = vmatprep.subr.mxu0 0.0
    %3639 = vmatpush1.msra.mxu0 %v188
    %3640 = vmatprep.subr.mxu0 0.0
    %3641 = vmatpush1.msra.mxu0 %v189
    %3642 = vmatprep.subr.mxu0 0.0
    %3643 = vmatpush1.msra.mxu0 %v190
    %3644 = vmatprep.subr.mxu0 0.0
    %3645 = vmatpush1.msra.mxu0 %v191
    %3646 = vmatprep.subr.mxu0 0.0
    %3647 = vmatpush1.msra.mxu0 %v192
    %3648 = vmatprep.subr.mxu0 0.0
    %3649 = vmatpush1.msra.mxu0 %v193
    %3650 = vmatprep.subr.mxu0 0.0
    %3651 = vmatpush1.msra.mxu0 %v194
    %3652 = vmatprep.subr.mxu0 0.0
    %3653 = vmatpush1.msra.mxu0 %v195
    %3654 = vmatprep.subr.mxu0 0.0
    %3655 = vmatpush1.msra.mxu0 %v196
    %3656 = vmatprep.subr.mxu0 0.0
    %3657 = vmatpush1.msra.mxu0 %v197
    %3658 = vmatprep.subr.mxu0 0.0
    %3659 = vmatpush1.msra.mxu0 %v198
    %3660 = vmatprep.subr.mxu0 0.0
    %3661 = vmatpush1.msra.mxu0 0.0
    %3662 = vmatprep.subr.mxu0 0.0
    %3663 = vmatpush1.msra.mxu0 0.0
    %3664 = vmatprep.subr.mxu0 0.0
    %3665 = vmatpush1.msra.mxu0 0.0
    %3666 = vmatprep.subr.mxu0 0.0
    %3667 = vmatpush1.msra.mxu0 0.0
    %3668 = vmatprep.subr.mxu0 0.0
    %3669 = vmatpush1.msra.mxu0 0.0
    %3670 = vmatprep.subr.mxu0 0.0
    %3671 = vmatpush1.msra.mxu0 0.0
    %3672 = vmatprep.subr.mxu0 0.0
    %3673 = vmatpush1.msra.mxu0 0.0
    %3674 = vmatprep.subr.mxu0 0.0
    %3675 = vmatpush1.msra.mxu0 0.0
    %3676 = vmatprep.subr.mxu0 0.0
    %3677 = vmatpush1.msra.mxu0 0.0
    %3678 = vmatprep.subr.mxu0 0.0
    %3679 = vmatpush1.msra.mxu0 0.0
    %3680 = vmatprep.subr.mxu0 0.0
    %3681 = vmatpush1.msra.mxu0 0.0
    %3682 = vmatprep.subr.mxu0 0.0
    %3683 = vmatpush1.msra.mxu0 0.0
    %3684 = vmatprep.subr.mxu0 0.0
    %3685 = vmatpush1.msra.mxu0 0.0
    %3686 = vmatprep.subr.mxu0 0.0
    %3687 = vmatpush1.msra.mxu0 0.0
    %3688 = vmatprep.subr.mxu0 0.0
    %3689 = vmatpush1.msra.mxu0 0.0
    %3690 = vmatprep.subr.mxu0 0.0
    %3691 = vmatpush1.msra.mxu0 0.0
    %3692 = vmatprep.mubr.f32.mxu0 0.0
    %3693 = vmatmul.mubr.f32.gmra.mrb[0].mxu0 %v3265
    %v3694 = vpop.f32.mrb[0].mxu0
    %v3695 = vadd.f32 0.0, %v3694
    %v3696 = vpop.f32.mrb[0].mxu0
    %3697 = vdwg.mxu0
    %3698 = vmatprep.subr.mxu0 0.0
    %3699 = vmatpush1.msra.mxu0 %v199
    %3700 = vmatprep.subr.mxu0 0.0
    %3701 = vmatpush1.msra.mxu0 %v200
    %3702 = vmatprep.subr.mxu0 0.0
    %3703 = vmatpush1.msra.mxu0 %v201
    %3704 = vmatprep.subr.mxu0 0.0
    %3705 = vmatpush1.msra.mxu0 %v202
    %3706 = vmatprep.subr.mxu0 0.0
    %3707 = vmatpush1.msra.mxu0 %v203
    %3708 = vmatprep.subr.mxu0 0.0
    %3709 = vmatpush1.msra.mxu0 %v204
    %3710 = vmatprep.subr.mxu0 0.0
    %3711 = vmatpush1.msra.mxu0 %v205
    %3712 = vmatprep.subr.mxu0 0.0
    %3713 = vmatpush1.msra.mxu0 %v206
    %3714 = vmatprep.subr.mxu0 0.0
    %3715 = vmatpush1.msra.mxu0 %v207
    %3716 = vmatprep.subr.mxu0 0.0
    %3717 = vmatpush1.msra.mxu0 %v208
    %3718 = vmatprep.subr.mxu0 0.0
    %3719 = vmatpush1.msra.mxu0 %v209
    %3720 = vmatprep.subr.mxu0 0.0
    %3721 = vmatpush1.msra.mxu0 %v210
    %3722 = vmatprep.subr.mxu0 0.0
    %3723 = vmatpush1.msra.mxu0 %v211
    %3724 = vmatprep.subr.mxu0 0.0
    %3725 = vmatpush1.msra.mxu0 %v212
    %3726 = vmatprep.subr.mxu0 0.0
    %3727 = vmatpush1.msra.mxu0 %v213
    %3728 = vmatprep.subr.mxu0 0.0
    %3729 = vmatpush1.msra.mxu0 %v214
    %3730 = vmatprep.subr.mxu0 0.0
    %3731 = vmatpush1.msra.mxu0 0.0
    %3732 = vmatprep.subr.mxu0 0.0
    %3733 = vmatpush1.msra.mxu0 0.0
    %3734 = vmatprep.subr.mxu0 0.0
    %3735 = vmatpush1.msra.mxu0 0.0
    %3736 = vmatprep.subr.mxu0 0.0
    %3737 = vmatpush1.msra.mxu0 0.0
    %3738 = vmatprep.subr.mxu0 0.0
    %3739 = vmatpush1.msra.mxu0 0.0
    %3740 = vmatprep.subr.mxu0 0.0
    %3741 = vmatpush1.msra.mxu0 0.0
    %3742 = vmatprep.subr.mxu0 0.0
    %3743 = vmatpush1.msra.mxu0 0.0
    %3744 = vmatprep.subr.mxu0 0.0
    %3745 = vmatpush1.msra.mxu0 0.0
    %3746 = vmatprep.subr.mxu0 0.0
    %3747 = vmatpush1.msra.mxu0 0.0
    %3748 = vmatprep.subr.mxu0 0.0
    %3749 = vmatpush1.msra.mxu0 0.0
    %3750 = vmatprep.subr.mxu0 0.0
    %3751 = vmatpush1.msra.mxu0 0.0
    %3752 = vmatprep.subr.mxu0 0.0
    %3753 = vmatpush1.msra.mxu0 0.0
    %3754 = vmatprep.subr.mxu0 0.0
    %3755 = vmatpush1.msra.mxu0 0.0
    %3756 = vmatprep.subr.mxu0 0.0
    %3757 = vmatpush1.msra.mxu0 0.0
    %3758 = vmatprep.subr.mxu0 0.0
    %3759 = vmatpush1.msra.mxu0 0.0
    %3760 = vmatprep.subr.mxu0 0.0
    %3761 = vmatpush1.msra.mxu0 0.0
    %3762 = vmatprep.mubr.f32.mxu0 0.0
    %3763 = vmatmul.mubr.f32.gmra.mrb[0].mxu0 %v3267
    %v3764 = vpop.f32.mrb[0].mxu0
    %v3765 = vadd.f32 0.0, %v3764
    %v3766 = vpop.f32.mrb[0].mxu0
    %3767 = vdwg.mxu0
    %3768 = vmatprep.subr.mxu0 0.0
    %3769 = vmatpush1.msra.mxu0 %v215
    %3770 = vmatprep.subr.mxu0 0.0
    %3771 = vmatpush1.msra.mxu0 %v216
    %3772 = vmatprep.subr.mxu0 0.0
    %3773 = vmatpush1.msra.mxu0 %v217
    %3774 = vmatprep.subr.mxu0 0.0
    %3775 = vmatpush1.msra.mxu0 %v218
    %3776 = vmatprep.subr.mxu0 0.0
    %3777 = vmatpush1.msra.mxu0 %v219
    %3778 = vmatprep.subr.mxu0 0.0
    %3779 = vmatpush1.msra.mxu0 %v220
    %3780 = vmatprep.subr.mxu0 0.0
    %3781 = vmatpush1.msra.mxu0 %v221
    %3782 = vmatprep.subr.mxu0 0.0
    %3783 = vmatpush1.msra.mxu0 %v222
    %3784 = vmatprep.subr.mxu0 0.0
    %3785 = vmatpush1.msra.mxu0 %v223
    %3786 = vmatprep.subr.mxu0 0.0
    %3787 = vmatpush1.msra.mxu0 %v224
    %3788 = vmatprep.subr.mxu0 0.0
    %3789 = vmatpush1.msra.mxu0 %v225
    %3790 = vmatprep.subr.mxu0 0.0
    %3791 = vmatpush1.msra.mxu0 %v226
    %3792 = vmatprep.subr.mxu0 0.0
    %3793 = vmatpush1.msra.mxu0 %v227
    %3794 = vmatprep.subr.mxu0 0.0
    %3795 = vmatpush1.msra.mxu0 %v228
    %3796 = vmatprep.subr.mxu0 0.0
    %3797 = vmatpush1.msra.mxu0 %v229
    %3798 = vmatprep.subr.mxu0 0.0
    %3799 = vmatpush1.msra.mxu0 %v230
    %3800 = vmatprep.subr.mxu0 0.0
    %3801 = vmatpush1.msra.mxu0 0.0
    %3802 = vmatprep.subr.mxu0 0.0
    %3803 = vmatpush1.msra.mxu0 0.0
    %3804 = vmatprep.subr.mxu0 0.0
    %3805 = vmatpush1.msra.mxu0 0.0
    %3806 = vmatprep.subr.mxu0 0.0
    %3807 = vmatpush1.msra.mxu0 0.0
    %3808 = vmatprep.subr.mxu0 0.0
    %3809 = vmatpush1.msra.mxu0 0.0
    %3810 = vmatprep.subr.mxu0 0.0
    %3811 = vmatpush1.msra.mxu0 0.0
    %3812 = vmatprep.subr.mxu0 0.0
    %3813 = vmatpush1.msra.mxu0 0.0
    %3814 = vmatprep.subr.mxu0 0.0
    %3815 = vmatpush1.msra.mxu0 0.0
    %3816 = vmatprep.subr.mxu0 0.0
    %3817 = vmatpush1.msra.mxu0 0.0
    %3818 = vmatprep.subr.mxu0 0.0
    %3819 = vmatpush1.msra.mxu0 0.0
    %3820 = vmatprep.subr.mxu0 0.0
    %3821 = vmatpush1.msra.mxu0 0.0
    %3822 = vmatprep.subr.mxu0 0.0
    %3823 = vmatpush1.msra.mxu0 0.0
    %3824 = vmatprep.subr.mxu0 0.0
    %3825 = vmatpush1.msra.mxu0 0.0
    %3826 = vmatprep.subr.mxu0 0.0
    %3827 = vmatpush1.msra.mxu0 0.0
    %3828 = vmatprep.subr.mxu0 0.0
    %3829 = vmatpush1.msra.mxu0 0.0
    %3830 = vmatprep.subr.mxu0 0.0
    %3831 = vmatpush1.msra.mxu0 0.0
    %3832 = vmatprep.mubr.f32.mxu0 0.0
    %3833 = vmatmul.mubr.f32.gmra.mrb[0].mxu0 %v3269
    %v3834 = vpop.f32.mrb[0].mxu0
    %v3835 = vadd.f32 0.0, %v3834
    %v3836 = vpop.f32.mrb[0].mxu0
    %3837 = vdwg.mxu0
    %v3838 = vld [vmem:[%s9] sm:$0xff]
    %v3839 = vld [vmem:[%s9 + $0x8] sm:$0xff]
    %v3840 = vld [vmem:[%s10] sm:$0xff]
    %v3841 = vld [vmem:[%s10 + $0x8] sm:$0xff]
    %v3842 = vld [vmem:[%s10 + $0x10] sm:$0xff]
    %v3843 = vld [vmem:[%s10 + $0x18] sm:$0xff]
    %v3852 = vrot.slane %v3415, 7
    %v3853 = vsel %vm3195, %v3852, %v3345
    %v3854 = vrot.slane %v3485, 6
    %v3855 = vsel %vm3197, %v3854, %v3853
    %v3856 = vrot.slane %v3555, 5
    %v3857 = vsel %vm3199, %v3856, %v3855
    %v3858 = vrot.slane %v3625, 4
    %v3859 = vsel %vm3201, %v3858, %v3857
    %v3860 = vrot.slane %v3695, 3
    %v3861 = vsel %vm3203, %v3860, %v3859
    %v3862 = vrot.slane %v3765, 2
    %v3863 = vsel %vm3205, %v3862, %v3861
    %v3864 = vrot.slane %v3835, 1
    %v3865 = vsel %vm3207, %v3864, %v3863
    %v3866 = vsel %vm235, %v3865, 0
    %3868 = vmatprep.subr.mxu0 0.0
    %3869 = vmatpush1.msra.mxu0 %v3840
    %3870 = vmatprep.subr.mxu0 0.0
    %3871 = vmatpush1.msra.mxu0 %v3841
    %3872 = vmatprep.subr.mxu0 0.0
    %3873 = vmatpush1.msra.mxu0 %v3842
    %3874 = vmatprep.subr.mxu0 0.0
    %3875 = vmatpush1.msra.mxu0 %v3843
    %3876 = vmatprep.subr.mxu0 0.0
    %3877 = vmatpush1.msra.mxu0 0.0
    %3878 = vmatprep.subr.mxu0 0.0
    %3879 = vmatpush1.msra.mxu0 0.0
    %3880 = vmatprep.subr.mxu0 0.0
    %3881 = vmatpush1.msra.mxu0 0.0
    %3882 = vmatprep.subr.mxu0 0.0
    %3883 = vmatpush1.msra.mxu0 0.0
    %3884 = vmatprep.subr.mxu0 0.0
    %3885 = vmatpush1.msra.mxu0 0.0
    %3886 = vmatprep.subr.mxu0 0.0
    %3887 = vmatpush1.msra.mxu0 0.0
    %3888 = vmatprep.subr.mxu0 0.0
    %3889 = vmatpush1.msra.mxu0 0.0
    %3890 = vmatprep.subr.mxu0 0.0
    %3891 = vmatpush1.msra.mxu0 0.0
    %3892 = vmatprep.subr.mxu0 0.0
    %3893 = vmatpush1.msra.mxu0 0.0
    %3894 = vmatprep.subr.mxu0 0.0
    %3895 = vmatpush1.msra.mxu0 0.0
    %3896 = vmatprep.subr.mxu0 0.0
    %3897 = vmatpush1.msra.mxu0 0.0
    %3898 = vmatprep.subr.mxu0 0.0
    %3899 = vmatpush1.msra.mxu0 0.0
    %3900 = vmatprep.subr.mxu0 0.0
    %3901 = vmatpush1.msra.mxu0 0.0
    %3902 = vmatprep.subr.mxu0 0.0
    %3903 = vmatpush1.msra.mxu0 0.0
    %3904 = vmatprep.subr.mxu0 0.0
    %3905 = vmatpush1.msra.mxu0 0.0
    %3906 = vmatprep.subr.mxu0 0.0
    %3907 = vmatpush1.msra.mxu0 0.0
    %3908 = vmatprep.subr.mxu0 0.0
    %3909 = vmatpush1.msra.mxu0 0.0
    %3910 = vmatprep.subr.mxu0 0.0
    %3911 = vmatpush1.msra.mxu0 0.0
    %3912 = vmatprep.subr.mxu0 0.0
    %3913 = vmatpush1.msra.mxu0 0.0
    %3914 = vmatprep.subr.mxu0 0.0
    %3915 = vmatpush1.msra.mxu0 0.0
    %3916 = vmatprep.subr.mxu0 0.0
    %3917 = vmatpush1.msra.mxu0 0.0
    %3918 = vmatprep.subr.mxu0 0.0
    %3919 = vmatpush1.msra.mxu0 0.0
    %3920 = vmatprep.subr.mxu0 0.0
    %3921 = vmatpush1.msra.mxu0 0.0
    %3922 = vmatprep.subr.mxu0 0.0
    %3923 = vmatpush1.msra.mxu0 0.0
    %3924 = vmatprep.subr.mxu0 0.0
    %3925 = vmatpush1.msra.mxu0 0.0
    %3926 = vmatprep.subr.mxu0 0.0
    %3927 = vmatpush1.msra.mxu0 0.0
    %3928 = vmatprep.subr.mxu0 0.0
    %3929 = vmatpush1.msra.mxu0 0.0
    %3930 = vmatprep.subr.mxu0 0.0
    %3931 = vmatpush1.msra.mxu0 0.0
    %3932 = vmatprep.mubr.f32.mxu0 0.0
    %3933 = vmatmul.mubr.f32.gmra.mrb[0].mxu0 %v3866
    %v3934 = vpop.f32.mrb[0].mxu0
    %v3935 = vadd.f32 0.0, %v3934
    %v3936 = vpop.f32.mrb[0].mxu0
    %3937 = vdwg.mxu0
    %vm3938 = vcmask 130048
    %v3940 = vsel %vm3938, %v100, 0
    %3942 = vmatprep.subr.mxu0 0.0
    %3943 = vmatpush1.msra.mxu0 %v3838
    %3944 = vmatprep.subr.mxu0 0.0
    %3945 = vmatpush1.msra.mxu0 %v3839
    %3946 = vmatprep.subr.mxu0 0.0
    %3947 = vmatpush1.msra.mxu0 0.0
    %3948 = vmatprep.subr.mxu0 0.0
    %3949 = vmatpush1.msra.mxu0 0.0
    %3950 = vmatprep.subr.mxu0 0.0
    %3951 = vmatpush1.msra.mxu0 0.0
    %3952 = vmatprep.subr.mxu0 0.0
    %3953 = vmatpush1.msra.mxu0 0.0
    %3954 = vmatprep.subr.mxu0 0.0
    %3955 = vmatpush1.msra.mxu0 0.0
    %3956 = vmatprep.subr.mxu0 0.0
    %3957 = vmatpush1.msra.mxu0 0.0
    %3958 = vmatprep.subr.mxu0 0.0
    %3959 = vmatpush1.msra.mxu0 0.0
    %3960 = vmatprep.subr.mxu0 0.0
    %3961 = vmatpush1.msra.mxu0 0.0
    %3962 = vmatprep.subr.mxu0 0.0
    %3963 = vmatpush1.msra.mxu0 0.0
    %3964 = vmatprep.subr.mxu0 0.0
    %3965 = vmatpush1.msra.mxu0 0.0
    %3966 = vmatprep.subr.mxu0 0.0
    %3967 = vmatpush1.msra.mxu0 0.0
    %3968 = vmatprep.subr.mxu0 0.0
    %3969 = vmatpush1.msra.mxu0 0.0
    %3970 = vmatprep.subr.mxu0 0.0
    %3971 = vmatpush1.msra.mxu0 0.0
    %3972 = vmatprep.subr.mxu0 0.0
    %3973 = vmatpush1.msra.mxu0 0.0
    %3974 = vmatprep.subr.mxu0 0.0
    %3975 = vmatpush1.msra.mxu0 0.0
    %3976 = vmatprep.subr.mxu0 0.0
    %3977 = vmatpush1.msra.mxu0 0.0
    %3978 = vmatprep.subr.mxu0 0.0
    %3979 = vmatpush1.msra.mxu0 0.0
    %3980 = vmatprep.subr.mxu0 0.0
    %3981 = vmatpush1.msra.mxu0 0.0
    %3982 = vmatprep.subr.mxu0 0.0
    %3983 = vmatpush1.msra.mxu0 0.0
    %3984 = vmatprep.subr.mxu0 0.0
    %3985 = vmatpush1.msra.mxu0 0.0
    %3986 = vmatprep.subr.mxu0 0.0
    %3987 = vmatpush1.msra.mxu0 0.0
    %3988 = vmatprep.subr.mxu0 0.0
    %3989 = vmatpush1.msra.mxu0 0.0
    %3990 = vmatprep.subr.mxu0 0.0
    %3991 = vmatpush1.msra.mxu0 0.0
    %3992 = vmatprep.subr.mxu0 0.0
    %3993 = vmatpush1.msra.mxu0 0.0
    %3994 = vmatprep.subr.mxu0 0.0
    %3995 = vmatpush1.msra.mxu0 0.0
    %3996 = vmatprep.subr.mxu0 0.0
    %3997 = vmatpush1.msra.mxu0 0.0
    %3998 = vmatprep.subr.mxu0 0.0
    %3999 = vmatpush1.msra.mxu0 0.0
    %4000 = vmatprep.subr.mxu0 0.0
    %4001 = vmatpush1.msra.mxu0 0.0
    %4002 = vmatprep.subr.mxu0 0.0
    %4003 = vmatpush1.msra.mxu0 0.0
    %4004 = vmatprep.subr.mxu0 0.0
    %4005 = vmatpush1.msra.mxu0 0.0
    %4006 = vmatprep.mubr.f32.mxu0 0.0
    %4007 = vmatmul.mubr.f32.gmra.mrb[0].mxu0 %v3940
    %v4008 = vpop.f32.mrb[0].mxu0
    %v4009 = vadd.f32 %v3935, %v4008
    %v4010 = vpop.f32.mrb[0].mxu0
    %4011 = vdwg.mxu0
    %v4012 = vld [vmem:[%s11] sm:$0xff]
    %v4013 = vld [vmem:[%s11 + $0x8] sm:$0xff]
    %v4014 = vld [vmem:[%s11 + $0x10] sm:$0xff]
    %v4015 = vld [vmem:[%s11 + $0x18] sm:$0xff]
    %4016 = vmatprep.subr.mxu0 0.0
    %4017 = vmatpush1.msra.mxu0 %v4012
    %4018 = vmatprep.subr.mxu0 0.0
    %4019 = vmatpush1.msra.mxu0 %v4013
    %4020 = vmatprep.subr.mxu0 0.0
    %4021 = vmatpush1.msra.mxu0 %v4014
    %4022 = vmatprep.subr.mxu0 0.0
    %4023 = vmatpush1.msra.mxu0 %v4015
    %4024 = vmatprep.subr.mxu0 0.0
    %4025 = vmatpush1.msra.mxu0 0.0
    %4026 = vmatprep.subr.mxu0 0.0
    %4027 = vmatpush1.msra.mxu0 0.0
    %4028 = vmatprep.subr.mxu0 0.0
    %4029 = vmatpush1.msra.mxu0 0.0
    %4030 = vmatprep.subr.mxu0 0.0
    %4031 = vmatpush1.msra.mxu0 0.0
    %4032 = vmatprep.subr.mxu0 0.0
    %4033 = vmatpush1.msra.mxu0 0.0
    %4034 = vmatprep.subr.mxu0 0.0
    %4035 = vmatpush1.msra.mxu0 0.0
    %4036 = vmatprep.subr.mxu0 0.0
    %4037 = vmatpush1.msra.mxu0 0.0
    %4038 = vmatprep.subr.mxu0 0.0
    %4039 = vmatpush1.msra.mxu0 0.0
    %4040 = vmatprep.subr.mxu0 0.0
    %4041 = vmatpush1.msra.mxu0 0.0
    %4042 = vmatprep.subr.mxu0 0.0
    %4043 = vmatpush1.msra.mxu0 0.0
    %4044 = vmatprep.subr.mxu0 0.0
    %4045 = vmatpush1.msra.mxu0 0.0
    %4046 = vmatprep.subr.mxu0 0.0
    %4047 = vmatpush1.msra.mxu0 0.0
    %4048 = vmatprep.subr.mxu0 0.0
    %4049 = vmatpush1.msra.mxu0 0.0
    %4050 = vmatprep.subr.mxu0 0.0
    %4051 = vmatpush1.msra.mxu0 0.0
    %4052 = vmatprep.subr.mxu0 0.0
    %4053 = vmatpush1.msra.mxu0 0.0
    %4054 = vmatprep.subr.mxu0 0.0
    %4055 = vmatpush1.msra.mxu0 0.0
    %4056 = vmatprep.subr.mxu0 0.0
    %4057 = vmatpush1.msra.mxu0 0.0
    %4058 = vmatprep.subr.mxu0 0.0
    %4059 = vmatpush1.msra.mxu0 0.0
    %4060 = vmatprep.subr.mxu0 0.0
    %4061 = vmatpush1.msra.mxu0 0.0
    %4062 = vmatprep.subr.mxu0 0.0
    %4063 = vmatpush1.msra.mxu0 0.0
    %4064 = vmatprep.subr.mxu0 0.0
    %4065 = vmatpush1.msra.mxu0 0.0
    %4066 = vmatprep.subr.mxu0 0.0
    %4067 = vmatpush1.msra.mxu0 0.0
    %4068 = vmatprep.subr.mxu0 0.0
    %4069 = vmatpush1.msra.mxu0 0.0
    %4070 = vmatprep.subr.mxu0 0.0
    %4071 = vmatpush1.msra.mxu0 0.0
    %4072 = vmatprep.subr.mxu0 0.0
    %4073 = vmatpush1.msra.mxu0 0.0
    %4074 = vmatprep.subr.mxu0 0.0
    %4075 = vmatpush1.msra.mxu0 0.0
    %4076 = vmatprep.subr.mxu0 0.0
    %4077 = vmatpush1.msra.mxu0 0.0
    %4078 = vmatprep.subr.mxu0 0.0
    %4079 = vmatpush1.msra.mxu0 0.0
    %4080 = vmatprep.mubr.f32.mxu0 0.0
    %4081 = vmatmul.mubr.f32.gmra.mrb[0].mxu0 %v237
    %v4082 = vpop.f32.mrb[0].mxu0
    %v4083 = vadd.f32 0.0, %v4082
    %v4084 = vpop.f32.mrb[0].mxu0
    %4085 = vdwg.mxu0
    %v4086 = vadd.f32 %v4009, %v4083
    %v4087 = vld [vmem:[%s12] sm:$0x1]
    %v4089 = vlaneseq
    %v4090 = vshrl.u32 %v4089, 7
    %v4091 = vsub.s32 0, %v4090
    %v4092 = vrot.slane %v4087, %v4091
    %v4094 = vadd.f32 %v4086, %v4092
    %v4095 = vxor.u32 %v4094, 2147483648
    %v4096 = vmul.f32 %v4095, 1.442695
    %v4097 = vpow.pop %v4096
    %v4098 = vadd.f32 %v4097, 1.0
    %v4099 = vrcp.pop %v4098
    %v4100 = vmul.f32 1.0, %v4099
    %v4101 = vtanh.pop %v4094
    %4103 = vrot.lane.b32.xlu0 %v102, 32
    %v4104 = vpop.permute.xlu0 %4103
    %v4106 = vmul.f32 %v4100, %v4104
    %4108 = vrot.lane.b32.xlu0 %v4101, 64
    %v4109 = vpop.permute.xlu0 %4108
    %v4111 = vmul.f32 %v4100, %v4109
    %4113 = vrot.lane.b32.xlu0 %v4111, 32
    %v4114 = vpop.permute.xlu0 %4113
    %v4116 = vadd.f32 %v4106, %v4114
    %v4117 = vtanh.pop %v4116
    %4119 = vrot.lane.b32.xlu0 %v4117, 64
    %v4120 = vpop.permute.xlu0 %4119
    %v4122 = vmul.f32 %v4100, %v4120
    %v4123 = vld [vmem:[%s13] sm:$0xff]
    %v4124 = vld [vmem:[%s13 + $0x8] sm:$0xff]
    %v4125 = vld [vmem:[%s13 + $0x10] sm:$0xff]
    %v4126 = vld [vmem:[%s13 + $0x18] sm:$0xff]
    %v4127 = vld [vmem:[%s14] sm:$0x1]
    %v4129 = vlaneseq
    %v4130 = vshrl.u32 %v4129, 7
    %v4131 = vsub.s32 0, %v4130
    %v4132 = vrot.slane %v4127, %v4131
    %4135 = vrot.lane.b32.xlu0 %v4122, 32
    %v4136 = vpop.permute.xlu0 %4135
    %v4137 = vsel %vm235, %v4136, 0
    %4139 = vmatprep.subr.mxu0 0.0
    %4140 = vmatpush1.msra.mxu0 %v4123
    %4141 = vmatprep.subr.mxu0 0.0
    %4142 = vmatpush1.msra.mxu0 %v4124
    %4143 = vmatprep.subr.mxu0 0.0
    %4144 = vmatpush1.msra.mxu0 %v4125
    %4145 = vmatprep.subr.mxu0 0.0
    %4146 = vmatpush1.msra.mxu0 %v4126
    %4147 = vmatprep.subr.mxu0 0.0
    %4148 = vmatpush1.msra.mxu0 0.0
    %4149 = vmatprep.subr.mxu0 0.0
    %4150 = vmatpush1.msra.mxu0 0.0
    %4151 = vmatprep.subr.mxu0 0.0
    %4152 = vmatpush1.msra.mxu0 0.0
    %4153 = vmatprep.subr.mxu0 0.0
    %4154 = vmatpush1.msra.mxu0 0.0
    %4155 = vmatprep.subr.mxu0 0.0
    %4156 = vmatpush1.msra.mxu0 0.0
    %4157 = vmatprep.subr.mxu0 0.0
    %4158 = vmatpush1.msra.mxu0 0.0
    %4159 = vmatprep.subr.mxu0 0.0
    %4160 = vmatpush1.msra.mxu0 0.0
    %4161 = vmatprep.subr.mxu0 0.0
    %4162 = vmatpush1.msra.mxu0 0.0
    %4163 = vmatprep.subr.mxu0 0.0
    %4164 = vmatpush1.msra.mxu0 0.0
    %4165 = vmatprep.subr.mxu0 0.0
    %4166 = vmatpush1.msra.mxu0 0.0
    %4167 = vmatprep.subr.mxu0 0.0
    %4168 = vmatpush1.msra.mxu0 0.0
    %4169 = vmatprep.subr.mxu0 0.0
    %4170 = vmatpush1.msra.mxu0 0.0
    %4171 = vmatprep.subr.mxu0 0.0
    %4172 = vmatpush1.msra.mxu0 0.0
    %4173 = vmatprep.subr.mxu0 0.0
    %4174 = vmatpush1.msra.mxu0 0.0
    %4175 = vmatprep.subr.mxu0 0.0
    %4176 = vmatpush1.msra.mxu0 0.0
    %4177 = vmatprep.subr.mxu0 0.0
    %4178 = vmatpush1.msra.mxu0 0.0
    %4179 = vmatprep.subr.mxu0 0.0
    %4180 = vmatpush1.msra.mxu0 0.0
    %4181 = vmatprep.subr.mxu0 0.0
    %4182 = vmatpush1.msra.mxu0 0.0
    %4183 = vmatprep.subr.mxu0 0.0
    %4184 = vmatpush1.msra.mxu0 0.0
    %4185 = vmatprep.subr.mxu0 0.0
    %4186 = vmatpush1.msra.mxu0 0.0
    %4187 = vmatprep.subr.mxu0 0.0
    %4188 = vmatpush1.msra.mxu0 0.0
    %4189 = vmatprep.subr.mxu0 0.0
    %4190 = vmatpush1.msra.mxu0 0.0
    %4191 = vmatprep.subr.mxu0 0.0
    %4192 = vmatpush1.msra.mxu0 0.0
    %4193 = vmatprep.subr.mxu0 0.0
    %4194 = vmatpush1.msra.mxu0 0.0
    %4195 = vmatprep.subr.mxu0 0.0
    %4196 = vmatpush1.msra.mxu0 0.0
    %4197 = vmatprep.subr.mxu0 0.0
    %4198 = vmatpush1.msra.mxu0 0.0
    %4199 = vmatprep.subr.mxu0 0.0
    %4200 = vmatpush1.msra.mxu0 0.0
    %4201 = vmatprep.subr.mxu0 0.0
    %4202 = vmatpush1.msra.mxu0 0.0
    %4203 = vmatprep.mubr.f32.mxu0 0.0
    %4204 = vmatmul.mubr.f32.gmra.mrb[0].mxu0 %v4137
    %v4205 = vpop.f32.mrb[0].mxu0
    %v4206 = vadd.f32 %v4132, %v4205
    %v4207 = vpop.f32.mrb[0].mxu0
    %4208 = vdwg.mxu0
    %4209 = vst [vmem:[%s15] sm:$0xff] %v4206
    %4211 = vst.msk [vmem:[%s16] sm:$0xff] %vm235, %v4136
    %4213 = vrot.lane.b32.xlu0 %v4116, 96
    %v4214 = vpop.permute.xlu0 %4213
    %4216 = vst.msk [vmem:[%s17] sm:$0xff] %vm235, %v4214
    %4217 = vst [vmem:[%s18] sm:$0xff] %v3219
    // Predicated region
    $region66: #{decoder_forward.1} parent=1 // pred_check
      _
    $region67: #{decoder_forward.1} parent=1 // pred_check_branch
      %4219 = sbr.rel (0) target = $region69
    $region68: #{decoder_forward.1} parent=1 // pred_region
      _
    $region69: #{decoder_forward.1} parent=1 // pred_fallthru
      _
    // Predicated region
    $region70: #{decoder_forward.1} parent=1 // pred_check
      _
    $region71: #{decoder_forward.1} parent=1 // pred_check_branch
      %4221 = sbr.rel (0) target = $region73
    $region72: #{decoder_forward.1} parent=1 // pred_region
      _
    $region73: #{decoder_forward.1} parent=1 // pred_fallthru
      _
    // Predicated region
    $region74: #{decoder_forward.1} parent=1 // pred_check
      _
    $region75: #{decoder_forward.1} parent=1 // pred_check_branch
      %4223 = sbr.rel (0) target = $region77
    $region76: #{decoder_forward.1} parent=1 // pred_region
      _
    $region77: #{decoder_forward.1} parent=1 // pred_fallthru
      _
    // Predicated region
    $region78: #{decoder_forward.1} parent=1 // pred_check
      _
    $region79: #{decoder_forward.1} parent=1 // pred_check_branch
      %4225 = sbr.rel (0) target = $region81
    $region80: #{decoder_forward.1} parent=1 // pred_region
      _
    $region81: #{decoder_forward.1} parent=1 // pred_fallthru
      _
    // Predicated region
    $region82: #{decoder_forward.1} parent=1 // pred_check
      _
    $region83: #{decoder_forward.1} parent=1 // pred_check_branch
      %4227 = sbr.rel (0) target = $region85
    $region84: #{decoder_forward.1} parent=1 // pred_region
      _
    $region85: #{decoder_forward.1} parent=1 // pred_fallthru
      _
    // Predicated region
    $region86: #{decoder_forward.1} parent=1 // pred_check
      _
    $region87: #{decoder_forward.1} parent=1 // pred_check_branch
      %4229 = sbr.rel (0) target = $region89
    $region88: #{decoder_forward.1} parent=1 // pred_region
      _
    $region89: #{decoder_forward.1} parent=1 // pred_fallthru
      _
    // Predicated region
    $region90: #{decoder_forward.1} parent=1 // pred_check
      _
    $region91: #{decoder_forward.1} parent=1 // pred_check_branch
      %4231 = sbr.rel (0) target = $region93
    $region92: #{decoder_forward.1} parent=1 // pred_region
      _
    $region93: #{decoder_forward.1} parent=1 // pred_fallthru
      _
    // Predicated region
    $region94: #{decoder_forward.1} parent=1 // pred_check
      _
    $region95: #{decoder_forward.1} parent=1 // pred_check_branch
      %4233 = sbr.rel (0) target = $region97
    $region96: #{decoder_forward.1} parent=1 // pred_region
      _
    $region97: #{decoder_forward.1} parent=1 // pred_fallthru
      _
    %4234 = vsyncpa [#allocation4], 1

</llo_original>
